<compile_context>
chip_gen: v7x
topology: tpu7x:2x2x1
jax: 0.10.0
libtpu: 0.0.40
codegen_flags: <defaults>
</compile_context>

<pallas_src>
import functools

import jax
import jax.numpy as jnp
from jax.experimental import pallas as pl
from jax.experimental.pallas import tpu as pltpu


# -----------------------------------------------------------------------------
# Kernel 1: tiled linear (+ optional ReLU)   y = x @ W + b
# -----------------------------------------------------------------------------
def _linear_kernel(x_ref, w_ref, b_ref, o_ref, *, relu):
    y = jnp.dot(x_ref[...], w_ref[...], preferred_element_type=jnp.float32)
    y = y + b_ref[...]
    if relu:
        y = jnp.maximum(y, 0.0)
    o_ref[...] = y


def pallas_linear(x, w, b, relu=False, tm=512):
    N, F = x.shape
    O = w.shape[1]
    tm = min(tm, N)
    return pl.pallas_call(
        functools.partial(_linear_kernel, relu=relu),
        out_shape=jax.ShapeDtypeStruct((N, O), jnp.float32),
        grid=(pl.cdiv(N, tm),),
        in_specs=[pl.BlockSpec((tm, F), lambda i: (i, 0)),
                  pl.BlockSpec((F, O), lambda i: (0, 0)),
                  pl.BlockSpec((1, O), lambda i: (0, 0))],
        out_specs=pl.BlockSpec((tm, O), lambda i: (i, 0)),
        compiler_params=pltpu.CompilerParams(
            dimension_semantics=("parallel",)),
    )(x, w, b.reshape(1, O))


# -----------------------------------------------------------------------------
# Kernel 2: fused att_embed1 (linear+ReLU) and att_embed2 (linear)
#           -- one read of the attention features, two outputs.
# -----------------------------------------------------------------------------
def _att_prep_kernel(x_ref, w1_ref, b1_ref, w2_ref, b2_ref, o1_ref, o2_ref):
    x = x_ref[...]
    y1 = jnp.dot(x, w1_ref[...], preferred_element_type=jnp.float32) + b1_ref[...]
    o1_ref[...] = jnp.maximum(y1, 0.0)
    o2_ref[...] = (jnp.dot(x, w2_ref[...], preferred_element_type=jnp.float32)
                   + b2_ref[...])


def pallas_att_prep(x, w1, b1, w2, b2, tm=512):
    N, F = x.shape
    R = w1.shape[1]
    H = w2.shape[1]
    tm = min(tm, N)
    return pl.pallas_call(
        _att_prep_kernel,
        out_shape=(jax.ShapeDtypeStruct((N, R), jnp.float32),
                   jax.ShapeDtypeStruct((N, H), jnp.float32)),
        grid=(pl.cdiv(N, tm),),
        in_specs=[pl.BlockSpec((tm, F), lambda i: (i, 0)),
                  pl.BlockSpec((F, R), lambda i: (0, 0)),
                  pl.BlockSpec((1, R), lambda i: (0, 0)),
                  pl.BlockSpec((F, H), lambda i: (0, 0)),
                  pl.BlockSpec((1, H), lambda i: (0, 0))],
        out_specs=(pl.BlockSpec((tm, R), lambda i: (i, 0)),
                   pl.BlockSpec((tm, H), lambda i: (i, 0))),
        compiler_params=pltpu.CompilerParams(
            dimension_semantics=("parallel",)),
    )(x, w1, b1.reshape(1, R), w2, b2.reshape(1, H))


# -----------------------------------------------------------------------------
# Kernel 3: fused TopDown decode, single invocation, in-kernel time loop.
#   per step: attention LSTM (1 merged dot + hoisted precomputed gate terms)
#             -> additive attention -> language LSTM (1 merged dot)
#             -> output projection + softmax.
# -----------------------------------------------------------------------------
def _decode_kernel(
    # SMEM
    n_ref,            # (1,) int32  number of active decode steps
    # VMEM inputs
    xtg_ref,          # (T, B, 4R)  pre-projected word embeddings: E[word] @ W_a_x
    fcg_ref,          # (B, 4R)     fc @ W_a_fc + b_a  (loop invariant, bias folded)
    att1_ref,         # (B, L, R)
    att2_ref,         # (B, L, H)
    mask_ref,         # (B, L)
    w_att_rec_ref,    # (2R, 4R) = concat([W for h_lang ; W_hh for h_att], axis=0)
    w_lang_rec_ref,   # (3R, 4R) = concat([W att_res ; W h_att ; W_hh h_lang], axis=0)
    b_l_ref,          # (1, 4R)
    w_h2att_ref, b_h2att_ref, w_alpha_ref, b_alpha_ref,
    w_out_ref, b_out_ref,
    # output
    probs_ref,        # (T, B, V)
    # scratch (LSTM state)
    h_att, c_att, h_lang, c_lang,
    *, rnn_size):
    R = rnn_size

    # init: outputs of skipped (early-break) steps stay zero
    probs_ref[...] = jnp.zeros_like(probs_ref)
    h_att[...] = jnp.zeros_like(h_att)
    c_att[...] = jnp.zeros_like(c_att)
    h_lang[...] = jnp.zeros_like(h_lang)
    c_lang[...] = jnp.zeros_like(c_lang)

    n_active = n_ref[0]

    @pl.loop(0, n_active)
    def _step(t):
        h_a = h_att[...]
        c_a = c_att[...]
        h_l = h_lang[...]
        c_l = c_lang[...]

        # ---------------- attention LSTM (one merged wide-K dot) ------------
        rec_in = jnp.concatenate([h_l, h_a], axis=1)          # (B, 2R)
        gates_a = (jnp.dot(rec_in, w_att_rec_ref[...],
                           preferred_element_type=jnp.float32)
                   + fcg_ref[...] + xtg_ref[t])                # (B, 4R)
        i_a = jax.nn.sigmoid(gates_a[:, 0 * R:1 * R])
        f_a = jax.nn.sigmoid(gates_a[:, 1 * R:2 * R])
        g_a = jnp.tanh(gates_a[:, 2 * R:3 * R])
        o_a = jax.nn.sigmoid(gates_a[:, 3 * R:4 * R])
        c_att_new = f_a * c_a + i_a * g_a
        h_att_new = o_a * jnp.tanh(c_att_new)

        # ---------------- additive attention (keep (B, L, H) layout) --------
        att_h = (jnp.dot(h_att_new, w_h2att_ref[...],
                         preferred_element_type=jnp.float32)
                 + b_h2att_ref[...])                           # (B, H)
        dot = jnp.tanh(att2_ref[...] + att_h[:, None, :])      # (B, L, H)
        # w_alpha stored (1, H): VPU multiply + lane reduce, no reshape/matmul
        e = jnp.sum(dot * w_alpha_ref[...][None, :, :], axis=-1)   # (B, L)
        e = e + b_alpha_ref[...]
        w = jax.nn.softmax(e, axis=1) * mask_ref[...]
        w = w / jnp.sum(w, axis=1, keepdims=True)
        # TODO(synk): for production L/R, use einsum('bl,blr->br') to put this
        #             weighted sum on the MXU instead of VPU + sublane reduce.
        att_res = jnp.sum(w[:, :, None] * att1_ref[...], axis=1)   # (B, R)

        # ---------------- language LSTM (one merged wide-K dot) -------------
        lang_in = jnp.concatenate([att_res, h_att_new, h_l], axis=1)  # (B, 3R)
        gates_l = (jnp.dot(lang_in, w_lang_rec_ref[...],
                           preferred_element_type=jnp.float32)
                   + b_l_ref[...])                             # (B, 4R)
        i_l = jax.nn.sigmoid(gates_l[:, 0 * R:1 * R])
        f_l = jax.nn.sigmoid(gates_l[:, 1 * R:2 * R])
        g_l = jnp.tanh(gates_l[:, 2 * R:3 * R])
        o_l = jax.nn.sigmoid(gates_l[:, 3 * R:4 * R])
        c_lang_new = f_l * c_l + i_l * g_l
        h_lang_new = o_l * jnp.tanh(c_lang_new)

        # ---------------- output projection + softmax over vocab ------------
        logits = (jnp.dot(h_lang_new, w_out_ref[...],
                          preferred_element_type=jnp.float32)
                  + b_out_ref[...])
        probs_ref[t] = jax.nn.softmax(logits, axis=1)          # (B, V), lane-dense

        # carry state
        h_att[...] = h_att_new
        c_att[...] = c_att_new
        h_lang[...] = h_lang_new
        c_lang[...] = c_lang_new


def topdown_decode(dec, xt_gates_all, fc_gates, att1, att2, mask, n_active,
                   *, rnn_size, vocab_size):
    T, B, _ = xt_gates_all.shape
    R = rnn_size
    V = vocab_size

    smem = pl.BlockSpec(memory_space=pltpu.MemorySpace.SMEM)
    vmem = pl.BlockSpec(memory_space=pltpu.MemorySpace.VMEM)
    in_specs = [smem] + [vmem] * 14

    return pl.pallas_call(
        functools.partial(_decode_kernel, rnn_size=R),
        out_shape=jax.ShapeDtypeStruct((T, B, V), jnp.float32),
        in_specs=in_specs,
        out_specs=pl.BlockSpec(memory_space=pltpu.MemorySpace.VMEM),
        scratch_shapes=[pltpu.VMEM((B, R), jnp.float32)] * 4,
    )(n_active, xt_gates_all, fc_gates, att1, att2, mask,
      dec["w_att_rec"], dec["w_lang_rec"], dec["b_l"],
      dec["w_h2att"], dec["b_h2att"], dec["w_alpha"], dec["b_alpha"],
      dec["w_out"], dec["b_out"])


# -----------------------------------------------------------------------------
# parameter construction (deterministic, synthetic, pre-split for the kernel)
# -----------------------------------------------------------------------------
def init_params(key, *, vocab_size, input_encoding_size, fc_feat_size,
                att_feat_size, rnn_size, att_hid_size):
    E, R, H, V = input_encoding_size, rnn_size, att_hid_size, vocab_size
    keys = jax.random.split(key, 32)
    k = iter(keys)

    def w(shape):
        return (0.1 * jax.random.normal(next(k), shape)).astype(jnp.float32)

    return {
        # embedding table
        "embedding": w((V, E)),
        # feature embeddings (stored (in, out) so kernels do x @ W)
        "fc_w": w((fc_feat_size, R)),   "fc_b": w((R,)),
        "att1_w": w((att_feat_size, R)), "att1_b": w((R,)),
        "att2_w": w((att_feat_size, H)), "att2_b": w((H,)),
        # attention LSTM: input = [h_lang, fc, xt] -> weights pre-split row-wise
        "w_a_h": w((R, 4 * R)), "w_a_fc": w((R, 4 * R)), "w_a_x": w((E, 4 * R)),
        "w_hh_a": w((R, 4 * R)), "b_a": w((1, 4 * R)),      # b_ih + b_hh folded
        # language LSTM: input = [att_res, h_att] -> weights pre-split row-wise
        "w_l_att": w((R, 4 * R)), "w_l_h": w((R, 4 * R)),
        "w_hh_l": w((R, 4 * R)), "b_l": w((1, 4 * R)),
        # attention MLP (w_alpha stored transposed (1, H) for lane reduce)
        "w_h2att": w((R, H)), "b_h2att": w((1, H)),
        "w_alpha": w((1, H)), "b_alpha": w((1, 1)),
        # output layer
        "w_out": w((R, V)), "b_out": w((1, V)),
    }


# -----------------------------------------------------------------------------
# Generator.forward (fully jittable)
# -----------------------------------------------------------------------------
def generator_forward(params, fc_feats, att_feats, att_masks, labels,
                      *, rnn_size, vocab_size):
    B, L, Fa = att_feats.shape
    R = rnn_size
    T = labels.shape[1]

    # _prepare_feature  (dropout == identity in eval mode)
    fc = pallas_linear(fc_feats, params["fc_w"], params["fc_b"], relu=True)
    att_flat = att_feats.reshape(B * L, Fa)
    att1_flat, att2_flat = pallas_att_prep(
        att_flat, params["att1_w"], params["att1_b"],
        params["att2_w"], params["att2_b"])
    att1 = att1_flat.reshape(B, L, R)
    att2 = att2_flat.reshape(B, L, -1)

    # loop-invariant attention-LSTM gate contribution (bias b_a folded here)
    fc_gates = pallas_linear(fc, params["w_a_fc"], params["b_a"])     # (B, 4R)

    # pre-project the embedding table through W_a_x once, gather rows per step
    emb_proj = pallas_linear(params["embedding"], params["w_a_x"],
                             jnp.zeros((4 * R,), jnp.float32))        # (V, 4R)
    words_all = jnp.concatenate(
        [jnp.zeros((B, 1), jnp.int32), labels[:, :-1].astype(jnp.int32)], axis=1)
    xt_gates_all = jnp.take(emb_proj, words_all.T, axis=0)            # (T, B, 4R)

    # merged recurrent weights (row order matches the in-kernel concats)
    dec = {
        "w_att_rec": jnp.concatenate(
            [params["w_a_h"], params["w_hh_a"]], axis=0),             # (2R, 4R)
        "w_lang_rec": jnp.concatenate(
            [params["w_l_att"], params["w_l_h"], params["w_hh_l"]], axis=0),
        "b_l": params["b_l"],
        "w_h2att": params["w_h2att"], "b_h2att": params["b_h2att"],
        "w_alpha": params["w_alpha"], "b_alpha": params["b_alpha"],
        "w_out": params["w_out"], "b_out": params["b_out"],
    }

    # early-break: number of executed steps = 1 + #leading nonzero label columns
    nonzero = (jnp.sum(labels, axis=0) != 0).astype(jnp.int32)        # (T,)
    n_active = (1 + jnp.sum(jnp.cumprod(nonzero)[:T - 1])).astype(jnp.int32)
    n_active = n_active.reshape(1)

    probs_tbv = topdown_decode(dec, xt_gates_all, fc_gates, att1, att2,
                               att_masks, n_active,
                               rnn_size=R, vocab_size=vocab_size)
    # TODO(synk): for production sizes write the (B, T, V) layout directly in
    #             the kernel (dynamic sublane store) to avoid this transpose.
    return jnp.transpose(probs_tbv, (1, 0, 2))    # (B, T, V)


# -----------------------------------------------------------------------------
# pure-JAX reference (original concat-form math) for verification
# -----------------------------------------------------------------------------
def reference_forward(p, fc_feats, att_feats, att_masks, labels,
                      *, rnn_size, vocab_size):
    B, L, Fa = att_feats.shape
    R, V = rnn_size, vocab_size
    T = labels.shape[1]

    fc = jnp.maximum(fc_feats @ p["fc_w"] + p["fc_b"], 0.0)
    af = att_feats.reshape(B * L, Fa)
    att1 = jnp.maximum(af @ p["att1_w"] + p["att1_b"], 0.0).reshape(B, L, R)
    att2 = (af @ p["att2_w"] + p["att2_b"]).reshape(B, L, -1)

    w_ih_a = jnp.concatenate([p["w_a_h"], p["w_a_fc"], p["w_a_x"]], axis=0)
    w_ih_l = jnp.concatenate([p["w_l_att"], p["w_l_h"]], axis=0)

    h_att = c_att = h_lang = c_lang = jnp.zeros((B, R), jnp.float32)
    outputs = jnp.zeros((B, T, V), jnp.float32)

    def lstm(x, h, c, w_ih, w_hh, b):
        g = x @ w_ih + h @ w_hh + b
        i = jax.nn.sigmoid(g[:, 0 * R:1 * R])
        f = jax.nn.sigmoid(g[:, 1 * R:2 * R])
        gg = jnp.tanh(g[:, 2 * R:3 * R])
        o = jax.nn.sigmoid(g[:, 3 * R:4 * R])
        c_new = f * c + i * gg
        return o * jnp.tanh(c_new), c_new

    for i in range(T):
        words = jnp.zeros((B,), jnp.int32) if i == 0 else labels[:, i - 1]
        xt = p["embedding"][words]
        x_a = jnp.concatenate([h_lang, fc, xt], axis=1)
        h_att, c_att = lstm(x_a, h_att, c_att, w_ih_a, p["w_hh_a"], p["b_a"])
        att_h = h_att @ p["w_h2att"] + p["b_h2att"]
        dot = jnp.tanh(att2 + att_h[:, None, :])
        e = jnp.sum(dot * p["w_alpha"][None, :, :], axis=-1) + p["b_alpha"]
        w = jax.nn.softmax(e, axis=1) * att_masks
        w = w / jnp.sum(w, axis=1, keepdims=True)
        att_res = jnp.sum(w[:, :, None] * att1, axis=1)
        x_l = jnp.concatenate([att_res, h_att], axis=1)
        h_lang, c_lang = lstm(x_l, h_lang, c_lang, w_ih_l, p["w_hh_l"], p["b_l"])
        logits = h_lang @ p["w_out"] + p["b_out"]
        outputs = outputs.at[:, i].set(jax.nn.softmax(logits, axis=1))
        if int(jnp.sum(labels[:, i])) == 0:
            break
    return outputs


# -----------------------------------------------------------------------------
# main
# -----------------------------------------------------------------------------
if __name__ == "__main__":
    # small but tile-aligned sizes (B multiple of 8 sublanes, dims = 128 lanes)
    B = 8          # batch
    L = 8          # attention regions
    FC_FEAT = 128  # args.fc_feat_size
    ATT_FEAT = 128 # args.att_feat_size
    E = 128        # args.input_encoding_size
    R = 128        # args.rnn_size
    H = 128        # args.att_hid_size
    VOCAB = 128    # len(vocab) + 1  (synthetic vocab, padded to a lane tile)
    T = 8          # labels sequence length

    key = jax.random.PRNGKey(0)
    kp, k1, k2, k3 = jax.random.split(key, 4)

    params = init_params(kp, vocab_size=VOCAB, input_encoding_size=E,
                         fc_feat_size=FC_FEAT, att_feat_size=ATT_FEAT,
                         rnn_size=R, att_hid_size=H)

    fc_feats = jax.random.normal(k1, (B, FC_FEAT), jnp.float32)
    att_feats = jax.random.normal(k2, (B, L, ATT_FEAT), jnp.float32)
    att_masks = jnp.ones((B, L), jnp.float32)
    labels = jax.random.randint(k3, (B, T), 1, VOCAB, dtype=jnp.int32)
    labels = labels.at[:, T - 2:].set(0)   # exercise the early-stop path

    fwd = jax.jit(functools.partial(generator_forward,
                                    rnn_size=R, vocab_size=VOCAB))
    out = jax.block_until_ready(fwd(params, fc_feats, att_feats,
                                    att_masks, labels))

    ref = reference_forward(params, fc_feats, att_feats, att_masks, labels,
                            rnn_size=R, vocab_size=VOCAB)
    assert out.shape == (B, T, VOCAB)
    assert jnp.allclose(out, ref, atol=1e-4, rtol=1e-4), "mismatch vs reference"

    print("KERNEL_OK")
</pallas_src>

<mosaic_0001>
module attributes {stable_mosaic.version = 11 : i64} {
  func.func @_linear_kernel(%arg0: i32, %arg1: memref<8x128xf32, #tpu.memory_space<vmem>>, %arg2: memref<128x128xf32, #tpu.memory_space<vmem>>, %arg3: memref<1x128xf32, #tpu.memory_space<vmem>>, %arg4: memref<8x128xf32, #tpu.memory_space<vmem>>) attributes {dimension_semantics = [#tpu.dimension_semantics<parallel>], iteration_bounds = array<i64: 1>, scalar_prefetch = 0 : i64, scratch_operands = 0 : i64, tpu.core_type = #tpu.core_type<tc>, window_params = [{transform_indices = @transform_0, window_bounds = array<i64: 8, 128>}, {pipeline_mode = #tpu.pipeline_mode<synchronous>, transform_indices = @transform_1, window_bounds = array<i64: 128, 128>}, {pipeline_mode = #tpu.pipeline_mode<synchronous>, transform_indices = @transform_2, window_bounds = array<i64: 1, 128>}, {transform_indices = @transform_3, window_bounds = array<i64: 8, 128>}]} {
    %c0 = arith.constant 0 : index
    %c0_0 = arith.constant 0 : index
    %0 = vector.load %arg1[%c0, %c0_0] : memref<8x128xf32, #tpu.memory_space<vmem>>, vector<8x128xf32>
    %c0_1 = arith.constant 0 : index
    %c0_2 = arith.constant 0 : index
    %1 = vector.load %arg2[%c0_1, %c0_2] : memref<128x128xf32, #tpu.memory_space<vmem>>, vector<128x128xf32>
    %cst = arith.constant dense<0.000000e+00> : vector<8x128xf32>
    %2 = tpu.matmul %0, %1, %cst {dimension_numbers = #tpu.dot_dimension_numbers<[1], [0], [0], [1], [0, 0, 1, 1], [], []>} : vector<8x128xf32>, vector<128x128xf32>, vector<8x128xf32> -> vector<8x128xf32>
    %c0_3 = arith.constant 0 : index
    %c0_4 = arith.constant 0 : index
    %3 = vector.load %arg3[%c0_3, %c0_4] : memref<1x128xf32, #tpu.memory_space<vmem>>, vector<1x128xf32>
    %4 = vector.broadcast %3 : vector<1x128xf32> to vector<8x128xf32>
    %5 = arith.addf %2, %4 : vector<8x128xf32>
    %cst_5 = arith.constant 0.000000e+00 : f32
    %6 = vector.broadcast %cst_5 : f32 to vector<8x128xf32>
    %7 = arith.maximumf %5, %6 : vector<8x128xf32>
    %c0_6 = arith.constant 0 : index
    %c0_7 = arith.constant 0 : index
    %8 = vector.load %arg4[%c0_6, %c0_7] : memref<8x128xf32, #tpu.memory_space<vmem>>, vector<8x128xf32>
    tpu.vector_store %arg4[%c0_6, %c0_7], %7 {strides = array<i32>} : memref<8x128xf32, #tpu.memory_space<vmem>>, vector<8x128xf32>,
    return
  }
  func.func @transform_0(%arg0: i32) -> (i32, i32) {
    %c0_i32 = arith.constant 0 : i32
    %c0_i32_0 = arith.constant 0 : i32
    return %arg0, %c0_i32 : i32, i32
  }
  func.func @transform_1(%arg0: i32) -> (i32, i32) {
    %c0_i32 = arith.constant 0 : i32
    %c0_i32_0 = arith.constant 0 : i32
    %c0_i32_1 = arith.constant 0 : i32
    return %c0_i32, %c0_i32_0 : i32, i32
  }
  func.func @transform_2(%arg0: i32) -> (i32, i32) {
    %c0_i32 = arith.constant 0 : i32
    %c0_i32_0 = arith.constant 0 : i32
    %c0_i32_1 = arith.constant 0 : i32
    return %c0_i32, %c0_i32_0 : i32, i32
  }
  func.func @transform_3(%arg0: i32) -> (i32, i32) {
    %c0_i32 = arith.constant 0 : i32
    %c0_i32_0 = arith.constant 0 : i32
    return %arg0, %c0_i32 : i32, i32
  }
}

module attributes {stable_mosaic.version = 11 : i64} {
  func.func @_linear_kernel(%arg0: i32, %arg1: memref<8x128xf32, #tpu.memory_space<vmem>>, %arg2: memref<128x512xf32, #tpu.memory_space<vmem>>, %arg3: memref<1x512xf32, #tpu.memory_space<vmem>>, %arg4: memref<8x512xf32, #tpu.memory_space<vmem>>) attributes {dimension_semantics = [#tpu.dimension_semantics<parallel>], iteration_bounds = array<i64: 1>, scalar_prefetch = 0 : i64, scratch_operands = 0 : i64, tpu.core_type = #tpu.core_type<tc>, window_params = [{transform_indices = @transform_0, window_bounds = array<i64: 8, 128>}, {pipeline_mode = #tpu.pipeline_mode<synchronous>, transform_indices = @transform_1, window_bounds = array<i64: 128, 512>}, {pipeline_mode = #tpu.pipeline_mode<synchronous>, transform_indices = @transform_2, window_bounds = array<i64: 1, 512>}, {transform_indices = @transform_3, window_bounds = array<i64: 8, 512>}]} {
    %c0 = arith.constant 0 : index
    %c0_0 = arith.constant 0 : index
    %0 = vector.load %arg1[%c0, %c0_0] : memref<8x128xf32, #tpu.memory_space<vmem>>, vector<8x128xf32>
    %c0_1 = arith.constant 0 : index
    %c0_2 = arith.constant 0 : index
    %1 = vector.load %arg2[%c0_1, %c0_2] : memref<128x512xf32, #tpu.memory_space<vmem>>, vector<128x512xf32>
    %cst = arith.constant dense<0.000000e+00> : vector<8x512xf32>
    %2 = tpu.matmul %0, %1, %cst {dimension_numbers = #tpu.dot_dimension_numbers<[1], [0], [0], [1], [0, 0, 1, 1], [], []>} : vector<8x128xf32>, vector<128x512xf32>, vector<8x512xf32> -> vector<8x512xf32>
    %c0_3 = arith.constant 0 : index
    %c0_4 = arith.constant 0 : index
    %3 = vector.load %arg3[%c0_3, %c0_4] : memref<1x512xf32, #tpu.memory_space<vmem>>, vector<1x512xf32>
    %4 = vector.broadcast %3 : vector<1x512xf32> to vector<8x512xf32>
    %5 = arith.addf %2, %4 : vector<8x512xf32>
    %c0_5 = arith.constant 0 : index
    %c0_6 = arith.constant 0 : index
    %6 = vector.load %arg4[%c0_5, %c0_6] : memref<8x512xf32, #tpu.memory_space<vmem>>, vector<8x512xf32>
    tpu.vector_store %arg4[%c0_5, %c0_6], %5 {strides = array<i32>} : memref<8x512xf32, #tpu.memory_space<vmem>>, vector<8x512xf32>,
    return
  }
  func.func @transform_0(%arg0: i32) -> (i32, i32) {
    %c0_i32 = arith.constant 0 : i32
    %c0_i32_0 = arith.constant 0 : i32
    return %arg0, %c0_i32 : i32, i32
  }
  func.func @transform_1(%arg0: i32) -> (i32, i32) {
    %c0_i32 = arith.constant 0 : i32
    %c0_i32_0 = arith.constant 0 : i32
    %c0_i32_1 = arith.constant 0 : i32
    return %c0_i32, %c0_i32_0 : i32, i32
  }
  func.func @transform_2(%arg0: i32) -> (i32, i32) {
    %c0_i32 = arith.constant 0 : i32
    %c0_i32_0 = arith.constant 0 : i32
    %c0_i32_1 = arith.constant 0 : i32
    return %c0_i32, %c0_i32_0 : i32, i32
  }
  func.func @transform_3(%arg0: i32) -> (i32, i32) {
    %c0_i32 = arith.constant 0 : i32
    %c0_i32_0 = arith.constant 0 : i32
    return %arg0, %c0_i32 : i32, i32
  }
}

module attributes {stable_mosaic.version = 11 : i64} {
  func.func @_att_prep_kernel(%arg0: i32, %arg1: memref<64x128xf32, #tpu.memory_space<vmem>>, %arg2: memref<128x128xf32, #tpu.memory_space<vmem>>, %arg3: memref<1x128xf32, #tpu.memory_space<vmem>>, %arg4: memref<128x128xf32, #tpu.memory_space<vmem>>, %arg5: memref<1x128xf32, #tpu.memory_space<vmem>>, %arg6: memref<64x128xf32, #tpu.memory_space<vmem>>, %arg7: memref<64x128xf32, #tpu.memory_space<vmem>>) attributes {dimension_semantics = [#tpu.dimension_semantics<parallel>], iteration_bounds = array<i64: 1>, scalar_prefetch = 0 : i64, scratch_operands = 0 : i64, tpu.core_type = #tpu.core_type<tc>, window_params = [{transform_indices = @transform_0, window_bounds = array<i64: 64, 128>}, {pipeline_mode = #tpu.pipeline_mode<synchronous>, transform_indices = @transform_1, window_bounds = array<i64: 128, 128>}, {pipeline_mode = #tpu.pipeline_mode<synchronous>, transform_indices = @transform_2, window_bounds = array<i64: 1, 128>}, {pipeline_mode = #tpu.pipeline_mode<synchronous>, transform_indices = @transform_3, window_bounds = array<i64: 128, 128>}, {pipeline_mode = #tpu.pipeline_mode<synchronous>, transform_indices = @transform_4, window_bounds = array<i64: 1, 128>}, {transform_indices = @transform_5, window_bounds = array<i64: 64, 128>}, {transform_indices = @transform_6, window_bounds = array<i64: 64, 128>}]} {
    %c0 = arith.constant 0 : index
    %c0_0 = arith.constant 0 : index
    %0 = vector.load %arg1[%c0, %c0_0] : memref<64x128xf32, #tpu.memory_space<vmem>>, vector<64x128xf32>
    %c0_1 = arith.constant 0 : index
    %c0_2 = arith.constant 0 : index
    %1 = vector.load %arg2[%c0_1, %c0_2] : memref<128x128xf32, #tpu.memory_space<vmem>>, vector<128x128xf32>
    %cst = arith.constant dense<0.000000e+00> : vector<64x128xf32>
    %2 = tpu.matmul %0, %1, %cst {dimension_numbers = #tpu.dot_dimension_numbers<[1], [0], [0], [1], [0, 0, 1, 1], [], []>} : vector<64x128xf32>, vector<128x128xf32>, vector<64x128xf32> -> vector<64x128xf32>
    %c0_3 = arith.constant 0 : index
    %c0_4 = arith.constant 0 : index
    %3 = vector.load %arg3[%c0_3, %c0_4] : memref<1x128xf32, #tpu.memory_space<vmem>>, vector<1x128xf32>
    %4 = vector.broadcast %3 : vector<1x128xf32> to vector<64x128xf32>
    %5 = arith.addf %2, %4 : vector<64x128xf32>
    %cst_5 = arith.constant 0.000000e+00 : f32
    %6 = vector.broadcast %cst_5 : f32 to vector<64x128xf32>
    %7 = arith.maximumf %5, %6 : vector<64x128xf32>
    %c0_6 = arith.constant 0 : index
    %c0_7 = arith.constant 0 : index
    %8 = vector.load %arg6[%c0_6, %c0_7] : memref<64x128xf32, #tpu.memory_space<vmem>>, vector<64x128xf32>
    tpu.vector_store %arg6[%c0_6, %c0_7], %7 {strides = array<i32>} : memref<64x128xf32, #tpu.memory_space<vmem>>, vector<64x128xf32>,
    %c0_8 = arith.constant 0 : index
    %c0_9 = arith.constant 0 : index
    %9 = vector.load %arg4[%c0_8, %c0_9] : memref<128x128xf32, #tpu.memory_space<vmem>>, vector<128x128xf32>
    %cst_10 = arith.constant dense<0.000000e+00> : vector<64x128xf32>
    %10 = tpu.matmul %0, %9, %cst_10 {dimension_numbers = #tpu.dot_dimension_numbers<[1], [0], [0], [1], [0, 0, 1, 1], [], []>} : vector<64x128xf32>, vector<128x128xf32>, vector<64x128xf32> -> vector<64x128xf32>
    %c0_11 = arith.constant 0 : index
    %c0_12 = arith.constant 0 : index
    %11 = vector.load %arg5[%c0_11, %c0_12] : memref<1x128xf32, #tpu.memory_space<vmem>>, vector<1x128xf32>
    %12 = vector.broadcast %11 : vector<1x128xf32> to vector<64x128xf32>
    %13 = arith.addf %10, %12 : vector<64x128xf32>
    %c0_13 = arith.constant 0 : index
    %c0_14 = arith.constant 0 : index
    %14 = vector.load %arg7[%c0_13, %c0_14] : memref<64x128xf32, #tpu.memory_space<vmem>>, vector<64x128xf32>
    tpu.vector_store %arg7[%c0_13, %c0_14], %13 {strides = array<i32>} : memref<64x128xf32, #tpu.memory_space<vmem>>, vector<64x128xf32>,
    return
  }
  func.func @transform_0(%arg0: i32) -> (i32, i32) {
    %c0_i32 = arith.constant 0 : i32
    %c0_i32_0 = arith.constant 0 : i32
    return %arg0, %c0_i32 : i32, i32
  }
  func.func @transform_1(%arg0: i32) -> (i32, i32) {
    %c0_i32 = arith.constant 0 : i32
    %c0_i32_0 = arith.constant 0 : i32
    %c0_i32_1 = arith.constant 0 : i32
    return %c0_i32, %c0_i32_0 : i32, i32
  }
  func.func @transform_2(%arg0: i32) -> (i32, i32) {
    %c0_i32 = arith.constant 0 : i32
    %c0_i32_0 = arith.constant 0 : i32
    %c0_i32_1 = arith.constant 0 : i32
    return %c0_i32, %c0_i32_0 : i32, i32
  }
  func.func @transform_3(%arg0: i32) -> (i32, i32) {
    %c0_i32 = arith.constant 0 : i32
    %c0_i32_0 = arith.constant 0 : i32
    %c0_i32_1 = arith.constant 0 : i32
    return %c0_i32, %c0_i32_0 : i32, i32
  }
  func.func @transform_4(%arg0: i32) -> (i32, i32) {
    %c0_i32 = arith.constant 0 : i32
    %c0_i32_0 = arith.constant 0 : i32
    %c0_i32_1 = arith.constant 0 : i32
    return %c0_i32, %c0_i32_0 : i32, i32
  }
  func.func @transform_5(%arg0: i32) -> (i32, i32) {
    %c0_i32 = arith.constant 0 : i32
    %c0_i32_0 = arith.constant 0 : i32
    return %arg0, %c0_i32 : i32, i32
  }
  func.func @transform_6(%arg0: i32) -> (i32, i32) {
    %c0_i32 = arith.constant 0 : i32
    %c0_i32_0 = arith.constant 0 : i32
    return %arg0, %c0_i32 : i32, i32
  }
}

module attributes {stable_mosaic.version = 11 : i64} {
  func.func @_linear_kernel(%arg0: i32, %arg1: memref<128x128xf32, #tpu.memory_space<vmem>>, %arg2: memref<128x512xf32, #tpu.memory_space<vmem>>, %arg3: memref<1x512xf32, #tpu.memory_space<vmem>>, %arg4: memref<128x512xf32, #tpu.memory_space<vmem>>) attributes {dimension_semantics = [#tpu.dimension_semantics<parallel>], iteration_bounds = array<i64: 1>, scalar_prefetch = 0 : i64, scratch_operands = 0 : i64, tpu.core_type = #tpu.core_type<tc>, window_params = [{transform_indices = @transform_0, window_bounds = array<i64: 128, 128>}, {pipeline_mode = #tpu.pipeline_mode<synchronous>, transform_indices = @transform_1, window_bounds = array<i64: 128, 512>}, {pipeline_mode = #tpu.pipeline_mode<synchronous>, transform_indices = @transform_2, window_bounds = array<i64: 1, 512>}, {transform_indices = @transform_3, window_bounds = array<i64: 128, 512>}]} {
    %c0 = arith.constant 0 : index
    %c0_0 = arith.constant 0 : index
    %0 = vector.load %arg1[%c0, %c0_0] : memref<128x128xf32, #tpu.memory_space<vmem>>, vector<128x128xf32>
    %c0_1 = arith.constant 0 : index
    %c0_2 = arith.constant 0 : index
    %1 = vector.load %arg2[%c0_1, %c0_2] : memref<128x512xf32, #tpu.memory_space<vmem>>, vector<128x512xf32>
    %cst = arith.constant dense<0.000000e+00> : vector<128x512xf32>
    %2 = tpu.matmul %0, %1, %cst {dimension_numbers = #tpu.dot_dimension_numbers<[1], [0], [0], [1], [0, 0, 1, 1], [], []>} : vector<128x128xf32>, vector<128x512xf32>, vector<128x512xf32> -> vector<128x512xf32>
    %c0_3 = arith.constant 0 : index
    %c0_4 = arith.constant 0 : index
    %3 = vector.load %arg3[%c0_3, %c0_4] : memref<1x512xf32, #tpu.memory_space<vmem>>, vector<1x512xf32>
    %4 = vector.broadcast %3 : vector<1x512xf32> to vector<128x512xf32>
    %5 = arith.addf %2, %4 : vector<128x512xf32>
    %c0_5 = arith.constant 0 : index
    %c0_6 = arith.constant 0 : index
    %6 = vector.load %arg4[%c0_5, %c0_6] : memref<128x512xf32, #tpu.memory_space<vmem>>, vector<128x512xf32>
    tpu.vector_store %arg4[%c0_5, %c0_6], %5 {strides = array<i32>} : memref<128x512xf32, #tpu.memory_space<vmem>>, vector<128x512xf32>,
    return
  }
  func.func @transform_0(%arg0: i32) -> (i32, i32) {
    %c0_i32 = arith.constant 0 : i32
    %c0_i32_0 = arith.constant 0 : i32
    return %arg0, %c0_i32 : i32, i32
  }
  func.func @transform_1(%arg0: i32) -> (i32, i32) {
    %c0_i32 = arith.constant 0 : i32
    %c0_i32_0 = arith.constant 0 : i32
    %c0_i32_1 = arith.constant 0 : i32
    return %c0_i32, %c0_i32_0 : i32, i32
  }
  func.func @transform_2(%arg0: i32) -> (i32, i32) {
    %c0_i32 = arith.constant 0 : i32
    %c0_i32_0 = arith.constant 0 : i32
    %c0_i32_1 = arith.constant 0 : i32
    return %c0_i32, %c0_i32_0 : i32, i32
  }
  func.func @transform_3(%arg0: i32) -> (i32, i32) {
    %c0_i32 = arith.constant 0 : i32
    %c0_i32_0 = arith.constant 0 : i32
    return %arg0, %c0_i32 : i32, i32
  }
}

module attributes {stable_mosaic.version = 11 : i64} {
  func.func @_decode_kernel(%arg0: memref<1xi32, #tpu.memory_space<smem>>, %arg1: memref<8x8x512xf32, #tpu.memory_space<vmem>>, %arg2: memref<8x512xf32, #tpu.memory_space<vmem>>, %arg3: memref<8x8x128xf32, #tpu.memory_space<vmem>>, %arg4: memref<8x8x128xf32, #tpu.memory_space<vmem>>, %arg5: memref<8x8xf32, #tpu.memory_space<vmem>>, %arg6: memref<256x512xf32, #tpu.memory_space<vmem>>, %arg7: memref<384x512xf32, #tpu.memory_space<vmem>>, %arg8: memref<1x512xf32, #tpu.memory_space<vmem>>, %arg9: memref<128x128xf32, #tpu.memory_space<vmem>>, %arg10: memref<1x128xf32, #tpu.memory_space<vmem>>, %arg11: memref<1x128xf32, #tpu.memory_space<vmem>>, %arg12: memref<1x1xf32, #tpu.memory_space<vmem>>, %arg13: memref<128x128xf32, #tpu.memory_space<vmem>>, %arg14: memref<1x128xf32, #tpu.memory_space<vmem>>, %arg15: memref<8x8x128xf32, #tpu.memory_space<vmem>>, %arg16: memref<8x128xf32, #tpu.memory_space<vmem>>, %arg17: memref<8x128xf32, #tpu.memory_space<vmem>>, %arg18: memref<8x128xf32, #tpu.memory_space<vmem>>, %arg19: memref<8x128xf32, #tpu.memory_space<vmem>>) attributes {dimension_semantics = [], scalar_prefetch = 0 : i64, scratch_operands = 4 : i64, tpu.core_type = #tpu.core_type<tc>} {
    %cst = arith.constant 0.000000e+00 : f32
    %0 = vector.broadcast %cst : f32 to vector<8x8x128xf32>
    %c0 = arith.constant 0 : index
    %c0_0 = arith.constant 0 : index
    %c0_1 = arith.constant 0 : index
    %1 = vector.load %arg15[%c0, %c0_0, %c0_1] : memref<8x8x128xf32, #tpu.memory_space<vmem>>, vector<8x8x128xf32>
    tpu.vector_store %arg15[%c0, %c0_0, %c0_1], %0 {strides = array<i32>} : memref<8x8x128xf32, #tpu.memory_space<vmem>>, vector<8x8x128xf32>,
    %cst_2 = arith.constant 0.000000e+00 : f32
    %2 = vector.broadcast %cst_2 : f32 to vector<8x128xf32>
    %c0_3 = arith.constant 0 : index
    %c0_4 = arith.constant 0 : index
    %3 = vector.load %arg16[%c0_3, %c0_4] : memref<8x128xf32, #tpu.memory_space<vmem>>, vector<8x128xf32>
    tpu.vector_store %arg16[%c0_3, %c0_4], %2 {strides = array<i32>} : memref<8x128xf32, #tpu.memory_space<vmem>>, vector<8x128xf32>,
    %cst_5 = arith.constant 0.000000e+00 : f32
    %4 = vector.broadcast %cst_5 : f32 to vector<8x128xf32>
    %c0_6 = arith.constant 0 : index
    %c0_7 = arith.constant 0 : index
    %5 = vector.load %arg17[%c0_6, %c0_7] : memref<8x128xf32, #tpu.memory_space<vmem>>, vector<8x128xf32>
    tpu.vector_store %arg17[%c0_6, %c0_7], %4 {strides = array<i32>} : memref<8x128xf32, #tpu.memory_space<vmem>>, vector<8x128xf32>,
    %cst_8 = arith.constant 0.000000e+00 : f32
    %6 = vector.broadcast %cst_8 : f32 to vector<8x128xf32>
    %c0_9 = arith.constant 0 : index
    %c0_10 = arith.constant 0 : index
    %7 = vector.load %arg18[%c0_9, %c0_10] : memref<8x128xf32, #tpu.memory_space<vmem>>, vector<8x128xf32>
    tpu.vector_store %arg18[%c0_9, %c0_10], %6 {strides = array<i32>} : memref<8x128xf32, #tpu.memory_space<vmem>>, vector<8x128xf32>,
    %cst_11 = arith.constant 0.000000e+00 : f32
    %8 = vector.broadcast %cst_11 : f32 to vector<8x128xf32>
    %c0_12 = arith.constant 0 : index
    %c0_13 = arith.constant 0 : index
    %9 = vector.load %arg19[%c0_12, %c0_13] : memref<8x128xf32, #tpu.memory_space<vmem>>, vector<8x128xf32>
    tpu.vector_store %arg19[%c0_12, %c0_13], %8 {strides = array<i32>} : memref<8x128xf32, #tpu.memory_space<vmem>>, vector<8x128xf32>,
    %c0_14 = arith.constant 0 : index
    %10 = memref.load %arg0[%c0_14] : memref<1xi32, #tpu.memory_space<smem>>
    %c0_i32 = arith.constant 0 : i32
    %11 = arith.subi %10, %c0_i32 : i32
    %c1_i32 = arith.constant 1 : i32
    %c1_i32_15 = arith.constant 1 : i32
    %12 = arith.subi %c1_i32, %c1_i32_15 : i32
    %13 = arith.addi %11, %12 : i32
    %c1_i32_16 = arith.constant 1 : i32
    %14 = arith.divsi %13, %c1_i32_16 : i32
    %c1_i32_17 = arith.constant 1 : i32
    %c0_i32_18 = arith.constant 0 : i32
    %c0_i32_19 = arith.constant 0 : i32
    %15 = arith.subi %14, %c0_i32_19 : i32
    %16 = arith.addi %c0_i32_19, %15 : i32
    %c1_i32_20 = arith.constant 1 : i32
    scf.for %arg20 = %c0_i32_19 to %16 step %c1_i32_20  : i32 {
      %17 = arith.muli %arg20, %c1_i32_17 : i32
      %18 = arith.addi %c0_i32_18, %17 : i32
      %c0_21 = arith.constant 0 : index
      %c0_22 = arith.constant 0 : index
      %19 = vector.load %arg16[%c0_21, %c0_22] : memref<8x128xf32, #tpu.memory_space<vmem>>, vector<8x128xf32>
      %c0_23 = arith.constant 0 : index
      %c0_24 = arith.constant 0 : index
      %20 = vector.load %arg17[%c0_23, %c0_24] : memref<8x128xf32, #tpu.memory_space<vmem>>, vector<8x128xf32>
      %c0_25 = arith.constant 0 : index
      %c0_26 = arith.constant 0 : index
      %21 = vector.load %arg18[%c0_25, %c0_26] : memref<8x128xf32, #tpu.memory_space<vmem>>, vector<8x128xf32>
      %c0_27 = arith.constant 0 : index
      %c0_28 = arith.constant 0 : index
      %22 = vector.load %arg19[%c0_27, %c0_28] : memref<8x128xf32, #tpu.memory_space<vmem>>, vector<8x128xf32>
      %23 = tpu.concatenate %21, %19 in 1 : vector<8x128xf32>, vector<8x128xf32> -> vector<8x256xf32>
      %c0_29 = arith.constant 0 : index
      %c0_30 = arith.constant 0 : index
      %24 = vector.load %arg6[%c0_29, %c0_30] : memref<256x512xf32, #tpu.memory_space<vmem>>, vector<256x512xf32>
      %cst_31 = arith.constant dense<0.000000e+00> : vector<8x512xf32>
      %25 = tpu.matmul %23, %24, %cst_31 {dimension_numbers = #tpu.dot_dimension_numbers<[1], [0], [0], [1], [0, 0, 1, 1], [], []>} : vector<8x256xf32>, vector<256x512xf32>, vector<8x512xf32> -> vector<8x512xf32>
      %c0_32 = arith.constant 0 : index
      %c0_33 = arith.constant 0 : index
      %26 = vector.load %arg2[%c0_32, %c0_33] : memref<8x512xf32, #tpu.memory_space<vmem>>, vector<8x512xf32>
      %27 = arith.addf %25, %26 : vector<8x512xf32>
      %28 = arith.index_cast %18 : i32 to index
      %c0_34 = arith.constant 0 : index
      %c0_35 = arith.constant 0 : index
      %29 = vector.load %arg1[%28, %c0_34, %c0_35] : memref<8x8x512xf32, #tpu.memory_space<vmem>>, vector<1x8x512xf32>
      %30 = vector.shape_cast %29 : vector<1x8x512xf32> to vector<8x512xf32>
      %31 = arith.addf %27, %30 : vector<8x512xf32>
      %32 = vector.extract_strided_slice %31 {offsets = [0, 0], sizes = [8, 128], strides = [1, 1]} : vector<8x512xf32> to vector<8x128xf32>
      %33 = arith.negf %32 : vector<8x128xf32>
      %34 = math.exp %33 : vector<8x128xf32>
      %cst_36 = arith.constant 1.000000e+00 : f32
      %35 = vector.broadcast %cst_36 : f32 to vector<8x128xf32>
      %36 = arith.addf %35, %34 : vector<8x128xf32>
      %37 = arith.divf %35, %36 : vector<8x128xf32>
      %38 = vector.extract_strided_slice %31 {offsets = [0, 128], sizes = [8, 128], strides = [1, 1]} : vector<8x512xf32> to vector<8x128xf32>
      %39 = arith.negf %38 : vector<8x128xf32>
      %40 = math.exp %39 : vector<8x128xf32>
      %cst_37 = arith.constant 1.000000e+00 : f32
      %41 = vector.broadcast %cst_37 : f32 to vector<8x128xf32>
      %42 = arith.addf %41, %40 : vector<8x128xf32>
      %43 = arith.divf %41, %42 : vector<8x128xf32>
      %44 = vector.extract_strided_slice %31 {offsets = [0, 256], sizes = [8, 128], strides = [1, 1]} : vector<8x512xf32> to vector<8x128xf32>
      %45 = math.tanh %44 : vector<8x128xf32>
      %46 = vector.extract_strided_slice %31 {offsets = [0, 384], sizes = [8, 128], strides = [1, 1]} : vector<8x512xf32> to vector<8x128xf32>
      %47 = arith.negf %46 : vector<8x128xf32>
      %48 = math.exp %47 : vector<8x128xf32>
      %cst_38 = arith.constant 1.000000e+00 : f32
      %49 = vector.broadcast %cst_38 : f32 to vector<8x128xf32>
      %50 = arith.addf %49, %48 : vector<8x128xf32>
      %51 = arith.divf %49, %50 : vector<8x128xf32>
      %52 = arith.mulf %43, %20 : vector<8x128xf32>
      %53 = arith.mulf %37, %45 : vector<8x128xf32>
      %54 = arith.addf %52, %53 : vector<8x128xf32>
      %55 = math.tanh %54 : vector<8x128xf32>
      %56 = arith.mulf %51, %55 : vector<8x128xf32>
      %c0_39 = arith.constant 0 : index
      %c0_40 = arith.constant 0 : index
      %57 = vector.load %arg9[%c0_39, %c0_40] : memref<128x128xf32, #tpu.memory_space<vmem>>, vector<128x128xf32>
      %cst_41 = arith.constant dense<0.000000e+00> : vector<8x128xf32>
      %58 = tpu.matmul %56, %57, %cst_41 {dimension_numbers = #tpu.dot_dimension_numbers<[1], [0], [0], [1], [0, 0, 1, 1], [], []>} : vector<8x128xf32>, vector<128x128xf32>, vector<8x128xf32> -> vector<8x128xf32>
      %c0_42 = arith.constant 0 : index
      %c0_43 = arith.constant 0 : index
      %59 = vector.load %arg10[%c0_42, %c0_43] : memref<1x128xf32, #tpu.memory_space<vmem>>, vector<1x128xf32>
      %60 = vector.broadcast %59 : vector<1x128xf32> to vector<8x128xf32>
      %61 = arith.addf %58, %60 : vector<8x128xf32>
      %c0_44 = arith.constant 0 : index
      %c0_45 = arith.constant 0 : index
      %c0_46 = arith.constant 0 : index
      %62 = vector.load %arg4[%c0_44, %c0_45, %c0_46] : memref<8x8x128xf32, #tpu.memory_space<vmem>>, vector<8x8x128xf32>
      %63 = vector.shape_cast %61 : vector<8x128xf32> to vector<8x1x128xf32>
      %64 = vector.broadcast %63 : vector<8x1x128xf32> to vector<8x8x128xf32>
      %65 = arith.addf %62, %64 : vector<8x8x128xf32>
      %66 = math.tanh %65 : vector<8x8x128xf32>
      %c0_47 = arith.constant 0 : index
      %c0_48 = arith.constant 0 : index
      %67 = vector.load %arg11[%c0_47, %c0_48] : memref<1x128xf32, #tpu.memory_space<vmem>>, vector<1x128xf32>
      %68 = vector.shape_cast %67 : vector<1x128xf32> to vector<1x1x128xf32>
      %69 = vector.broadcast %68 : vector<1x1x128xf32> to vector<8x8x128xf32>
      %70 = arith.mulf %66, %69 : vector<8x8x128xf32>
      %cst_49 = arith.constant dense<0.000000e+00> : vector<8x8xf32>
      %71 = vector.multi_reduction <add>, %70, %cst_49 [2] : vector<8x8x128xf32> to vector<8x8xf32>
      %c0_50 = arith.constant 0 : index
      %c0_51 = arith.constant 0 : index
      %72 = vector.load %arg12[%c0_50, %c0_51] : memref<1x1xf32, #tpu.memory_space<vmem>>, vector<1x1xf32>
      %73 = vector.broadcast %72 : vector<1x1xf32> to vector<8x8xf32>
      %74 = arith.addf %71, %73 : vector<8x8xf32>
      %cst_52 = arith.constant dense<0xFF800000> : vector<8xf32>
      %75 = vector.multi_reduction <maximumf>, %74, %cst_52 [1] : vector<8x8xf32> to vector<8xf32>
      %cst_53 = arith.constant 0xFF800000 : f32
      %76 = vector.broadcast %cst_53 : f32 to vector<8xf32>
      %77 = arith.maximumf %76, %75 : vector<8xf32>
      %78 = vector.shape_cast %77 : vector<8xf32> to vector<8x1xf32>
      %79 = vector.broadcast %78 : vector<8x1xf32> to vector<8x8xf32>
      %80 = arith.subf %74, %79 : vector<8x8xf32>
      %81 = math.exp %80 : vector<8x8xf32>
      %cst_54 = arith.constant dense<0.000000e+00> : vector<8xf32>
      %82 = vector.multi_reduction <add>, %81, %cst_54 [1] : vector<8x8xf32> to vector<8xf32>
      %83 = vector.shape_cast %82 : vector<8xf32> to vector<8x1xf32>
      %84 = vector.broadcast %83 : vector<8x1xf32> to vector<8x8xf32>
      %85 = arith.divf %81, %84 : vector<8x8xf32>
      %c0_55 = arith.constant 0 : index
      %c0_56 = arith.constant 0 : index
      %86 = vector.load %arg5[%c0_55, %c0_56] : memref<8x8xf32, #tpu.memory_space<vmem>>, vector<8x8xf32>
      %87 = arith.mulf %85, %86 : vector<8x8xf32>
      %cst_57 = arith.constant dense<0.000000e+00> : vector<8xf32>
      %88 = vector.multi_reduction <add>, %87, %cst_57 [1] : vector<8x8xf32> to vector<8xf32>
      %89 = vector.shape_cast %88 : vector<8xf32> to vector<8x1xf32>
      %90 = vector.broadcast %89 : vector<8x1xf32> to vector<8x8xf32>
      %91 = arith.divf %87, %90 : vector<8x8xf32>
      %92 = vector.shape_cast %91 : vector<8x8xf32> to vector<8x8x1xf32>
      %c0_58 = arith.constant 0 : index
      %c0_59 = arith.constant 0 : index
      %c0_60 = arith.constant 0 : index
      %93 = vector.load %arg3[%c0_58, %c0_59, %c0_60] : memref<8x8x128xf32, #tpu.memory_space<vmem>>, vector<8x8x128xf32>
      %94 = vector.broadcast %92 : vector<8x8x1xf32> to vector<8x8x128xf32>
      %95 = arith.mulf %94, %93 : vector<8x8x128xf32>
      %cst_61 = arith.constant dense<0.000000e+00> : vector<8x128xf32>
      %96 = vector.multi_reduction <add>, %95, %cst_61 [1] : vector<8x8x128xf32> to vector<8x128xf32>
      %97 = tpu.concatenate %96, %56, %21 in 1 : vector<8x128xf32>, vector<8x128xf32>, vector<8x128xf32> -> vector<8x384xf32>
      %c0_62 = arith.constant 0 : index
      %c0_63 = arith.constant 0 : index
      %98 = vector.load %arg7[%c0_62, %c0_63] : memref<384x512xf32, #tpu.memory_space<vmem>>, vector<384x512xf32>
      %cst_64 = arith.constant dense<0.000000e+00> : vector<8x512xf32>
      %99 = tpu.matmul %97, %98, %cst_64 {dimension_numbers = #tpu.dot_dimension_numbers<[1], [0], [0], [1], [0, 0, 1, 1], [], []>} : vector<8x384xf32>, vector<384x512xf32>, vector<8x512xf32> -> vector<8x512xf32>
      %c0_65 = arith.constant 0 : index
      %c0_66 = arith.constant 0 : index
      %100 = vector.load %arg8[%c0_65, %c0_66] : memref<1x512xf32, #tpu.memory_space<vmem>>, vector<1x512xf32>
      %101 = vector.broadcast %100 : vector<1x512xf32> to vector<8x512xf32>
      %102 = arith.addf %99, %101 : vector<8x512xf32>
      %103 = vector.extract_strided_slice %102 {offsets = [0, 0], sizes = [8, 128], strides = [1, 1]} : vector<8x512xf32> to vector<8x128xf32>
      %104 = arith.negf %103 : vector<8x128xf32>
      %105 = math.exp %104 : vector<8x128xf32>
      %cst_67 = arith.constant 1.000000e+00 : f32
      %106 = vector.broadcast %cst_67 : f32 to vector<8x128xf32>
      %107 = arith.addf %106, %105 : vector<8x128xf32>
      %108 = arith.divf %106, %107 : vector<8x128xf32>
      %109 = vector.extract_strided_slice %102 {offsets = [0, 128], sizes = [8, 128], strides = [1, 1]} : vector<8x512xf32> to vector<8x128xf32>
      %110 = arith.negf %109 : vector<8x128xf32>
      %111 = math.exp %110 : vector<8x128xf32>
      %cst_68 = arith.constant 1.000000e+00 : f32
      %112 = vector.broadcast %cst_68 : f32 to vector<8x128xf32>
      %113 = arith.addf %112, %111 : vector<8x128xf32>
      %114 = arith.divf %112, %113 : vector<8x128xf32>
      %115 = vector.extract_strided_slice %102 {offsets = [0, 256], sizes = [8, 128], strides = [1, 1]} : vector<8x512xf32> to vector<8x128xf32>
      %116 = math.tanh %115 : vector<8x128xf32>
      %117 = vector.extract_strided_slice %102 {offsets = [0, 384], sizes = [8, 128], strides = [1, 1]} : vector<8x512xf32> to vector<8x128xf32>
      %118 = arith.negf %117 : vector<8x128xf32>
      %119 = math.exp %118 : vector<8x128xf32>
      %cst_69 = arith.constant 1.000000e+00 : f32
      %120 = vector.broadcast %cst_69 : f32 to vector<8x128xf32>
      %121 = arith.addf %120, %119 : vector<8x128xf32>
      %122 = arith.divf %120, %121 : vector<8x128xf32>
      %123 = arith.mulf %114, %22 : vector<8x128xf32>
      %124 = arith.mulf %108, %116 : vector<8x128xf32>
      %125 = arith.addf %123, %124 : vector<8x128xf32>
      %126 = math.tanh %125 : vector<8x128xf32>
      %127 = arith.mulf %122, %126 : vector<8x128xf32>
      %c0_70 = arith.constant 0 : index
      %c0_71 = arith.constant 0 : index
      %128 = vector.load %arg13[%c0_70, %c0_71] : memref<128x128xf32, #tpu.memory_space<vmem>>, vector<128x128xf32>
      %cst_72 = arith.constant dense<0.000000e+00> : vector<8x128xf32>
      %129 = tpu.matmul %127, %128, %cst_72 {dimension_numbers = #tpu.dot_dimension_numbers<[1], [0], [0], [1], [0, 0, 1, 1], [], []>} : vector<8x128xf32>, vector<128x128xf32>, vector<8x128xf32> -> vector<8x128xf32>
      %c0_73 = arith.constant 0 : index
      %c0_74 = arith.constant 0 : index
      %130 = vector.load %arg14[%c0_73, %c0_74] : memref<1x128xf32, #tpu.memory_space<vmem>>, vector<1x128xf32>
      %131 = vector.broadcast %130 : vector<1x128xf32> to vector<8x128xf32>
      %132 = arith.addf %129, %131 : vector<8x128xf32>
      %cst_75 = arith.constant dense<0xFF800000> : vector<8xf32>
      %133 = vector.multi_reduction <maximumf>, %132, %cst_75 [1] : vector<8x128xf32> to vector<8xf32>
      %cst_76 = arith.constant 0xFF800000 : f32
      %134 = vector.broadcast %cst_76 : f32 to vector<8xf32>
      %135 = arith.maximumf %134, %133 : vector<8xf32>
      %136 = vector.shape_cast %135 : vector<8xf32> to vector<8x1xf32>
      %137 = vector.broadcast %136 : vector<8x1xf32> to vector<8x128xf32>
      %138 = arith.subf %132, %137 : vector<8x128xf32>
      %139 = math.exp %138 : vector<8x128xf32>
      %cst_77 = arith.constant dense<0.000000e+00> : vector<8xf32>
      %140 = vector.multi_reduction <add>, %139, %cst_77 [1] : vector<8x128xf32> to vector<8xf32>
      %141 = vector.shape_cast %140 : vector<8xf32> to vector<8x1xf32>
      %142 = vector.broadcast %141 : vector<8x1xf32> to vector<8x128xf32>
      %143 = arith.divf %139, %142 : vector<8x128xf32>
      %144 = arith.index_cast %18 : i32 to index
      %c0_78 = arith.constant 0 : index
      %c0_79 = arith.constant 0 : index
      %145 = vector.load %arg15[%144, %c0_78, %c0_79] : memref<8x8x128xf32, #tpu.memory_space<vmem>>, vector<1x8x128xf32>
      %146 = vector.shape_cast %145 : vector<1x8x128xf32> to vector<8x128xf32>
      %147 = vector.shape_cast %143 : vector<8x128xf32> to vector<1x8x128xf32>
      tpu.vector_store %arg15[%144, %c0_78, %c0_79], %147 {strides = array<i32>} : memref<8x8x128xf32, #tpu.memory_space<vmem>>, vector<1x8x128xf32>,
      %c0_80 = arith.constant 0 : index
      %c0_81 = arith.constant 0 : index
      %148 = vector.load %arg16[%c0_80, %c0_81] : memref<8x128xf32, #tpu.memory_space<vmem>>, vector<8x128xf32>
      tpu.vector_store %arg16[%c0_80, %c0_81], %56 {strides = array<i32>} : memref<8x128xf32, #tpu.memory_space<vmem>>, vector<8x128xf32>,
      %c0_82 = arith.constant 0 : index
      %c0_83 = arith.constant 0 : index
      %149 = vector.load %arg17[%c0_82, %c0_83] : memref<8x128xf32, #tpu.memory_space<vmem>>, vector<8x128xf32>
      tpu.vector_store %arg17[%c0_82, %c0_83], %54 {strides = array<i32>} : memref<8x128xf32, #tpu.memory_space<vmem>>, vector<8x128xf32>,
      %c0_84 = arith.constant 0 : index
      %c0_85 = arith.constant 0 : index
      %150 = vector.load %arg18[%c0_84, %c0_85] : memref<8x128xf32, #tpu.memory_space<vmem>>, vector<8x128xf32>
      tpu.vector_store %arg18[%c0_84, %c0_85], %127 {strides = array<i32>} : memref<8x128xf32, #tpu.memory_space<vmem>>, vector<8x128xf32>,
      %c0_86 = arith.constant 0 : index
      %c0_87 = arith.constant 0 : index
      %151 = vector.load %arg19[%c0_86, %c0_87] : memref<8x128xf32, #tpu.memory_space<vmem>>, vector<8x128xf32>
      tpu.vector_store %arg19[%c0_86, %c0_87], %125 {strides = array<i32>} : memref<8x128xf32, #tpu.memory_space<vmem>>, vector<8x128xf32>,
    }
    return
  }
}

</mosaic_0001>

<llo_original>
// kernel: generator_forward.5
$region0: #{generator_forward.5}
  #allocation0 [shape = 'u32[]', space=smem, size = 0x4, offset = 0x4, fixed_abs, tag = 'smem constant byte address 0x4 - core index']
  #allocation1 [shape = 'u32[144,128]{1,0:T(1,128)}', space=vmem, size = 0x12000, scoped, tag = 'internal scratch']
  %s0 = inlined_call_operand.vmem [shape: f32[8,128], index: 0, kind: input, shape index: {}]
  %s1 = inlined_call_operand.hbm [shape: f32[128,128], index: 1, kind: input, shape index: {}]
  %s2 = inlined_call_operand.vmem [shape: f32[1,128], index: 2, kind: input, shape index: {}]
  %s3 = inlined_call_operand.vmem [shape: f32[8,128], index: 3, kind: output, shape index: {}]
  %s4 = sld [smem:[#allocation0]]
  $region26: #{generator_forward.5} parent=0
    _
  %s6 = ssub.s32 1, %s4
  %s7 = scalar_select 0, %s6, %s4
  $region1: #{generator_forward.5} parent=0
    #allocation2 [shape = 'u8[65536]{0}', space=vmem, size = 0x10000, scoped, tag = 'input window, operand 1, single buffered']
    #allocation3 [shape = 's32[1]{0}', space=sflag, size = 0x4, scoped, tag = 'scoped memory for generator_forward.5']
    %8 = vsyncpa [#allocation3], 0
    // Predicated region
    $region2: #{generator_forward.5} parent=1 // pred_check
      _
    $region3: #{generator_forward.5} parent=1 // pred_check_branch
      %10 = sbr.rel (0) target = $region5
    $region4: #{generator_forward.5} parent=1 // pred_region
      _
    $region5: #{generator_forward.5} parent=1 // pred_fallthru
      _
    // Predicated region
    $region6: #{generator_forward.5} parent=1 // pred_check
      _
    $region7: #{generator_forward.5} parent=1 // pred_check_branch
      %12 = sbr.rel (0) target = $region9
    $region8: #{generator_forward.5} parent=1 // pred_region
      %s14 = ssub.s32 2048, 2048
      %15 = vsyncadd [#allocation3], %s14
      %s16 = sshll.u32 [#allocation2], 4
      %s17 = int_to_ptr.vmem [resolvable:$true] %s16
      %22 = dma.hbm_to_vmem [thread:$0]  %s1, 2048, %s17, [#allocation3], 128, 128, 8
    $region9: #{generator_forward.5} parent=1 // pred_fallthru
      _
    // Predicated region
    $region10: #{generator_forward.5} parent=1 // pred_check
      _
    $region11: #{generator_forward.5} parent=1 // pred_check_branch
      %24 = sbr.rel (0) target = $region13
    $region12: #{generator_forward.5} parent=1 // pred_region
      _
    $region13: #{generator_forward.5} parent=1 // pred_fallthru
      _
    // Predicated region
    $region14: #{generator_forward.5} parent=1 // pred_check
      _
    $region15: #{generator_forward.5} parent=1 // pred_check_branch
      %26 = sbr.rel (0) target = $region17
    $region16: #{generator_forward.5} parent=1 // pred_region
      %27 = dma.done [#allocation3], 2048
    $region17: #{generator_forward.5} parent=1 // pred_fallthru
      _
    %v28 = vld [vmem:[%s0] sm:$0xff]
    %v29 = vld [vmem:[#allocation2] sm:$0xff]
    %v30 = vld [vmem:[#allocation2 + $0x8] sm:$0xff]
    %v31 = vld [vmem:[#allocation2 + $0x10] sm:$0xff]
    %v32 = vld [vmem:[#allocation2 + $0x18] sm:$0xff]
    %v33 = vld [vmem:[#allocation2 + $0x20] sm:$0xff]
    %v34 = vld [vmem:[#allocation2 + $0x28] sm:$0xff]
    %v35 = vld [vmem:[#allocation2 + $0x30] sm:$0xff]
    %v36 = vld [vmem:[#allocation2 + $0x38] sm:$0xff]
    %v37 = vld [vmem:[#allocation2 + $0x40] sm:$0xff]
    %v38 = vld [vmem:[#allocation2 + $0x48] sm:$0xff]
    %v39 = vld [vmem:[#allocation2 + $0x50] sm:$0xff]
    %v40 = vld [vmem:[#allocation2 + $0x58] sm:$0xff]
    %v41 = vld [vmem:[#allocation2 + $0x60] sm:$0xff]
    %v42 = vld [vmem:[#allocation2 + $0x68] sm:$0xff]
    %v43 = vld [vmem:[#allocation2 + $0x70] sm:$0xff]
    %v44 = vld [vmem:[#allocation2 + $0x78] sm:$0xff]
    %v45 = vld [vmem:[%s2] sm:$0x1]
    %v47 = vlaneseq
    %v48 = vshrl.u32 %v47, 7
    %v49 = vsub.s32 0, %v48
    %v50 = vrot.slane %v45, %v49
    %52 = vmatprep.subr.mxu0 0.0
    %53 = vmatpush1.msra.mxu0 %v29
    %54 = vmatprep.subr.mxu0 0.0
    %55 = vmatpush1.msra.mxu0 %v30
    %56 = vmatprep.subr.mxu0 0.0
    %57 = vmatpush1.msra.mxu0 %v31
    %58 = vmatprep.subr.mxu0 0.0
    %59 = vmatpush1.msra.mxu0 %v32
    %60 = vmatprep.subr.mxu0 0.0
    %61 = vmatpush1.msra.mxu0 %v33
    %62 = vmatprep.subr.mxu0 0.0
    %63 = vmatpush1.msra.mxu0 %v34
    %64 = vmatprep.subr.mxu0 0.0
    %65 = vmatpush1.msra.mxu0 %v35
    %66 = vmatprep.subr.mxu0 0.0
    %67 = vmatpush1.msra.mxu0 %v36
    %68 = vmatprep.subr.mxu0 0.0
    %69 = vmatpush1.msra.mxu0 %v37
    %70 = vmatprep.subr.mxu0 0.0
    %71 = vmatpush1.msra.mxu0 %v38
    %72 = vmatprep.subr.mxu0 0.0
    %73 = vmatpush1.msra.mxu0 %v39
    %74 = vmatprep.subr.mxu0 0.0
    %75 = vmatpush1.msra.mxu0 %v40
    %76 = vmatprep.subr.mxu0 0.0
    %77 = vmatpush1.msra.mxu0 %v41
    %78 = vmatprep.subr.mxu0 0.0
    %79 = vmatpush1.msra.mxu0 %v42
    %80 = vmatprep.subr.mxu0 0.0
    %81 = vmatpush1.msra.mxu0 %v43
    %82 = vmatprep.subr.mxu0 0.0
    %83 = vmatpush1.msra.mxu0 %v44
    %84 = vmatprep.subr.mxu0 0.0
    %85 = vmatpush1.msra.mxu0 0.0
    %86 = vmatprep.subr.mxu0 0.0
    %87 = vmatpush1.msra.mxu0 0.0
    %88 = vmatprep.subr.mxu0 0.0
    %89 = vmatpush1.msra.mxu0 0.0
    %90 = vmatprep.subr.mxu0 0.0
    %91 = vmatpush1.msra.mxu0 0.0
    %92 = vmatprep.subr.mxu0 0.0
    %93 = vmatpush1.msra.mxu0 0.0
    %94 = vmatprep.subr.mxu0 0.0
    %95 = vmatpush1.msra.mxu0 0.0
    %96 = vmatprep.subr.mxu0 0.0
    %97 = vmatpush1.msra.mxu0 0.0
    %98 = vmatprep.subr.mxu0 0.0
    %99 = vmatpush1.msra.mxu0 0.0
    %100 = vmatprep.subr.mxu0 0.0
    %101 = vmatpush1.msra.mxu0 0.0
    %102 = vmatprep.subr.mxu0 0.0
    %103 = vmatpush1.msra.mxu0 0.0
    %104 = vmatprep.subr.mxu0 0.0
    %105 = vmatpush1.msra.mxu0 0.0
    %106 = vmatprep.subr.mxu0 0.0
    %107 = vmatpush1.msra.mxu0 0.0
    %108 = vmatprep.subr.mxu0 0.0
    %109 = vmatpush1.msra.mxu0 0.0
    %110 = vmatprep.subr.mxu0 0.0
    %111 = vmatpush1.msra.mxu0 0.0
    %112 = vmatprep.subr.mxu0 0.0
    %113 = vmatpush1.msra.mxu0 0.0
    %114 = vmatprep.subr.mxu0 0.0
    %115 = vmatpush1.msra.mxu0 0.0
    %116 = vmatprep.mubr.f32.mxu0 0.0
    %117 = vmatmul.mubr.f32.gmra.mrb[0].mxu0 %v28
    %v118 = vpop.f32.mrb[0].mxu0
    %v119 = vadd.f32 %v50, %v118
    %v120 = vpop.f32.mrb[0].mxu0
    %121 = vdwg.mxu0
    %v122 = vmax.f32 %v119, 0.0
    %123 = vst [vmem:[%s3] sm:$0xff] %v122
    // Predicated region
    $region18: #{generator_forward.5} parent=1 // pred_check
      _
    $region19: #{generator_forward.5} parent=1 // pred_check_branch
      %125 = sbr.rel (0) target = $region21
    $region20: #{generator_forward.5} parent=1 // pred_region
      _
    $region21: #{generator_forward.5} parent=1 // pred_fallthru
      _
    // Predicated region
    $region22: #{generator_forward.5} parent=1 // pred_check
      _
    $region23: #{generator_forward.5} parent=1 // pred_check_branch
      %127 = sbr.rel (0) target = $region25
    $region24: #{generator_forward.5} parent=1 // pred_region
      _
    $region25: #{generator_forward.5} parent=1 // pred_fallthru
      _
    %128 = vsyncpa [#allocation3], 1

// kernel: generator_forward.7
$region0: #{generator_forward.7}
  #allocation0 [shape = 'u32[]', space=smem, size = 0x4, offset = 0x4, fixed_abs, tag = 'smem constant byte address 0x4 - core index']
  #allocation1 [shape = 'u32[144,128]{1,0:T(1,128)}', space=vmem, size = 0x12000, scoped, tag = 'internal scratch']
  %s0 = inlined_call_operand.vmem [shape: f32[8,128], index: 0, kind: input, shape index: {}]
  %s1 = inlined_call_operand.hbm [shape: f32[128,512], index: 1, kind: input, shape index: {}]
  %s2 = inlined_call_operand.vmem [shape: f32[1,512], index: 2, kind: input, shape index: {}]
  %s3 = inlined_call_operand.vmem [shape: f32[8,512], index: 3, kind: output, shape index: {}]
  %s4 = sld [smem:[#allocation0]]
  $region26: #{generator_forward.7} parent=0
    _
  %s6 = ssub.s32 1, %s4
  %s7 = scalar_select 0, %s6, %s4
  $region1: #{generator_forward.7} parent=0
    #allocation2 [shape = 'u8[262144]{0}', space=vmem, size = 0x40000, scoped, tag = 'input window, operand 1, single buffered']
    #allocation3 [shape = 's32[1]{0}', space=sflag, size = 0x4, scoped, tag = 'scoped memory for generator_forward.7']
    %8 = vsyncpa [#allocation3], 0
    // Predicated region
    $region2: #{generator_forward.7} parent=1 // pred_check
      _
    $region3: #{generator_forward.7} parent=1 // pred_check_branch
      %10 = sbr.rel (0) target = $region5
    $region4: #{generator_forward.7} parent=1 // pred_region
      _
    $region5: #{generator_forward.7} parent=1 // pred_fallthru
      _
    // Predicated region
    $region6: #{generator_forward.7} parent=1 // pred_check
      _
    $region7: #{generator_forward.7} parent=1 // pred_check_branch
      %12 = sbr.rel (0) target = $region9
    $region8: #{generator_forward.7} parent=1 // pred_region
      %s14 = ssub.s32 8192, 8192
      %15 = vsyncadd [#allocation3], %s14
      %s16 = sshll.u32 [#allocation2], 4
      %s17 = int_to_ptr.vmem [resolvable:$true] %s16
      %22 = dma.hbm_to_vmem [thread:$0]  %s1, 8192, %s17, [#allocation3], 512, 512, 32
    $region9: #{generator_forward.7} parent=1 // pred_fallthru
      _
    // Predicated region
    $region10: #{generator_forward.7} parent=1 // pred_check
      _
    $region11: #{generator_forward.7} parent=1 // pred_check_branch
      %24 = sbr.rel (0) target = $region13
    $region12: #{generator_forward.7} parent=1 // pred_region
      _
    $region13: #{generator_forward.7} parent=1 // pred_fallthru
      _
    // Predicated region
    $region14: #{generator_forward.7} parent=1 // pred_check
      _
    $region15: #{generator_forward.7} parent=1 // pred_check_branch
      %26 = sbr.rel (0) target = $region17
    $region16: #{generator_forward.7} parent=1 // pred_region
      %27 = dma.done [#allocation3], 8192
    $region17: #{generator_forward.7} parent=1 // pred_fallthru
      _
    %v28 = vld [vmem:[%s0] sm:$0xff]
    %v29 = vld [vmem:[#allocation2] sm:$0xff]
    %v30 = vld [vmem:[#allocation2 + $0x8] sm:$0xff]
    %v31 = vld [vmem:[#allocation2 + $0x10] sm:$0xff]
    %v32 = vld [vmem:[#allocation2 + $0x18] sm:$0xff]
    %v33 = vld [vmem:[#allocation2 + $0x20] sm:$0xff]
    %v34 = vld [vmem:[#allocation2 + $0x28] sm:$0xff]
    %v35 = vld [vmem:[#allocation2 + $0x30] sm:$0xff]
    %v36 = vld [vmem:[#allocation2 + $0x38] sm:$0xff]
    %v37 = vld [vmem:[#allocation2 + $0x40] sm:$0xff]
    %v38 = vld [vmem:[#allocation2 + $0x48] sm:$0xff]
    %v39 = vld [vmem:[#allocation2 + $0x50] sm:$0xff]
    %v40 = vld [vmem:[#allocation2 + $0x58] sm:$0xff]
    %v41 = vld [vmem:[#allocation2 + $0x60] sm:$0xff]
    %v42 = vld [vmem:[#allocation2 + $0x68] sm:$0xff]
    %v43 = vld [vmem:[#allocation2 + $0x70] sm:$0xff]
    %v44 = vld [vmem:[#allocation2 + $0x78] sm:$0xff]
    %v45 = vld [vmem:[#allocation2 + $0x80] sm:$0xff]
    %v46 = vld [vmem:[#allocation2 + $0x88] sm:$0xff]
    %v47 = vld [vmem:[#allocation2 + $0x90] sm:$0xff]
    %v48 = vld [vmem:[#allocation2 + $0x98] sm:$0xff]
    %v49 = vld [vmem:[#allocation2 + $0xa0] sm:$0xff]
    %v50 = vld [vmem:[#allocation2 + $0xa8] sm:$0xff]
    %v51 = vld [vmem:[#allocation2 + $0xb0] sm:$0xff]
    %v52 = vld [vmem:[#allocation2 + $0xb8] sm:$0xff]
    %v53 = vld [vmem:[#allocation2 + $0xc0] sm:$0xff]
    %v54 = vld [vmem:[#allocation2 + $0xc8] sm:$0xff]
    %v55 = vld [vmem:[#allocation2 + $0xd0] sm:$0xff]
    %v56 = vld [vmem:[#allocation2 + $0xd8] sm:$0xff]
    %v57 = vld [vmem:[#allocation2 + $0xe0] sm:$0xff]
    %v58 = vld [vmem:[#allocation2 + $0xe8] sm:$0xff]
    %v59 = vld [vmem:[#allocation2 + $0xf0] sm:$0xff]
    %v60 = vld [vmem:[#allocation2 + $0xf8] sm:$0xff]
    %v61 = vld [vmem:[#allocation2 + $0x100] sm:$0xff]
    %v62 = vld [vmem:[#allocation2 + $0x108] sm:$0xff]
    %v63 = vld [vmem:[#allocation2 + $0x110] sm:$0xff]
    %v64 = vld [vmem:[#allocation2 + $0x118] sm:$0xff]
    %v65 = vld [vmem:[#allocation2 + $0x120] sm:$0xff]
    %v66 = vld [vmem:[#allocation2 + $0x128] sm:$0xff]
    %v67 = vld [vmem:[#allocation2 + $0x130] sm:$0xff]
    %v68 = vld [vmem:[#allocation2 + $0x138] sm:$0xff]
    %v69 = vld [vmem:[#allocation2 + $0x140] sm:$0xff]
    %v70 = vld [vmem:[#allocation2 + $0x148] sm:$0xff]
    %v71 = vld [vmem:[#allocation2 + $0x150] sm:$0xff]
    %v72 = vld [vmem:[#allocation2 + $0x158] sm:$0xff]
    %v73 = vld [vmem:[#allocation2 + $0x160] sm:$0xff]
    %v74 = vld [vmem:[#allocation2 + $0x168] sm:$0xff]
    %v75 = vld [vmem:[#allocation2 + $0x170] sm:$0xff]
    %v76 = vld [vmem:[#allocation2 + $0x178] sm:$0xff]
    %v77 = vld [vmem:[#allocation2 + $0x180] sm:$0xff]
    %v78 = vld [vmem:[#allocation2 + $0x188] sm:$0xff]
    %v79 = vld [vmem:[#allocation2 + $0x190] sm:$0xff]
    %v80 = vld [vmem:[#allocation2 + $0x198] sm:$0xff]
    %v81 = vld [vmem:[#allocation2 + $0x1a0] sm:$0xff]
    %v82 = vld [vmem:[#allocation2 + $0x1a8] sm:$0xff]
    %v83 = vld [vmem:[#allocation2 + $0x1b0] sm:$0xff]
    %v84 = vld [vmem:[#allocation2 + $0x1b8] sm:$0xff]
    %v85 = vld [vmem:[#allocation2 + $0x1c0] sm:$0xff]
    %v86 = vld [vmem:[#allocation2 + $0x1c8] sm:$0xff]
    %v87 = vld [vmem:[#allocation2 + $0x1d0] sm:$0xff]
    %v88 = vld [vmem:[#allocation2 + $0x1d8] sm:$0xff]
    %v89 = vld [vmem:[#allocation2 + $0x1e0] sm:$0xff]
    %v90 = vld [vmem:[#allocation2 + $0x1e8] sm:$0xff]
    %v91 = vld [vmem:[#allocation2 + $0x1f0] sm:$0xff]
    %v92 = vld [vmem:[#allocation2 + $0x1f8] sm:$0xff]
    %v93 = vld [vmem:[%s2] sm:$0xf]
    %v95 = vlaneseq
    %v96 = vshrl.u32 %v95, 7
    %v97 = vsub.s32 0, %v96
    %v98 = vrot.slane %v93, %v97
    %v99 = vlaneseq
    %v100 = vshrl.u32 %v99, 7
    %v101 = vsub.s32 1, %v100
    %v102 = vrot.slane %v93, %v101
    %v103 = vlaneseq
    %v104 = vshrl.u32 %v103, 7
    %v105 = vsub.s32 2, %v104
    %v106 = vrot.slane %v93, %v105
    %v107 = vlaneseq
    %v108 = vshrl.u32 %v107, 7
    %v109 = vsub.s32 3, %v108
    %v110 = vrot.slane %v93, %v109
    %115 = vmatprep.subr.mxu0 %v30
    %116 = vmatpush1.msra.mxu0 %v29
    %117 = vmatprep.subr.mxu0 %v34
    %118 = vmatpush1.msra.mxu0 %v33
    %119 = vmatprep.subr.mxu0 %v38
    %120 = vmatpush1.msra.mxu0 %v37
    %121 = vmatprep.subr.mxu0 %v42
    %122 = vmatpush1.msra.mxu0 %v41
    %123 = vmatprep.subr.mxu0 %v46
    %124 = vmatpush1.msra.mxu0 %v45
    %125 = vmatprep.subr.mxu0 %v50
    %126 = vmatpush1.msra.mxu0 %v49
    %127 = vmatprep.subr.mxu0 %v54
    %128 = vmatpush1.msra.mxu0 %v53
    %129 = vmatprep.subr.mxu0 %v58
    %130 = vmatpush1.msra.mxu0 %v57
    %131 = vmatprep.subr.mxu0 %v62
    %132 = vmatpush1.msra.mxu0 %v61
    %133 = vmatprep.subr.mxu0 %v66
    %134 = vmatpush1.msra.mxu0 %v65
    %135 = vmatprep.subr.mxu0 %v70
    %136 = vmatpush1.msra.mxu0 %v69
    %137 = vmatprep.subr.mxu0 %v74
    %138 = vmatpush1.msra.mxu0 %v73
    %139 = vmatprep.subr.mxu0 %v78
    %140 = vmatpush1.msra.mxu0 %v77
    %141 = vmatprep.subr.mxu0 %v82
    %142 = vmatpush1.msra.mxu0 %v81
    %143 = vmatprep.subr.mxu0 %v86
    %144 = vmatpush1.msra.mxu0 %v85
    %145 = vmatprep.subr.mxu0 %v90
    %146 = vmatpush1.msra.mxu0 %v89
    %147 = vmatprep.subr.mxu0 0.0
    %148 = vmatpush1.msra.mxu0 0.0
    %149 = vmatprep.subr.mxu0 0.0
    %150 = vmatpush1.msra.mxu0 0.0
    %151 = vmatprep.subr.mxu0 0.0
    %152 = vmatpush1.msra.mxu0 0.0
    %153 = vmatprep.subr.mxu0 0.0
    %154 = vmatpush1.msra.mxu0 0.0
    %155 = vmatprep.subr.mxu0 0.0
    %156 = vmatpush1.msra.mxu0 0.0
    %157 = vmatprep.subr.mxu0 0.0
    %158 = vmatpush1.msra.mxu0 0.0
    %159 = vmatprep.subr.mxu0 0.0
    %160 = vmatpush1.msra.mxu0 0.0
    %161 = vmatprep.subr.mxu0 0.0
    %162 = vmatpush1.msra.mxu0 0.0
    %163 = vmatprep.subr.mxu0 0.0
    %164 = vmatpush1.msra.mxu0 0.0
    %165 = vmatprep.subr.mxu0 0.0
    %166 = vmatpush1.msra.mxu0 0.0
    %167 = vmatprep.subr.mxu0 0.0
    %168 = vmatpush1.msra.mxu0 0.0
    %169 = vmatprep.subr.mxu0 0.0
    %170 = vmatpush1.msra.mxu0 0.0
    %171 = vmatprep.subr.mxu0 0.0
    %172 = vmatpush1.msra.mxu0 0.0
    %173 = vmatprep.subr.mxu0 0.0
    %174 = vmatpush1.msra.mxu0 0.0
    %175 = vmatprep.subr.mxu0 0.0
    %176 = vmatpush1.msra.mxu0 0.0
    %177 = vmatprep.subr.mxu0 0.0
    %178 = vmatpush1.msra.mxu0 0.0
    %179 = vmatprep.mubr.f32.mxu0 0.0
    %180 = vmatmul.mubr.f32.gmra.mrb[0].mxu0 %v28
    %v181 = vpop.f32.mrb[0].mxu0
    %v182 = vadd.f32 %v98, %v181
    %v183 = vpop.f32.mrb[0].mxu0
    %v184 = vadd.f32 %v102, %v183
    %185 = vdwg.mxu0
    %186 = vmatprep.subr.mxu0 %v32
    %187 = vmatpush1.msra.mxu0 %v31
    %188 = vmatprep.subr.mxu0 %v36
    %189 = vmatpush1.msra.mxu0 %v35
    %190 = vmatprep.subr.mxu0 %v40
    %191 = vmatpush1.msra.mxu0 %v39
    %192 = vmatprep.subr.mxu0 %v44
    %193 = vmatpush1.msra.mxu0 %v43
    %194 = vmatprep.subr.mxu0 %v48
    %195 = vmatpush1.msra.mxu0 %v47
    %196 = vmatprep.subr.mxu0 %v52
    %197 = vmatpush1.msra.mxu0 %v51
    %198 = vmatprep.subr.mxu0 %v56
    %199 = vmatpush1.msra.mxu0 %v55
    %200 = vmatprep.subr.mxu0 %v60
    %201 = vmatpush1.msra.mxu0 %v59
    %202 = vmatprep.subr.mxu0 %v64
    %203 = vmatpush1.msra.mxu0 %v63
    %204 = vmatprep.subr.mxu0 %v68
    %205 = vmatpush1.msra.mxu0 %v67
    %206 = vmatprep.subr.mxu0 %v72
    %207 = vmatpush1.msra.mxu0 %v71
    %208 = vmatprep.subr.mxu0 %v76
    %209 = vmatpush1.msra.mxu0 %v75
    %210 = vmatprep.subr.mxu0 %v80
    %211 = vmatpush1.msra.mxu0 %v79
    %212 = vmatprep.subr.mxu0 %v84
    %213 = vmatpush1.msra.mxu0 %v83
    %214 = vmatprep.subr.mxu0 %v88
    %215 = vmatpush1.msra.mxu0 %v87
    %216 = vmatprep.subr.mxu0 %v92
    %217 = vmatpush1.msra.mxu0 %v91
    %218 = vmatprep.subr.mxu0 0.0
    %219 = vmatpush1.msra.mxu0 0.0
    %220 = vmatprep.subr.mxu0 0.0
    %221 = vmatpush1.msra.mxu0 0.0
    %222 = vmatprep.subr.mxu0 0.0
    %223 = vmatpush1.msra.mxu0 0.0
    %224 = vmatprep.subr.mxu0 0.0
    %225 = vmatpush1.msra.mxu0 0.0
    %226 = vmatprep.subr.mxu0 0.0
    %227 = vmatpush1.msra.mxu0 0.0
    %228 = vmatprep.subr.mxu0 0.0
    %229 = vmatpush1.msra.mxu0 0.0
    %230 = vmatprep.subr.mxu0 0.0
    %231 = vmatpush1.msra.mxu0 0.0
    %232 = vmatprep.subr.mxu0 0.0
    %233 = vmatpush1.msra.mxu0 0.0
    %234 = vmatprep.subr.mxu0 0.0
    %235 = vmatpush1.msra.mxu0 0.0
    %236 = vmatprep.subr.mxu0 0.0
    %237 = vmatpush1.msra.mxu0 0.0
    %238 = vmatprep.subr.mxu0 0.0
    %239 = vmatpush1.msra.mxu0 0.0
    %240 = vmatprep.subr.mxu0 0.0
    %241 = vmatpush1.msra.mxu0 0.0
    %242 = vmatprep.subr.mxu0 0.0
    %243 = vmatpush1.msra.mxu0 0.0
    %244 = vmatprep.subr.mxu0 0.0
    %245 = vmatpush1.msra.mxu0 0.0
    %246 = vmatprep.subr.mxu0 0.0
    %247 = vmatpush1.msra.mxu0 0.0
    %248 = vmatprep.subr.mxu0 0.0
    %249 = vmatpush1.msra.mxu0 0.0
    %250 = vmatprep.mubr.f32.mxu0 0.0
    %251 = vmatmul.mubr.f32.gmra.mrb[0].mxu0 %v28
    %v252 = vpop.f32.mrb[0].mxu0
    %v253 = vadd.f32 %v106, %v252
    %v254 = vpop.f32.mrb[0].mxu0
    %v255 = vadd.f32 %v110, %v254
    %256 = vdwg.mxu0
    %257 = vst [vmem:[%s3] sm:$0xff] %v182
    %258 = vst [vmem:[%s3 + $0x8] sm:$0xff] %v184
    %259 = vst [vmem:[%s3 + $0x10] sm:$0xff] %v253
    %260 = vst [vmem:[%s3 + $0x18] sm:$0xff] %v255
    // Predicated region
    $region18: #{generator_forward.7} parent=1 // pred_check
      _
    $region19: #{generator_forward.7} parent=1 // pred_check_branch
      %262 = sbr.rel (0) target = $region21
    $region20: #{generator_forward.7} parent=1 // pred_region
      _
    $region21: #{generator_forward.7} parent=1 // pred_fallthru
      _
    // Predicated region
    $region22: #{generator_forward.7} parent=1 // pred_check
      _
    $region23: #{generator_forward.7} parent=1 // pred_check_branch
      %264 = sbr.rel (0) target = $region25
    $region24: #{generator_forward.7} parent=1 // pred_region
      _
    $region25: #{generator_forward.7} parent=1 // pred_fallthru
      _
    %265 = vsyncpa [#allocation3], 1

// kernel: generator_forward.6
$region0: #{generator_forward.6}
  #allocation0 [shape = 'u32[]', space=smem, size = 0x4, offset = 0x4, fixed_abs, tag = 'smem constant byte address 0x4 - core index']
  #allocation1 [shape = 'u32[144,128]{1,0:T(1,128)}', space=vmem, size = 0x12000, scoped, tag = 'internal scratch']
  %s0 = inlined_call_operand.vmem [shape: f32[64,128], index: 0, kind: input, shape index: {}]
  %s1 = inlined_call_operand.vmem [shape: f32[128,128], index: 1, kind: input, shape index: {}]
  %s2 = inlined_call_operand.vmem [shape: f32[1,128], index: 2, kind: input, shape index: {}]
  %s3 = inlined_call_operand.vmem [shape: f32[128,128], index: 3, kind: input, shape index: {}]
  %s4 = inlined_call_operand.vmem [shape: f32[1,128], index: 4, kind: input, shape index: {}]
  %s5 = inlined_call_operand.vmem [shape: f32[64,128], index: 5, kind: output, shape index: {0}]
  %s6 = inlined_call_operand.vmem [shape: f32[64,128], index: 6, kind: output, shape index: {1}]
  %7 = xla_tuple %s5, %s6
  %s8 = sld [smem:[#allocation0]]
  $region38: #{generator_forward.6} parent=0
    _
  %s10 = ssub.s32 1, %s8
  %s11 = scalar_select 0, %s10, %s8
  // Predicated region
  $region2: #{generator_forward.6} parent=0 // pred_check
    _
  $region3: #{generator_forward.6} parent=0 // pred_check_branch
    %13 = sbr.rel (0) target = $region5
  $region4: #{generator_forward.6} parent=0 // pred_region
    _
  $region5: #{generator_forward.6} parent=0 // pred_fallthru
    _
  // Predicated region
  $region6: #{generator_forward.6} parent=0 // pred_check
    _
  $region7: #{generator_forward.6} parent=0 // pred_check_branch
    %15 = sbr.rel (0) target = $region9
  $region8: #{generator_forward.6} parent=0 // pred_region
    _
  $region9: #{generator_forward.6} parent=0 // pred_fallthru
    _
  // Predicated region
  $region10: #{generator_forward.6} parent=0 // pred_check
    _
  $region11: #{generator_forward.6} parent=0 // pred_check_branch
    %17 = sbr.rel (0) target = $region13
  $region12: #{generator_forward.6} parent=0 // pred_region
    _
  $region13: #{generator_forward.6} parent=0 // pred_fallthru
    _
  // Predicated region
  $region14: #{generator_forward.6} parent=0 // pred_check
    _
  $region15: #{generator_forward.6} parent=0 // pred_check_branch
    %19 = sbr.rel (0) target = $region17
  $region16: #{generator_forward.6} parent=0 // pred_region
    _
  $region17: #{generator_forward.6} parent=0 // pred_fallthru
    _
  // Predicated region
  $region18: #{generator_forward.6} parent=0 // pred_check
    _
  $region19: #{generator_forward.6} parent=0 // pred_check_branch
    %21 = sbr.rel (0) target = $region21
  $region20: #{generator_forward.6} parent=0 // pred_region
    _
  $region21: #{generator_forward.6} parent=0 // pred_fallthru
    _
  %v22 = vld [vmem:[%s0] sm:$0xff]
  %v23 = vld [vmem:[%s0 + $0x8] sm:$0xff]
  %v24 = vld [vmem:[%s0 + $0x10] sm:$0xff]
  %v25 = vld [vmem:[%s0 + $0x18] sm:$0xff]
  %v26 = vld [vmem:[%s0 + $0x20] sm:$0xff]
  %v27 = vld [vmem:[%s0 + $0x28] sm:$0xff]
  %v28 = vld [vmem:[%s0 + $0x30] sm:$0xff]
  %v29 = vld [vmem:[%s0 + $0x38] sm:$0xff]
  %v30 = vld [vmem:[%s1] sm:$0xff]
  %v31 = vld [vmem:[%s1 + $0x8] sm:$0xff]
  %v32 = vld [vmem:[%s1 + $0x10] sm:$0xff]
  %v33 = vld [vmem:[%s1 + $0x18] sm:$0xff]
  %v34 = vld [vmem:[%s1 + $0x20] sm:$0xff]
  %v35 = vld [vmem:[%s1 + $0x28] sm:$0xff]
  %v36 = vld [vmem:[%s1 + $0x30] sm:$0xff]
  %v37 = vld [vmem:[%s1 + $0x38] sm:$0xff]
  %v38 = vld [vmem:[%s1 + $0x40] sm:$0xff]
  %v39 = vld [vmem:[%s1 + $0x48] sm:$0xff]
  %v40 = vld [vmem:[%s1 + $0x50] sm:$0xff]
  %v41 = vld [vmem:[%s1 + $0x58] sm:$0xff]
  %v42 = vld [vmem:[%s1 + $0x60] sm:$0xff]
  %v43 = vld [vmem:[%s1 + $0x68] sm:$0xff]
  %v44 = vld [vmem:[%s1 + $0x70] sm:$0xff]
  %v45 = vld [vmem:[%s1 + $0x78] sm:$0xff]
  %v46 = vld [vmem:[%s2] sm:$0x1]
  %v48 = vlaneseq
  %v49 = vshrl.u32 %v48, 7
  %v50 = vsub.s32 0, %v49
  %v51 = vrot.slane %v46, %v50
  %53 = vmatprep.subr.mxu0 0.0
  %54 = vmatpush1.msra.mxu0 %v30
  %55 = vmatprep.subr.mxu0 0.0
  %56 = vmatpush1.msra.mxu0 %v31
  %57 = vmatprep.subr.mxu0 0.0
  %58 = vmatpush1.msra.mxu0 %v32
  %59 = vmatprep.subr.mxu0 0.0
  %60 = vmatpush1.msra.mxu0 %v33
  %61 = vmatprep.subr.mxu0 0.0
  %62 = vmatpush1.msra.mxu0 %v34
  %63 = vmatprep.subr.mxu0 0.0
  %64 = vmatpush1.msra.mxu0 %v35
  %65 = vmatprep.subr.mxu0 0.0
  %66 = vmatpush1.msra.mxu0 %v36
  %67 = vmatprep.subr.mxu0 0.0
  %68 = vmatpush1.msra.mxu0 %v37
  %69 = vmatprep.subr.mxu0 0.0
  %70 = vmatpush1.msra.mxu0 %v38
  %71 = vmatprep.subr.mxu0 0.0
  %72 = vmatpush1.msra.mxu0 %v39
  %73 = vmatprep.subr.mxu0 0.0
  %74 = vmatpush1.msra.mxu0 %v40
  %75 = vmatprep.subr.mxu0 0.0
  %76 = vmatpush1.msra.mxu0 %v41
  %77 = vmatprep.subr.mxu0 0.0
  %78 = vmatpush1.msra.mxu0 %v42
  %79 = vmatprep.subr.mxu0 0.0
  %80 = vmatpush1.msra.mxu0 %v43
  %81 = vmatprep.subr.mxu0 0.0
  %82 = vmatpush1.msra.mxu0 %v44
  %83 = vmatprep.subr.mxu0 0.0
  %84 = vmatpush1.msra.mxu0 %v45
  %85 = vmatprep.subr.mxu0 0.0
  %86 = vmatpush1.msra.mxu0 0.0
  %87 = vmatprep.subr.mxu0 0.0
  %88 = vmatpush1.msra.mxu0 0.0
  %89 = vmatprep.subr.mxu0 0.0
  %90 = vmatpush1.msra.mxu0 0.0
  %91 = vmatprep.subr.mxu0 0.0
  %92 = vmatpush1.msra.mxu0 0.0
  %93 = vmatprep.subr.mxu0 0.0
  %94 = vmatpush1.msra.mxu0 0.0
  %95 = vmatprep.subr.mxu0 0.0
  %96 = vmatpush1.msra.mxu0 0.0
  %97 = vmatprep.subr.mxu0 0.0
  %98 = vmatpush1.msra.mxu0 0.0
  %99 = vmatprep.subr.mxu0 0.0
  %100 = vmatpush1.msra.mxu0 0.0
  %101 = vmatprep.subr.mxu0 0.0
  %102 = vmatpush1.msra.mxu0 0.0
  %103 = vmatprep.subr.mxu0 0.0
  %104 = vmatpush1.msra.mxu0 0.0
  %105 = vmatprep.subr.mxu0 0.0
  %106 = vmatpush1.msra.mxu0 0.0
  %107 = vmatprep.subr.mxu0 0.0
  %108 = vmatpush1.msra.mxu0 0.0
  %109 = vmatprep.subr.mxu0 0.0
  %110 = vmatpush1.msra.mxu0 0.0
  %111 = vmatprep.subr.mxu0 0.0
  %112 = vmatpush1.msra.mxu0 0.0
  %113 = vmatprep.subr.mxu0 0.0
  %114 = vmatpush1.msra.mxu0 0.0
  %115 = vmatprep.subr.mxu0 0.0
  %116 = vmatpush1.msra.mxu0 0.0
  %117 = vmatprep.mubr.f32.mxu0 0.0
  %118 = vmatmul.mubr.f32.gmra.mrb[0].mxu0 %v22
  %v119 = vpop.f32.mrb[0].mxu0
  %v120 = vadd.f32 %v51, %v119
  %v121 = vpop.f32.mrb[0].mxu0
  %122 = vmatprep.mubr.f32.mxu0 0.0
  %123 = vmatmul.mubr.f32.gmra.mrb[0].mxu0 %v23
  %v124 = vpop.f32.mrb[0].mxu0
  %v125 = vadd.f32 %v51, %v124
  %v126 = vpop.f32.mrb[0].mxu0
  %127 = vmatprep.mubr.f32.mxu0 0.0
  %128 = vmatmul.mubr.f32.gmra.mrb[0].mxu0 %v24
  %v129 = vpop.f32.mrb[0].mxu0
  %v130 = vadd.f32 %v51, %v129
  %v131 = vpop.f32.mrb[0].mxu0
  %132 = vmatprep.mubr.f32.mxu0 0.0
  %133 = vmatmul.mubr.f32.gmra.mrb[0].mxu0 %v25
  %v134 = vpop.f32.mrb[0].mxu0
  %v135 = vadd.f32 %v51, %v134
  %v136 = vpop.f32.mrb[0].mxu0
  %137 = vmatprep.mubr.f32.mxu0 0.0
  %138 = vmatmul.mubr.f32.gmra.mrb[0].mxu0 %v26
  %v139 = vpop.f32.mrb[0].mxu0
  %v140 = vadd.f32 %v51, %v139
  %v141 = vpop.f32.mrb[0].mxu0
  %142 = vmatprep.mubr.f32.mxu0 0.0
  %143 = vmatmul.mubr.f32.gmra.mrb[0].mxu0 %v27
  %v144 = vpop.f32.mrb[0].mxu0
  %v145 = vadd.f32 %v51, %v144
  %v146 = vpop.f32.mrb[0].mxu0
  %147 = vmatprep.mubr.f32.mxu0 0.0
  %148 = vmatmul.mubr.f32.gmra.mrb[0].mxu0 %v28
  %v149 = vpop.f32.mrb[0].mxu0
  %v150 = vadd.f32 %v51, %v149
  %v151 = vpop.f32.mrb[0].mxu0
  %152 = vmatprep.mubr.f32.mxu0 0.0
  %153 = vmatmul.mubr.f32.gmra.mrb[0].mxu0 %v29
  %v154 = vpop.f32.mrb[0].mxu0
  %v155 = vadd.f32 %v51, %v154
  %v156 = vpop.f32.mrb[0].mxu0
  %157 = vdwg.mxu0
  %v158 = vmax.f32 %v120, 0.0
  %v159 = vmax.f32 %v125, 0.0
  %v160 = vmax.f32 %v130, 0.0
  %v161 = vmax.f32 %v135, 0.0
  %v162 = vmax.f32 %v140, 0.0
  %v163 = vmax.f32 %v145, 0.0
  %v164 = vmax.f32 %v150, 0.0
  %v165 = vmax.f32 %v155, 0.0
  %166 = vst [vmem:[%s5] sm:$0xff] %v158
  %167 = vst [vmem:[%s5 + $0x8] sm:$0xff] %v159
  %168 = vst [vmem:[%s5 + $0x10] sm:$0xff] %v160
  %169 = vst [vmem:[%s5 + $0x18] sm:$0xff] %v161
  %170 = vst [vmem:[%s5 + $0x20] sm:$0xff] %v162
  %171 = vst [vmem:[%s5 + $0x28] sm:$0xff] %v163
  %172 = vst [vmem:[%s5 + $0x30] sm:$0xff] %v164
  %173 = vst [vmem:[%s5 + $0x38] sm:$0xff] %v165
  %v174 = vld [vmem:[%s3] sm:$0xff]
  %v175 = vld [vmem:[%s3 + $0x8] sm:$0xff]
  %v176 = vld [vmem:[%s3 + $0x10] sm:$0xff]
  %v177 = vld [vmem:[%s3 + $0x18] sm:$0xff]
  %v178 = vld [vmem:[%s3 + $0x20] sm:$0xff]
  %v179 = vld [vmem:[%s3 + $0x28] sm:$0xff]
  %v180 = vld [vmem:[%s3 + $0x30] sm:$0xff]
  %v181 = vld [vmem:[%s3 + $0x38] sm:$0xff]
  %v182 = vld [vmem:[%s3 + $0x40] sm:$0xff]
  %v183 = vld [vmem:[%s3 + $0x48] sm:$0xff]
  %v184 = vld [vmem:[%s3 + $0x50] sm:$0xff]
  %v185 = vld [vmem:[%s3 + $0x58] sm:$0xff]
  %v186 = vld [vmem:[%s3 + $0x60] sm:$0xff]
  %v187 = vld [vmem:[%s3 + $0x68] sm:$0xff]
  %v188 = vld [vmem:[%s3 + $0x70] sm:$0xff]
  %v189 = vld [vmem:[%s3 + $0x78] sm:$0xff]
  %v190 = vld [vmem:[%s4] sm:$0x1]
  %v192 = vlaneseq
  %v193 = vshrl.u32 %v192, 7
  %v194 = vsub.s32 0, %v193
  %v195 = vrot.slane %v190, %v194
  %197 = vmatprep.subr.mxu0 0.0
  %198 = vmatpush1.msra.mxu0 %v174
  %199 = vmatprep.subr.mxu0 0.0
  %200 = vmatpush1.msra.mxu0 %v175
  %201 = vmatprep.subr.mxu0 0.0
  %202 = vmatpush1.msra.mxu0 %v176
  %203 = vmatprep.subr.mxu0 0.0
  %204 = vmatpush1.msra.mxu0 %v177
  %205 = vmatprep.subr.mxu0 0.0
  %206 = vmatpush1.msra.mxu0 %v178
  %207 = vmatprep.subr.mxu0 0.0
  %208 = vmatpush1.msra.mxu0 %v179
  %209 = vmatprep.subr.mxu0 0.0
  %210 = vmatpush1.msra.mxu0 %v180
  %211 = vmatprep.subr.mxu0 0.0
  %212 = vmatpush1.msra.mxu0 %v181
  %213 = vmatprep.subr.mxu0 0.0
  %214 = vmatpush1.msra.mxu0 %v182
  %215 = vmatprep.subr.mxu0 0.0
  %216 = vmatpush1.msra.mxu0 %v183
  %217 = vmatprep.subr.mxu0 0.0
  %218 = vmatpush1.msra.mxu0 %v184
  %219 = vmatprep.subr.mxu0 0.0
  %220 = vmatpush1.msra.mxu0 %v185
  %221 = vmatprep.subr.mxu0 0.0
  %222 = vmatpush1.msra.mxu0 %v186
  %223 = vmatprep.subr.mxu0 0.0
  %224 = vmatpush1.msra.mxu0 %v187
  %225 = vmatprep.subr.mxu0 0.0
  %226 = vmatpush1.msra.mxu0 %v188
  %227 = vmatprep.subr.mxu0 0.0
  %228 = vmatpush1.msra.mxu0 %v189
  %229 = vmatprep.subr.mxu0 0.0
  %230 = vmatpush1.msra.mxu0 0.0
  %231 = vmatprep.subr.mxu0 0.0
  %232 = vmatpush1.msra.mxu0 0.0
  %233 = vmatprep.subr.mxu0 0.0
  %234 = vmatpush1.msra.mxu0 0.0
  %235 = vmatprep.subr.mxu0 0.0
  %236 = vmatpush1.msra.mxu0 0.0
  %237 = vmatprep.subr.mxu0 0.0
  %238 = vmatpush1.msra.mxu0 0.0
  %239 = vmatprep.subr.mxu0 0.0
  %240 = vmatpush1.msra.mxu0 0.0
  %241 = vmatprep.subr.mxu0 0.0
  %242 = vmatpush1.msra.mxu0 0.0
  %243 = vmatprep.subr.mxu0 0.0
  %244 = vmatpush1.msra.mxu0 0.0
  %245 = vmatprep.subr.mxu0 0.0
  %246 = vmatpush1.msra.mxu0 0.0
  %247 = vmatprep.subr.mxu0 0.0
  %248 = vmatpush1.msra.mxu0 0.0
  %249 = vmatprep.subr.mxu0 0.0
  %250 = vmatpush1.msra.mxu0 0.0
  %251 = vmatprep.subr.mxu0 0.0
  %252 = vmatpush1.msra.mxu0 0.0
  %253 = vmatprep.subr.mxu0 0.0
  %254 = vmatpush1.msra.mxu0 0.0
  %255 = vmatprep.subr.mxu0 0.0
  %256 = vmatpush1.msra.mxu0 0.0
  %257 = vmatprep.subr.mxu0 0.0
  %258 = vmatpush1.msra.mxu0 0.0
  %259 = vmatprep.subr.mxu0 0.0
  %260 = vmatpush1.msra.mxu0 0.0
  %261 = vmatprep.mubr.f32.mxu0 0.0
  %262 = vmatmul.mubr.f32.gmra.mrb[0].mxu0 %v22
  %v263 = vpop.f32.mrb[0].mxu0
  %v264 = vadd.f32 %v195, %v263
  %v265 = vpop.f32.mrb[0].mxu0
  %266 = vmatprep.mubr.f32.mxu0 0.0
  %267 = vmatmul.mubr.f32.gmra.mrb[0].mxu0 %v23
  %v268 = vpop.f32.mrb[0].mxu0
  %v269 = vadd.f32 %v195, %v268
  %v270 = vpop.f32.mrb[0].mxu0
  %271 = vmatprep.mubr.f32.mxu0 0.0
  %272 = vmatmul.mubr.f32.gmra.mrb[0].mxu0 %v24
  %v273 = vpop.f32.mrb[0].mxu0
  %v274 = vadd.f32 %v195, %v273
  %v275 = vpop.f32.mrb[0].mxu0
  %276 = vmatprep.mubr.f32.mxu0 0.0
  %277 = vmatmul.mubr.f32.gmra.mrb[0].mxu0 %v25
  %v278 = vpop.f32.mrb[0].mxu0
  %v279 = vadd.f32 %v195, %v278
  %v280 = vpop.f32.mrb[0].mxu0
  %281 = vmatprep.mubr.f32.mxu0 0.0
  %282 = vmatmul.mubr.f32.gmra.mrb[0].mxu0 %v26
  %v283 = vpop.f32.mrb[0].mxu0
  %v284 = vadd.f32 %v195, %v283
  %v285 = vpop.f32.mrb[0].mxu0
  %286 = vmatprep.mubr.f32.mxu0 0.0
  %287 = vmatmul.mubr.f32.gmra.mrb[0].mxu0 %v27
  %v288 = vpop.f32.mrb[0].mxu0
  %v289 = vadd.f32 %v195, %v288
  %v290 = vpop.f32.mrb[0].mxu0
  %291 = vmatprep.mubr.f32.mxu0 0.0
  %292 = vmatmul.mubr.f32.gmra.mrb[0].mxu0 %v28
  %v293 = vpop.f32.mrb[0].mxu0
  %v294 = vadd.f32 %v195, %v293
  %v295 = vpop.f32.mrb[0].mxu0
  %296 = vmatprep.mubr.f32.mxu0 0.0
  %297 = vmatmul.mubr.f32.gmra.mrb[0].mxu0 %v29
  %v298 = vpop.f32.mrb[0].mxu0
  %v299 = vadd.f32 %v195, %v298
  %v300 = vpop.f32.mrb[0].mxu0
  %301 = vdwg.mxu0
  %302 = vst [vmem:[%s6] sm:$0xff] %v264
  %303 = vst [vmem:[%s6 + $0x8] sm:$0xff] %v269
  %304 = vst [vmem:[%s6 + $0x10] sm:$0xff] %v274
  %305 = vst [vmem:[%s6 + $0x18] sm:$0xff] %v279
  %306 = vst [vmem:[%s6 + $0x20] sm:$0xff] %v284
  %307 = vst [vmem:[%s6 + $0x28] sm:$0xff] %v289
  %308 = vst [vmem:[%s6 + $0x30] sm:$0xff] %v294
  %309 = vst [vmem:[%s6 + $0x38] sm:$0xff] %v299
  // Predicated region
  $region22: #{generator_forward.6} parent=0 // pred_check
    _
  $region23: #{generator_forward.6} parent=0 // pred_check_branch
    %311 = sbr.rel (0) target = $region25
  $region24: #{generator_forward.6} parent=0 // pred_region
    _
  $region25: #{generator_forward.6} parent=0 // pred_fallthru
    _
  // Predicated region
  $region26: #{generator_forward.6} parent=0 // pred_check
    _
  $region27: #{generator_forward.6} parent=0 // pred_check_branch
    %313 = sbr.rel (0) target = $region29
  $region28: #{generator_forward.6} parent=0 // pred_region
    _
  $region29: #{generator_forward.6} parent=0 // pred_fallthru
    _
  // Predicated region
  $region30: #{generator_forward.6} parent=0 // pred_check
    _
  $region31: #{generator_forward.6} parent=0 // pred_check_branch
    %315 = sbr.rel (0) target = $region33
  $region32: #{generator_forward.6} parent=0 // pred_region
    _
  $region33: #{generator_forward.6} parent=0 // pred_fallthru
    _
  // Predicated region
  $region34: #{generator_forward.6} parent=0 // pred_check
    _
  $region35: #{generator_forward.6} parent=0 // pred_check_branch
    %317 = sbr.rel (0) target = $region37
  $region36: #{generator_forward.6} parent=0 // pred_region
    _
  $region37: #{generator_forward.6} parent=0 // pred_fallthru
    _

// kernel: generator_forward.8
$region0: #{generator_forward.8}
  #allocation0 [shape = 'u32[]', space=smem, size = 0x4, offset = 0x4, fixed_abs, tag = 'smem constant byte address 0x4 - core index']
  #allocation1 [shape = 'u32[144,128]{1,0:T(1,128)}', space=vmem, size = 0x12000, scoped, tag = 'internal scratch']
  %s0 = inlined_call_operand.vmem [shape: f32[128,128], index: 0, kind: input, shape index: {}]
  %s1 = inlined_call_operand.vmem [shape: f32[128,512], index: 1, kind: input, shape index: {}]
  %s2 = inlined_call_operand.vmem [shape: f32[1,512], index: 2, kind: input, shape index: {}]
  %s3 = inlined_call_operand.vmem [shape: f32[128,512], index: 3, kind: output, shape index: {}]
  %s4 = sld [smem:[#allocation0]]
  $region22: #{generator_forward.8} parent=0
    _
  %s6 = ssub.s32 1, %s4
  %s7 = scalar_select 0, %s6, %s4
  // Predicated region
  $region2: #{generator_forward.8} parent=0 // pred_check
    _
  $region3: #{generator_forward.8} parent=0 // pred_check_branch
    %9 = sbr.rel (0) target = $region5
  $region4: #{generator_forward.8} parent=0 // pred_region
    _
  $region5: #{generator_forward.8} parent=0 // pred_fallthru
    _
  // Predicated region
  $region6: #{generator_forward.8} parent=0 // pred_check
    _
  $region7: #{generator_forward.8} parent=0 // pred_check_branch
    %11 = sbr.rel (0) target = $region9
  $region8: #{generator_forward.8} parent=0 // pred_region
    _
  $region9: #{generator_forward.8} parent=0 // pred_fallthru
    _
  // Predicated region
  $region10: #{generator_forward.8} parent=0 // pred_check
    _
  $region11: #{generator_forward.8} parent=0 // pred_check_branch
    %13 = sbr.rel (0) target = $region13
  $region12: #{generator_forward.8} parent=0 // pred_region
    _
  $region13: #{generator_forward.8} parent=0 // pred_fallthru
    _
  %v14 = vld [vmem:[%s0] sm:$0xff]
  %v15 = vld [vmem:[%s0 + $0x8] sm:$0xff]
  %v16 = vld [vmem:[%s0 + $0x10] sm:$0xff]
  %v17 = vld [vmem:[%s0 + $0x18] sm:$0xff]
  %v18 = vld [vmem:[%s0 + $0x20] sm:$0xff]
  %v19 = vld [vmem:[%s0 + $0x28] sm:$0xff]
  %v20 = vld [vmem:[%s0 + $0x30] sm:$0xff]
  %v21 = vld [vmem:[%s0 + $0x38] sm:$0xff]
  %v22 = vld [vmem:[%s0 + $0x40] sm:$0xff]
  %v23 = vld [vmem:[%s0 + $0x48] sm:$0xff]
  %v24 = vld [vmem:[%s0 + $0x50] sm:$0xff]
  %v25 = vld [vmem:[%s0 + $0x58] sm:$0xff]
  %v26 = vld [vmem:[%s0 + $0x60] sm:$0xff]
  %v27 = vld [vmem:[%s0 + $0x68] sm:$0xff]
  %v28 = vld [vmem:[%s0 + $0x70] sm:$0xff]
  %v29 = vld [vmem:[%s0 + $0x78] sm:$0xff]
  %v30 = vld [vmem:[%s1] sm:$0xff]
  %v31 = vld [vmem:[%s1 + $0x8] sm:$0xff]
  %v32 = vld [vmem:[%s1 + $0x10] sm:$0xff]
  %v33 = vld [vmem:[%s1 + $0x18] sm:$0xff]
  %v34 = vld [vmem:[%s1 + $0x20] sm:$0xff]
  %v35 = vld [vmem:[%s1 + $0x28] sm:$0xff]
  %v36 = vld [vmem:[%s1 + $0x30] sm:$0xff]
  %v37 = vld [vmem:[%s1 + $0x38] sm:$0xff]
  %v38 = vld [vmem:[%s1 + $0x40] sm:$0xff]
  %v39 = vld [vmem:[%s1 + $0x48] sm:$0xff]
  %v40 = vld [vmem:[%s1 + $0x50] sm:$0xff]
  %v41 = vld [vmem:[%s1 + $0x58] sm:$0xff]
  %v42 = vld [vmem:[%s1 + $0x60] sm:$0xff]
  %v43 = vld [vmem:[%s1 + $0x68] sm:$0xff]
  %v44 = vld [vmem:[%s1 + $0x70] sm:$0xff]
  %v45 = vld [vmem:[%s1 + $0x78] sm:$0xff]
  %v46 = vld [vmem:[%s1 + $0x80] sm:$0xff]
  %v47 = vld [vmem:[%s1 + $0x88] sm:$0xff]
  %v48 = vld [vmem:[%s1 + $0x90] sm:$0xff]
  %v49 = vld [vmem:[%s1 + $0x98] sm:$0xff]
  %v50 = vld [vmem:[%s1 + $0xa0] sm:$0xff]
  %v51 = vld [vmem:[%s1 + $0xa8] sm:$0xff]
  %v52 = vld [vmem:[%s1 + $0xb0] sm:$0xff]
  %v53 = vld [vmem:[%s1 + $0xb8] sm:$0xff]
  %v54 = vld [vmem:[%s1 + $0xc0] sm:$0xff]
  %v55 = vld [vmem:[%s1 + $0xc8] sm:$0xff]
  %v56 = vld [vmem:[%s1 + $0xd0] sm:$0xff]
  %v57 = vld [vmem:[%s1 + $0xd8] sm:$0xff]
  %v58 = vld [vmem:[%s1 + $0xe0] sm:$0xff]
  %v59 = vld [vmem:[%s1 + $0xe8] sm:$0xff]
  %v60 = vld [vmem:[%s1 + $0xf0] sm:$0xff]
  %v61 = vld [vmem:[%s1 + $0xf8] sm:$0xff]
  %v62 = vld [vmem:[%s1 + $0x100] sm:$0xff]
  %v63 = vld [vmem:[%s1 + $0x108] sm:$0xff]
  %v64 = vld [vmem:[%s1 + $0x110] sm:$0xff]
  %v65 = vld [vmem:[%s1 + $0x118] sm:$0xff]
  %v66 = vld [vmem:[%s1 + $0x120] sm:$0xff]
  %v67 = vld [vmem:[%s1 + $0x128] sm:$0xff]
  %v68 = vld [vmem:[%s1 + $0x130] sm:$0xff]
  %v69 = vld [vmem:[%s1 + $0x138] sm:$0xff]
  %v70 = vld [vmem:[%s1 + $0x140] sm:$0xff]
  %v71 = vld [vmem:[%s1 + $0x148] sm:$0xff]
  %v72 = vld [vmem:[%s1 + $0x150] sm:$0xff]
  %v73 = vld [vmem:[%s1 + $0x158] sm:$0xff]
  %v74 = vld [vmem:[%s1 + $0x160] sm:$0xff]
  %v75 = vld [vmem:[%s1 + $0x168] sm:$0xff]
  %v76 = vld [vmem:[%s1 + $0x170] sm:$0xff]
  %v77 = vld [vmem:[%s1 + $0x178] sm:$0xff]
  %v78 = vld [vmem:[%s1 + $0x180] sm:$0xff]
  %v79 = vld [vmem:[%s1 + $0x188] sm:$0xff]
  %v80 = vld [vmem:[%s1 + $0x190] sm:$0xff]
  %v81 = vld [vmem:[%s1 + $0x198] sm:$0xff]
  %v82 = vld [vmem:[%s1 + $0x1a0] sm:$0xff]
  %v83 = vld [vmem:[%s1 + $0x1a8] sm:$0xff]
  %v84 = vld [vmem:[%s1 + $0x1b0] sm:$0xff]
  %v85 = vld [vmem:[%s1 + $0x1b8] sm:$0xff]
  %v86 = vld [vmem:[%s1 + $0x1c0] sm:$0xff]
  %v87 = vld [vmem:[%s1 + $0x1c8] sm:$0xff]
  %v88 = vld [vmem:[%s1 + $0x1d0] sm:$0xff]
  %v89 = vld [vmem:[%s1 + $0x1d8] sm:$0xff]
  %v90 = vld [vmem:[%s1 + $0x1e0] sm:$0xff]
  %v91 = vld [vmem:[%s1 + $0x1e8] sm:$0xff]
  %v92 = vld [vmem:[%s1 + $0x1f0] sm:$0xff]
  %v93 = vld [vmem:[%s1 + $0x1f8] sm:$0xff]
  %v94 = vld [vmem:[%s2] sm:$0xf]
  %v96 = vlaneseq
  %v97 = vshrl.u32 %v96, 7
  %v98 = vsub.s32 0, %v97
  %v99 = vrot.slane %v94, %v98
  %v100 = vlaneseq
  %v101 = vshrl.u32 %v100, 7
  %v102 = vsub.s32 1, %v101
  %v103 = vrot.slane %v94, %v102
  %v104 = vlaneseq
  %v105 = vshrl.u32 %v104, 7
  %v106 = vsub.s32 2, %v105
  %v107 = vrot.slane %v94, %v106
  %v108 = vlaneseq
  %v109 = vshrl.u32 %v108, 7
  %v110 = vsub.s32 3, %v109
  %v111 = vrot.slane %v94, %v110
  %116 = vmatprep.subr.mxu0 %v31
  %117 = vmatpush1.msra.mxu0 %v30
  %118 = vmatprep.subr.mxu0 %v35
  %119 = vmatpush1.msra.mxu0 %v34
  %120 = vmatprep.subr.mxu0 %v39
  %121 = vmatpush1.msra.mxu0 %v38
  %122 = vmatprep.subr.mxu0 %v43
  %123 = vmatpush1.msra.mxu0 %v42
  %124 = vmatprep.subr.mxu0 %v47
  %125 = vmatpush1.msra.mxu0 %v46
  %126 = vmatprep.subr.mxu0 %v51
  %127 = vmatpush1.msra.mxu0 %v50
  %128 = vmatprep.subr.mxu0 %v55
  %129 = vmatpush1.msra.mxu0 %v54
  %130 = vmatprep.subr.mxu0 %v59
  %131 = vmatpush1.msra.mxu0 %v58
  %132 = vmatprep.subr.mxu0 %v63
  %133 = vmatpush1.msra.mxu0 %v62
  %134 = vmatprep.subr.mxu0 %v67
  %135 = vmatpush1.msra.mxu0 %v66
  %136 = vmatprep.subr.mxu0 %v71
  %137 = vmatpush1.msra.mxu0 %v70
  %138 = vmatprep.subr.mxu0 %v75
  %139 = vmatpush1.msra.mxu0 %v74
  %140 = vmatprep.subr.mxu0 %v79
  %141 = vmatpush1.msra.mxu0 %v78
  %142 = vmatprep.subr.mxu0 %v83
  %143 = vmatpush1.msra.mxu0 %v82
  %144 = vmatprep.subr.mxu0 %v87
  %145 = vmatpush1.msra.mxu0 %v86
  %146 = vmatprep.subr.mxu0 %v91
  %147 = vmatpush1.msra.mxu0 %v90
  %148 = vmatprep.subr.mxu0 0.0
  %149 = vmatpush1.msra.mxu0 0.0
  %150 = vmatprep.subr.mxu0 0.0
  %151 = vmatpush1.msra.mxu0 0.0
  %152 = vmatprep.subr.mxu0 0.0
  %153 = vmatpush1.msra.mxu0 0.0
  %154 = vmatprep.subr.mxu0 0.0
  %155 = vmatpush1.msra.mxu0 0.0
  %156 = vmatprep.subr.mxu0 0.0
  %157 = vmatpush1.msra.mxu0 0.0
  %158 = vmatprep.subr.mxu0 0.0
  %159 = vmatpush1.msra.mxu0 0.0
  %160 = vmatprep.subr.mxu0 0.0
  %161 = vmatpush1.msra.mxu0 0.0
  %162 = vmatprep.subr.mxu0 0.0
  %163 = vmatpush1.msra.mxu0 0.0
  %164 = vmatprep.subr.mxu0 0.0
  %165 = vmatpush1.msra.mxu0 0.0
  %166 = vmatprep.subr.mxu0 0.0
  %167 = vmatpush1.msra.mxu0 0.0
  %168 = vmatprep.subr.mxu0 0.0
  %169 = vmatpush1.msra.mxu0 0.0
  %170 = vmatprep.subr.mxu0 0.0
  %171 = vmatpush1.msra.mxu0 0.0
  %172 = vmatprep.subr.mxu0 0.0
  %173 = vmatpush1.msra.mxu0 0.0
  %174 = vmatprep.subr.mxu0 0.0
  %175 = vmatpush1.msra.mxu0 0.0
  %176 = vmatprep.subr.mxu0 0.0
  %177 = vmatpush1.msra.mxu0 0.0
  %178 = vmatprep.subr.mxu0 0.0
  %179 = vmatpush1.msra.mxu0 0.0
  %180 = vmatprep.mubr.f32.mxu0 0.0
  %181 = vmatmul.mubr.f32.gmra.mrb[0].mxu0 %v14
  %v182 = vpop.f32.mrb[0].mxu0
  %v183 = vadd.f32 %v99, %v182
  %v184 = vpop.f32.mrb[0].mxu0
  %v185 = vadd.f32 %v103, %v184
  %186 = vmatprep.mubr.f32.mxu0 0.0
  %187 = vmatmul.mubr.f32.gmra.mrb[0].mxu0 %v15
  %v188 = vpop.f32.mrb[0].mxu0
  %v189 = vadd.f32 %v99, %v188
  %v190 = vpop.f32.mrb[0].mxu0
  %v191 = vadd.f32 %v103, %v190
  %192 = vmatprep.mubr.f32.mxu0 0.0
  %193 = vmatmul.mubr.f32.gmra.mrb[0].mxu0 %v16
  %v194 = vpop.f32.mrb[0].mxu0
  %v195 = vadd.f32 %v99, %v194
  %v196 = vpop.f32.mrb[0].mxu0
  %v197 = vadd.f32 %v103, %v196
  %198 = vmatprep.mubr.f32.mxu0 0.0
  %199 = vmatmul.mubr.f32.gmra.mrb[0].mxu0 %v17
  %v200 = vpop.f32.mrb[0].mxu0
  %v201 = vadd.f32 %v99, %v200
  %v202 = vpop.f32.mrb[0].mxu0
  %v203 = vadd.f32 %v103, %v202
  %204 = vmatprep.mubr.f32.mxu0 0.0
  %205 = vmatmul.mubr.f32.gmra.mrb[0].mxu0 %v18
  %v206 = vpop.f32.mrb[0].mxu0
  %v207 = vadd.f32 %v99, %v206
  %v208 = vpop.f32.mrb[0].mxu0
  %v209 = vadd.f32 %v103, %v208
  %210 = vmatprep.mubr.f32.mxu0 0.0
  %211 = vmatmul.mubr.f32.gmra.mrb[0].mxu0 %v19
  %v212 = vpop.f32.mrb[0].mxu0
  %v213 = vadd.f32 %v99, %v212
  %v214 = vpop.f32.mrb[0].mxu0
  %v215 = vadd.f32 %v103, %v214
  %216 = vmatprep.mubr.f32.mxu0 0.0
  %217 = vmatmul.mubr.f32.gmra.mrb[0].mxu0 %v20
  %v218 = vpop.f32.mrb[0].mxu0
  %v219 = vadd.f32 %v99, %v218
  %v220 = vpop.f32.mrb[0].mxu0
  %v221 = vadd.f32 %v103, %v220
  %222 = vmatprep.mubr.f32.mxu0 0.0
  %223 = vmatmul.mubr.f32.gmra.mrb[0].mxu0 %v21
  %v224 = vpop.f32.mrb[0].mxu0
  %v225 = vadd.f32 %v99, %v224
  %v226 = vpop.f32.mrb[0].mxu0
  %v227 = vadd.f32 %v103, %v226
  %228 = vmatprep.mubr.f32.mxu0 0.0
  %229 = vmatmul.mubr.f32.gmra.mrb[0].mxu0 %v22
  %v230 = vpop.f32.mrb[0].mxu0
  %v231 = vadd.f32 %v99, %v230
  %v232 = vpop.f32.mrb[0].mxu0
  %v233 = vadd.f32 %v103, %v232
  %234 = vmatprep.mubr.f32.mxu0 0.0
  %235 = vmatmul.mubr.f32.gmra.mrb[0].mxu0 %v23
  %v236 = vpop.f32.mrb[0].mxu0
  %v237 = vadd.f32 %v99, %v236
  %v238 = vpop.f32.mrb[0].mxu0
  %v239 = vadd.f32 %v103, %v238
  %240 = vmatprep.mubr.f32.mxu0 0.0
  %241 = vmatmul.mubr.f32.gmra.mrb[0].mxu0 %v24
  %v242 = vpop.f32.mrb[0].mxu0
  %v243 = vadd.f32 %v99, %v242
  %v244 = vpop.f32.mrb[0].mxu0
  %v245 = vadd.f32 %v103, %v244
  %246 = vmatprep.mubr.f32.mxu0 0.0
  %247 = vmatmul.mubr.f32.gmra.mrb[0].mxu0 %v25
  %v248 = vpop.f32.mrb[0].mxu0
  %v249 = vadd.f32 %v99, %v248
  %v250 = vpop.f32.mrb[0].mxu0
  %v251 = vadd.f32 %v103, %v250
  %252 = vmatprep.mubr.f32.mxu0 0.0
  %253 = vmatmul.mubr.f32.gmra.mrb[0].mxu0 %v26
  %v254 = vpop.f32.mrb[0].mxu0
  %v255 = vadd.f32 %v99, %v254
  %v256 = vpop.f32.mrb[0].mxu0
  %v257 = vadd.f32 %v103, %v256
  %258 = vmatprep.mubr.f32.mxu0 0.0
  %259 = vmatmul.mubr.f32.gmra.mrb[0].mxu0 %v27
  %v260 = vpop.f32.mrb[0].mxu0
  %v261 = vadd.f32 %v99, %v260
  %v262 = vpop.f32.mrb[0].mxu0
  %v263 = vadd.f32 %v103, %v262
  %264 = vmatprep.mubr.f32.mxu0 0.0
  %265 = vmatmul.mubr.f32.gmra.mrb[0].mxu0 %v28
  %v266 = vpop.f32.mrb[0].mxu0
  %v267 = vadd.f32 %v99, %v266
  %v268 = vpop.f32.mrb[0].mxu0
  %v269 = vadd.f32 %v103, %v268
  %270 = vmatprep.mubr.f32.mxu0 0.0
  %271 = vmatmul.mubr.f32.gmra.mrb[0].mxu0 %v29
  %v272 = vpop.f32.mrb[0].mxu0
  %v273 = vadd.f32 %v99, %v272
  %v274 = vpop.f32.mrb[0].mxu0
  %v275 = vadd.f32 %v103, %v274
  %276 = vdwg.mxu0
  %277 = vmatprep.subr.mxu0 %v33
  %278 = vmatpush1.msra.mxu0 %v32
  %279 = vmatprep.subr.mxu0 %v37
  %280 = vmatpush1.msra.mxu0 %v36
  %281 = vmatprep.subr.mxu0 %v41
  %282 = vmatpush1.msra.mxu0 %v40
  %283 = vmatprep.subr.mxu0 %v45
  %284 = vmatpush1.msra.mxu0 %v44
  %285 = vmatprep.subr.mxu0 %v49
  %286 = vmatpush1.msra.mxu0 %v48
  %287 = vmatprep.subr.mxu0 %v53
  %288 = vmatpush1.msra.mxu0 %v52
  %289 = vmatprep.subr.mxu0 %v57
  %290 = vmatpush1.msra.mxu0 %v56
  %291 = vmatprep.subr.mxu0 %v61
  %292 = vmatpush1.msra.mxu0 %v60
  %293 = vmatprep.subr.mxu0 %v65
  %294 = vmatpush1.msra.mxu0 %v64
  %295 = vmatprep.subr.mxu0 %v69
  %296 = vmatpush1.msra.mxu0 %v68
  %297 = vmatprep.subr.mxu0 %v73
  %298 = vmatpush1.msra.mxu0 %v72
  %299 = vmatprep.subr.mxu0 %v77
  %300 = vmatpush1.msra.mxu0 %v76
  %301 = vmatprep.subr.mxu0 %v81
  %302 = vmatpush1.msra.mxu0 %v80
  %303 = vmatprep.subr.mxu0 %v85
  %304 = vmatpush1.msra.mxu0 %v84
  %305 = vmatprep.subr.mxu0 %v89
  %306 = vmatpush1.msra.mxu0 %v88
  %307 = vmatprep.subr.mxu0 %v93
  %308 = vmatpush1.msra.mxu0 %v92
  %309 = vmatprep.subr.mxu0 0.0
  %310 = vmatpush1.msra.mxu0 0.0
  %311 = vmatprep.subr.mxu0 0.0
  %312 = vmatpush1.msra.mxu0 0.0
  %313 = vmatprep.subr.mxu0 0.0
  %314 = vmatpush1.msra.mxu0 0.0
  %315 = vmatprep.subr.mxu0 0.0
  %316 = vmatpush1.msra.mxu0 0.0
  %317 = vmatprep.subr.mxu0 0.0
  %318 = vmatpush1.msra.mxu0 0.0
  %319 = vmatprep.subr.mxu0 0.0
  %320 = vmatpush1.msra.mxu0 0.0
  %321 = vmatprep.subr.mxu0 0.0
  %322 = vmatpush1.msra.mxu0 0.0
  %323 = vmatprep.subr.mxu0 0.0
  %324 = vmatpush1.msra.mxu0 0.0
  %325 = vmatprep.subr.mxu0 0.0
  %326 = vmatpush1.msra.mxu0 0.0
  %327 = vmatprep.subr.mxu0 0.0
  %328 = vmatpush1.msra.mxu0 0.0
  %329 = vmatprep.subr.mxu0 0.0
  %330 = vmatpush1.msra.mxu0 0.0
  %331 = vmatprep.subr.mxu0 0.0
  %332 = vmatpush1.msra.mxu0 0.0
  %333 = vmatprep.subr.mxu0 0.0
  %334 = vmatpush1.msra.mxu0 0.0
  %335 = vmatprep.subr.mxu0 0.0
  %336 = vmatpush1.msra.mxu0 0.0
  %337 = vmatprep.subr.mxu0 0.0
  %338 = vmatpush1.msra.mxu0 0.0
  %339 = vmatprep.subr.mxu0 0.0
  %340 = vmatpush1.msra.mxu0 0.0
  %341 = vmatprep.mubr.f32.mxu0 0.0
  %342 = vmatmul.mubr.f32.gmra.mrb[0].mxu0 %v14
  %v343 = vpop.f32.mrb[0].mxu0
  %v344 = vadd.f32 %v107, %v343
  %v345 = vpop.f32.mrb[0].mxu0
  %v346 = vadd.f32 %v111, %v345
  %347 = vmatprep.mubr.f32.mxu0 0.0
  %348 = vmatmul.mubr.f32.gmra.mrb[0].mxu0 %v15
  %v349 = vpop.f32.mrb[0].mxu0
  %v350 = vadd.f32 %v107, %v349
  %v351 = vpop.f32.mrb[0].mxu0
  %v352 = vadd.f32 %v111, %v351
  %353 = vmatprep.mubr.f32.mxu0 0.0
  %354 = vmatmul.mubr.f32.gmra.mrb[0].mxu0 %v16
  %v355 = vpop.f32.mrb[0].mxu0
  %v356 = vadd.f32 %v107, %v355
  %v357 = vpop.f32.mrb[0].mxu0
  %v358 = vadd.f32 %v111, %v357
  %359 = vmatprep.mubr.f32.mxu0 0.0
  %360 = vmatmul.mubr.f32.gmra.mrb[0].mxu0 %v17
  %v361 = vpop.f32.mrb[0].mxu0
  %v362 = vadd.f32 %v107, %v361
  %v363 = vpop.f32.mrb[0].mxu0
  %v364 = vadd.f32 %v111, %v363
  %365 = vmatprep.mubr.f32.mxu0 0.0
  %366 = vmatmul.mubr.f32.gmra.mrb[0].mxu0 %v18
  %v367 = vpop.f32.mrb[0].mxu0
  %v368 = vadd.f32 %v107, %v367
  %v369 = vpop.f32.mrb[0].mxu0
  %v370 = vadd.f32 %v111, %v369
  %371 = vmatprep.mubr.f32.mxu0 0.0
  %372 = vmatmul.mubr.f32.gmra.mrb[0].mxu0 %v19
  %v373 = vpop.f32.mrb[0].mxu0
  %v374 = vadd.f32 %v107, %v373
  %v375 = vpop.f32.mrb[0].mxu0
  %v376 = vadd.f32 %v111, %v375
  %377 = vmatprep.mubr.f32.mxu0 0.0
  %378 = vmatmul.mubr.f32.gmra.mrb[0].mxu0 %v20
  %v379 = vpop.f32.mrb[0].mxu0
  %v380 = vadd.f32 %v107, %v379
  %v381 = vpop.f32.mrb[0].mxu0
  %v382 = vadd.f32 %v111, %v381
  %383 = vmatprep.mubr.f32.mxu0 0.0
  %384 = vmatmul.mubr.f32.gmra.mrb[0].mxu0 %v21
  %v385 = vpop.f32.mrb[0].mxu0
  %v386 = vadd.f32 %v107, %v385
  %v387 = vpop.f32.mrb[0].mxu0
  %v388 = vadd.f32 %v111, %v387
  %389 = vmatprep.mubr.f32.mxu0 0.0
  %390 = vmatmul.mubr.f32.gmra.mrb[0].mxu0 %v22
  %v391 = vpop.f32.mrb[0].mxu0
  %v392 = vadd.f32 %v107, %v391
  %v393 = vpop.f32.mrb[0].mxu0
  %v394 = vadd.f32 %v111, %v393
  %395 = vmatprep.mubr.f32.mxu0 0.0
  %396 = vmatmul.mubr.f32.gmra.mrb[0].mxu0 %v23
  %v397 = vpop.f32.mrb[0].mxu0
  %v398 = vadd.f32 %v107, %v397
  %v399 = vpop.f32.mrb[0].mxu0
  %v400 = vadd.f32 %v111, %v399
  %401 = vmatprep.mubr.f32.mxu0 0.0
  %402 = vmatmul.mubr.f32.gmra.mrb[0].mxu0 %v24
  %v403 = vpop.f32.mrb[0].mxu0
  %v404 = vadd.f32 %v107, %v403
  %v405 = vpop.f32.mrb[0].mxu0
  %v406 = vadd.f32 %v111, %v405
  %407 = vmatprep.mubr.f32.mxu0 0.0
  %408 = vmatmul.mubr.f32.gmra.mrb[0].mxu0 %v25
  %v409 = vpop.f32.mrb[0].mxu0
  %v410 = vadd.f32 %v107, %v409
  %v411 = vpop.f32.mrb[0].mxu0
  %v412 = vadd.f32 %v111, %v411
  %413 = vmatprep.mubr.f32.mxu0 0.0
  %414 = vmatmul.mubr.f32.gmra.mrb[0].mxu0 %v26
  %v415 = vpop.f32.mrb[0].mxu0
  %v416 = vadd.f32 %v107, %v415
  %v417 = vpop.f32.mrb[0].mxu0
  %v418 = vadd.f32 %v111, %v417
  %419 = vmatprep.mubr.f32.mxu0 0.0
  %420 = vmatmul.mubr.f32.gmra.mrb[0].mxu0 %v27
  %v421 = vpop.f32.mrb[0].mxu0
  %v422 = vadd.f32 %v107, %v421
  %v423 = vpop.f32.mrb[0].mxu0
  %v424 = vadd.f32 %v111, %v423
  %425 = vmatprep.mubr.f32.mxu0 0.0
  %426 = vmatmul.mubr.f32.gmra.mrb[0].mxu0 %v28
  %v427 = vpop.f32.mrb[0].mxu0
  %v428 = vadd.f32 %v107, %v427
  %v429 = vpop.f32.mrb[0].mxu0
  %v430 = vadd.f32 %v111, %v429
  %431 = vmatprep.mubr.f32.mxu0 0.0
  %432 = vmatmul.mubr.f32.gmra.mrb[0].mxu0 %v29
  %v433 = vpop.f32.mrb[0].mxu0
  %v434 = vadd.f32 %v107, %v433
  %v435 = vpop.f32.mrb[0].mxu0
  %v436 = vadd.f32 %v111, %v435
  %437 = vdwg.mxu0
  %438 = vst [vmem:[%s3] sm:$0xff] %v183
  %439 = vst [vmem:[%s3 + $0x8] sm:$0xff] %v185
  %440 = vst [vmem:[%s3 + $0x10] sm:$0xff] %v344
  %441 = vst [vmem:[%s3 + $0x18] sm:$0xff] %v346
  %442 = vst [vmem:[%s3 + $0x20] sm:$0xff] %v189
  %443 = vst [vmem:[%s3 + $0x28] sm:$0xff] %v191
  %444 = vst [vmem:[%s3 + $0x30] sm:$0xff] %v350
  %445 = vst [vmem:[%s3 + $0x38] sm:$0xff] %v352
  %446 = vst [vmem:[%s3 + $0x40] sm:$0xff] %v195
  %447 = vst [vmem:[%s3 + $0x48] sm:$0xff] %v197
  %448 = vst [vmem:[%s3 + $0x50] sm:$0xff] %v356
  %449 = vst [vmem:[%s3 + $0x58] sm:$0xff] %v358
  %450 = vst [vmem:[%s3 + $0x60] sm:$0xff] %v201
  %451 = vst [vmem:[%s3 + $0x68] sm:$0xff] %v203
  %452 = vst [vmem:[%s3 + $0x70] sm:$0xff] %v362
  %453 = vst [vmem:[%s3 + $0x78] sm:$0xff] %v364
  %454 = vst [vmem:[%s3 + $0x80] sm:$0xff] %v207
  %455 = vst [vmem:[%s3 + $0x88] sm:$0xff] %v209
  %456 = vst [vmem:[%s3 + $0x90] sm:$0xff] %v368
  %457 = vst [vmem:[%s3 + $0x98] sm:$0xff] %v370
  %458 = vst [vmem:[%s3 + $0xa0] sm:$0xff] %v213
  %459 = vst [vmem:[%s3 + $0xa8] sm:$0xff] %v215
  %460 = vst [vmem:[%s3 + $0xb0] sm:$0xff] %v374
  %461 = vst [vmem:[%s3 + $0xb8] sm:$0xff] %v376
  %462 = vst [vmem:[%s3 + $0xc0] sm:$0xff] %v219
  %463 = vst [vmem:[%s3 + $0xc8] sm:$0xff] %v221
  %464 = vst [vmem:[%s3 + $0xd0] sm:$0xff] %v380
  %465 = vst [vmem:[%s3 + $0xd8] sm:$0xff] %v382
  %466 = vst [vmem:[%s3 + $0xe0] sm:$0xff] %v225
  %467 = vst [vmem:[%s3 + $0xe8] sm:$0xff] %v227
  %468 = vst [vmem:[%s3 + $0xf0] sm:$0xff] %v386
  %469 = vst [vmem:[%s3 + $0xf8] sm:$0xff] %v388
  %470 = vst [vmem:[%s3 + $0x100] sm:$0xff] %v231
  %471 = vst [vmem:[%s3 + $0x108] sm:$0xff] %v233
  %472 = vst [vmem:[%s3 + $0x110] sm:$0xff] %v392
  %473 = vst [vmem:[%s3 + $0x118] sm:$0xff] %v394
  %474 = vst [vmem:[%s3 + $0x120] sm:$0xff] %v237
  %475 = vst [vmem:[%s3 + $0x128] sm:$0xff] %v239
  %476 = vst [vmem:[%s3 + $0x130] sm:$0xff] %v398
  %477 = vst [vmem:[%s3 + $0x138] sm:$0xff] %v400
  %478 = vst [vmem:[%s3 + $0x140] sm:$0xff] %v243
  %479 = vst [vmem:[%s3 + $0x148] sm:$0xff] %v245
  %480 = vst [vmem:[%s3 + $0x150] sm:$0xff] %v404
  %481 = vst [vmem:[%s3 + $0x158] sm:$0xff] %v406
  %482 = vst [vmem:[%s3 + $0x160] sm:$0xff] %v249
  %483 = vst [vmem:[%s3 + $0x168] sm:$0xff] %v251
  %484 = vst [vmem:[%s3 + $0x170] sm:$0xff] %v410
  %485 = vst [vmem:[%s3 + $0x178] sm:$0xff] %v412
  %486 = vst [vmem:[%s3 + $0x180] sm:$0xff] %v255
  %487 = vst [vmem:[%s3 + $0x188] sm:$0xff] %v257
  %488 = vst [vmem:[%s3 + $0x190] sm:$0xff] %v416
  %489 = vst [vmem:[%s3 + $0x198] sm:$0xff] %v418
  %490 = vst [vmem:[%s3 + $0x1a0] sm:$0xff] %v261
  %491 = vst [vmem:[%s3 + $0x1a8] sm:$0xff] %v263
  %492 = vst [vmem:[%s3 + $0x1b0] sm:$0xff] %v422
  %493 = vst [vmem:[%s3 + $0x1b8] sm:$0xff] %v424
  %494 = vst [vmem:[%s3 + $0x1c0] sm:$0xff] %v267
  %495 = vst [vmem:[%s3 + $0x1c8] sm:$0xff] %v269
  %496 = vst [vmem:[%s3 + $0x1d0] sm:$0xff] %v428
  %497 = vst [vmem:[%s3 + $0x1d8] sm:$0xff] %v430
  %498 = vst [vmem:[%s3 + $0x1e0] sm:$0xff] %v273
  %499 = vst [vmem:[%s3 + $0x1e8] sm:$0xff] %v275
  %500 = vst [vmem:[%s3 + $0x1f0] sm:$0xff] %v434
  %501 = vst [vmem:[%s3 + $0x1f8] sm:$0xff] %v436
  // Predicated region
  $region14: #{generator_forward.8} parent=0 // pred_check
    _
  $region15: #{generator_forward.8} parent=0 // pred_check_branch
    %503 = sbr.rel (0) target = $region17
  $region16: #{generator_forward.8} parent=0 // pred_region
    _
  $region17: #{generator_forward.8} parent=0 // pred_fallthru
    _
  // Predicated region
  $region18: #{generator_forward.8} parent=0 // pred_check
    _
  $region19: #{generator_forward.8} parent=0 // pred_check_branch
    %505 = sbr.rel (0) target = $region21
  $region20: #{generator_forward.8} parent=0 // pred_region
    _
  $region21: #{generator_forward.8} parent=0 // pred_fallthru
    _

// kernel: generator_forward.9
$region0: #{generator_forward.9}
  #allocation0 [shape = 'u32[]', space=smem, size = 0x4, offset = 0x4, fixed_abs, tag = 'smem constant byte address 0x4 - core index']
  #allocation1 [shape = 'u32[144,128]{1,0:T(1,128)}', space=vmem, size = 0x12000, scoped, tag = 'internal scratch']
  #allocation2 [shape = 'f32[8,128]{1,0:T(8,128)}', space=vmem, size = 0x1000, scoped, tag = 'scratch operand']
  #allocation3 [shape = 'f32[8,128]{1,0:T(8,128)}', space=vmem, size = 0x1000, scoped, tag = 'scratch operand']
  #allocation4 [shape = 'f32[8,128]{1,0:T(8,128)}', space=vmem, size = 0x1000, scoped, tag = 'scratch operand']
  #allocation5 [shape = 'f32[8,128]{1,0:T(8,128)}', space=vmem, size = 0x1000, scoped, tag = 'scratch operand']
  #allocation6 [shape = 's32[1]{0:T(128)S(6)}', space=smem, size = 0x200, scoped, tag = 'scoped memory for generator_forward.9']
  #allocation7 [shape = 'f32[1,1]{1,0:T(1,128)S(1)}', space=vmem, size = 0x200, scoped, tag = 'scoped memory for generator_forward.9']
  %s0 = inlined_call_operand.<no memory space> [shape: s32[1], index: 0, kind: input, shape index: {}]
  %s1 = inlined_call_operand.vmem [shape: f32[8,8,512], index: 1, kind: input, shape index: {}]
  %s2 = inlined_call_operand.vmem [shape: f32[8,512], index: 2, kind: input, shape index: {}]
  %s3 = inlined_call_operand.vmem [shape: f32[8,8,128], index: 3, kind: input, shape index: {}]
  %s4 = inlined_call_operand.vmem [shape: f32[8,8,128], index: 4, kind: input, shape index: {}]
  %s5 = inlined_call_operand.vmem [shape: f32[8,8], index: 5, kind: input, shape index: {}]
  %s6 = inlined_call_operand.vmem [shape: f32[256,512], index: 6, kind: input, shape index: {}]
  %s7 = inlined_call_operand.vmem [shape: f32[384,512], index: 7, kind: input, shape index: {}]
  %s8 = inlined_call_operand.vmem [shape: f32[1,512], index: 8, kind: input, shape index: {}]
  %s9 = inlined_call_operand.vmem [shape: f32[128,128], index: 9, kind: input, shape index: {}]
  %s10 = inlined_call_operand.vmem [shape: f32[1,128], index: 10, kind: input, shape index: {}]
  %s11 = inlined_call_operand.vmem [shape: f32[1,128], index: 11, kind: input, shape index: {}]
  %s12 = inlined_call_operand.<no memory space> [shape: f32[1,1], index: 12, kind: input, shape index: {}]
  %s13 = inlined_call_operand.vmem [shape: f32[128,128], index: 13, kind: input, shape index: {}]
  %s14 = inlined_call_operand.vmem [shape: f32[1,128], index: 14, kind: input, shape index: {}]
  %s15 = inlined_call_operand.vmem [shape: f32[8,8,128], index: 15, kind: output, shape index: {}]
  %s16 = sld [smem:[#allocation0]]
  $region77: #{generator_forward.9} parent=0
    _
  %s18 = ssub.s32 1, %s16
  %s19 = scalar_select 0, %s18, %s16
  %20 = sst [smem:[#allocation6]] %s0
  %v21 = vstv %s12
  %22 = vst [vmem:[#allocation7] sm:$0x1] %v21
  // Predicated region
  $region2: #{generator_forward.9} parent=0 // pred_check
    _
  $region3: #{generator_forward.9} parent=0 // pred_check_branch
    %24 = sbr.rel (0) target = $region5
  $region4: #{generator_forward.9} parent=0 // pred_region
    _
  $region5: #{generator_forward.9} parent=0 // pred_fallthru
    _
  // Predicated region
  $region6: #{generator_forward.9} parent=0 // pred_check
    _
  $region7: #{generator_forward.9} parent=0 // pred_check_branch
    %26 = sbr.rel (0) target = $region9
  $region8: #{generator_forward.9} parent=0 // pred_region
    _
  $region9: #{generator_forward.9} parent=0 // pred_fallthru
    _
  // Predicated region
  $region10: #{generator_forward.9} parent=0 // pred_check
    _
  $region11: #{generator_forward.9} parent=0 // pred_check_branch
    %28 = sbr.rel (0) target = $region13
  $region12: #{generator_forward.9} parent=0 // pred_region
    _
  $region13: #{generator_forward.9} parent=0 // pred_fallthru
    _
  // Predicated region
  $region14: #{generator_forward.9} parent=0 // pred_check
    _
  $region15: #{generator_forward.9} parent=0 // pred_check_branch
    %30 = sbr.rel (0) target = $region17
  $region16: #{generator_forward.9} parent=0 // pred_region
    _
  $region17: #{generator_forward.9} parent=0 // pred_fallthru
    _
  // Predicated region
  $region18: #{generator_forward.9} parent=0 // pred_check
    _
  $region19: #{generator_forward.9} parent=0 // pred_check_branch
    %32 = sbr.rel (0) target = $region21
  $region20: #{generator_forward.9} parent=0 // pred_region
    _
  $region21: #{generator_forward.9} parent=0 // pred_fallthru
    _
  // Predicated region
  $region22: #{generator_forward.9} parent=0 // pred_check
    _
  $region23: #{generator_forward.9} parent=0 // pred_check_branch
    %34 = sbr.rel (0) target = $region25
  $region24: #{generator_forward.9} parent=0 // pred_region
    _
  $region25: #{generator_forward.9} parent=0 // pred_fallthru
    _
  // Predicated region
  $region26: #{generator_forward.9} parent=0 // pred_check
    _
  $region27: #{generator_forward.9} parent=0 // pred_check_branch
    %36 = sbr.rel (0) target = $region29
  $region28: #{generator_forward.9} parent=0 // pred_region
    _
  $region29: #{generator_forward.9} parent=0 // pred_fallthru
    _
  // Predicated region
  $region30: #{generator_forward.9} parent=0 // pred_check
    _
  $region31: #{generator_forward.9} parent=0 // pred_check_branch
    %38 = sbr.rel (0) target = $region33
  $region32: #{generator_forward.9} parent=0 // pred_region
    _
  $region33: #{generator_forward.9} parent=0 // pred_fallthru
    _
  // Predicated region
  $region34: #{generator_forward.9} parent=0 // pred_check
    _
  $region35: #{generator_forward.9} parent=0 // pred_check_branch
    %40 = sbr.rel (0) target = $region37
  $region36: #{generator_forward.9} parent=0 // pred_region
    _
  $region37: #{generator_forward.9} parent=0 // pred_fallthru
    _
  // Predicated region
  $region38: #{generator_forward.9} parent=0 // pred_check
    _
  $region39: #{generator_forward.9} parent=0 // pred_check_branch
    %42 = sbr.rel (0) target = $region41
  $region40: #{generator_forward.9} parent=0 // pred_region
    _
  $region41: #{generator_forward.9} parent=0 // pred_fallthru
    _
  // Predicated region
  $region42: #{generator_forward.9} parent=0 // pred_check
    _
  $region43: #{generator_forward.9} parent=0 // pred_check_branch
    %44 = sbr.rel (0) target = $region45
  $region44: #{generator_forward.9} parent=0 // pred_region
    _
  $region45: #{generator_forward.9} parent=0 // pred_fallthru
    _
  // Predicated region
  $region46: #{generator_forward.9} parent=0 // pred_check
    _
  $region47: #{generator_forward.9} parent=0 // pred_check_branch
    %46 = sbr.rel (0) target = $region49
  $region48: #{generator_forward.9} parent=0 // pred_region
    _
  $region49: #{generator_forward.9} parent=0 // pred_fallthru
    _
  // Predicated region
  $region50: #{generator_forward.9} parent=0 // pred_check
    _
  $region51: #{generator_forward.9} parent=0 // pred_check_branch
    %48 = sbr.rel (0) target = $region53
  $region52: #{generator_forward.9} parent=0 // pred_region
    _
  $region53: #{generator_forward.9} parent=0 // pred_fallthru
    _
  // Predicated region
  $region54: #{generator_forward.9} parent=0 // pred_check
    _
  $region55: #{generator_forward.9} parent=0 // pred_check_branch
    %50 = sbr.rel (0) target = $region57
  $region56: #{generator_forward.9} parent=0 // pred_region
    _
  $region57: #{generator_forward.9} parent=0 // pred_fallthru
    _
  // Predicated region
  $region58: #{generator_forward.9} parent=0 // pred_check
    _
  $region59: #{generator_forward.9} parent=0 // pred_check_branch
    %52 = sbr.rel (0) target = $region61
  $region60: #{generator_forward.9} parent=0 // pred_region
    _
  $region61: #{generator_forward.9} parent=0 // pred_fallthru
    _
  %53 = vst [vmem:[%s15] sm:$0xff] 0.0
  %54 = vst [vmem:[%s15 + $0x8] sm:$0xff] 0.0
  %55 = vst [vmem:[%s15 + $0x10] sm:$0xff] 0.0
  %56 = vst [vmem:[%s15 + $0x18] sm:$0xff] 0.0
  %57 = vst [vmem:[%s15 + $0x20] sm:$0xff] 0.0
  %58 = vst [vmem:[%s15 + $0x28] sm:$0xff] 0.0
  %59 = vst [vmem:[%s15 + $0x30] sm:$0xff] 0.0
  %60 = vst [vmem:[%s15 + $0x38] sm:$0xff] 0.0
  %61 = vst [vmem:[#allocation2] sm:$0xff] 0.0
  %62 = vst [vmem:[#allocation3] sm:$0xff] 0.0
  %63 = vst [vmem:[#allocation4] sm:$0xff] 0.0
  %64 = vst [vmem:[#allocation5] sm:$0xff] 0.0
  %s65 = sld [smem:[#allocation6]]
  // While loop
  $region62: #{generator_forward.9} parent=0 // loop_pre_header
    _
  $region63: #{generator_forward.9} parent=0 // loop_header
    %s67 = sphi 0, %s69
    %p68 = scmp.ge.s32.totalorder %s67, %s65
  $region64: #{generator_forward.9} parent=0 // loop_header_branch
    %71 = sbr.rel (%p68) target = $region68
  $region65: #{generator_forward.9} parent=0 // loop_body
    %v72 = vld [vmem:[#allocation2] sm:$0xff]
    %v73 = vld [vmem:[#allocation3] sm:$0xff]
    %v74 = vld [vmem:[#allocation4] sm:$0xff]
    %v75 = vld [vmem:[#allocation5] sm:$0xff]
    %v76 = vld [vmem:[%s6] sm:$0xff]
    %v77 = vld [vmem:[%s6 + $0x8] sm:$0xff]
    %v78 = vld [vmem:[%s6 + $0x10] sm:$0xff]
    %v79 = vld [vmem:[%s6 + $0x18] sm:$0xff]
    %v80 = vld [vmem:[%s6 + $0x20] sm:$0xff]
    %v81 = vld [vmem:[%s6 + $0x28] sm:$0xff]
    %v82 = vld [vmem:[%s6 + $0x30] sm:$0xff]
    %v83 = vld [vmem:[%s6 + $0x38] sm:$0xff]
    %v84 = vld [vmem:[%s6 + $0x40] sm:$0xff]
    %v85 = vld [vmem:[%s6 + $0x48] sm:$0xff]
    %v86 = vld [vmem:[%s6 + $0x50] sm:$0xff]
    %v87 = vld [vmem:[%s6 + $0x58] sm:$0xff]
    %v88 = vld [vmem:[%s6 + $0x60] sm:$0xff]
    %v89 = vld [vmem:[%s6 + $0x68] sm:$0xff]
    %v90 = vld [vmem:[%s6 + $0x70] sm:$0xff]
    %v91 = vld [vmem:[%s6 + $0x78] sm:$0xff]
    %v92 = vld [vmem:[%s6 + $0x80] sm:$0xff]
    %v93 = vld [vmem:[%s6 + $0x88] sm:$0xff]
    %v94 = vld [vmem:[%s6 + $0x90] sm:$0xff]
    %v95 = vld [vmem:[%s6 + $0x98] sm:$0xff]
    %v96 = vld [vmem:[%s6 + $0xa0] sm:$0xff]
    %v97 = vld [vmem:[%s6 + $0xa8] sm:$0xff]
    %v98 = vld [vmem:[%s6 + $0xb0] sm:$0xff]
    %v99 = vld [vmem:[%s6 + $0xb8] sm:$0xff]
    %v100 = vld [vmem:[%s6 + $0xc0] sm:$0xff]
    %v101 = vld [vmem:[%s6 + $0xc8] sm:$0xff]
    %v102 = vld [vmem:[%s6 + $0xd0] sm:$0xff]
    %v103 = vld [vmem:[%s6 + $0xd8] sm:$0xff]
    %v104 = vld [vmem:[%s6 + $0xe0] sm:$0xff]
    %v105 = vld [vmem:[%s6 + $0xe8] sm:$0xff]
    %v106 = vld [vmem:[%s6 + $0xf0] sm:$0xff]
    %v107 = vld [vmem:[%s6 + $0xf8] sm:$0xff]
    %v108 = vld [vmem:[%s6 + $0x100] sm:$0xff]
    %v109 = vld [vmem:[%s6 + $0x108] sm:$0xff]
    %v110 = vld [vmem:[%s6 + $0x110] sm:$0xff]
    %v111 = vld [vmem:[%s6 + $0x118] sm:$0xff]
    %v112 = vld [vmem:[%s6 + $0x120] sm:$0xff]
    %v113 = vld [vmem:[%s6 + $0x128] sm:$0xff]
    %v114 = vld [vmem:[%s6 + $0x130] sm:$0xff]
    %v115 = vld [vmem:[%s6 + $0x138] sm:$0xff]
    %v116 = vld [vmem:[%s6 + $0x140] sm:$0xff]
    %v117 = vld [vmem:[%s6 + $0x148] sm:$0xff]
    %v118 = vld [vmem:[%s6 + $0x150] sm:$0xff]
    %v119 = vld [vmem:[%s6 + $0x158] sm:$0xff]
    %v120 = vld [vmem:[%s6 + $0x160] sm:$0xff]
    %v121 = vld [vmem:[%s6 + $0x168] sm:$0xff]
    %v122 = vld [vmem:[%s6 + $0x170] sm:$0xff]
    %v123 = vld [vmem:[%s6 + $0x178] sm:$0xff]
    %v124 = vld [vmem:[%s6 + $0x180] sm:$0xff]
    %v125 = vld [vmem:[%s6 + $0x188] sm:$0xff]
    %v126 = vld [vmem:[%s6 + $0x190] sm:$0xff]
    %v127 = vld [vmem:[%s6 + $0x198] sm:$0xff]
    %v128 = vld [vmem:[%s6 + $0x1a0] sm:$0xff]
    %v129 = vld [vmem:[%s6 + $0x1a8] sm:$0xff]
    %v130 = vld [vmem:[%s6 + $0x1b0] sm:$0xff]
    %v131 = vld [vmem:[%s6 + $0x1b8] sm:$0xff]
    %v132 = vld [vmem:[%s6 + $0x1c0] sm:$0xff]
    %v133 = vld [vmem:[%s6 + $0x1c8] sm:$0xff]
    %v134 = vld [vmem:[%s6 + $0x1d0] sm:$0xff]
    %v135 = vld [vmem:[%s6 + $0x1d8] sm:$0xff]
    %v136 = vld [vmem:[%s6 + $0x1e0] sm:$0xff]
    %v137 = vld [vmem:[%s6 + $0x1e8] sm:$0xff]
    %v138 = vld [vmem:[%s6 + $0x1f0] sm:$0xff]
    %v139 = vld [vmem:[%s6 + $0x1f8] sm:$0xff]
    %v140 = vld [vmem:[%s6 + $0x200] sm:$0xff]
    %v141 = vld [vmem:[%s6 + $0x208] sm:$0xff]
    %v142 = vld [vmem:[%s6 + $0x210] sm:$0xff]
    %v143 = vld [vmem:[%s6 + $0x218] sm:$0xff]
    %v144 = vld [vmem:[%s6 + $0x220] sm:$0xff]
    %v145 = vld [vmem:[%s6 + $0x228] sm:$0xff]
    %v146 = vld [vmem:[%s6 + $0x230] sm:$0xff]
    %v147 = vld [vmem:[%s6 + $0x238] sm:$0xff]
    %v148 = vld [vmem:[%s6 + $0x240] sm:$0xff]
    %v149 = vld [vmem:[%s6 + $0x248] sm:$0xff]
    %v150 = vld [vmem:[%s6 + $0x250] sm:$0xff]
    %v151 = vld [vmem:[%s6 + $0x258] sm:$0xff]
    %v152 = vld [vmem:[%s6 + $0x260] sm:$0xff]
    %v153 = vld [vmem:[%s6 + $0x268] sm:$0xff]
    %v154 = vld [vmem:[%s6 + $0x270] sm:$0xff]
    %v155 = vld [vmem:[%s6 + $0x278] sm:$0xff]
    %v156 = vld [vmem:[%s6 + $0x280] sm:$0xff]
    %v157 = vld [vmem:[%s6 + $0x288] sm:$0xff]
    %v158 = vld [vmem:[%s6 + $0x290] sm:$0xff]
    %v159 = vld [vmem:[%s6 + $0x298] sm:$0xff]
    %v160 = vld [vmem:[%s6 + $0x2a0] sm:$0xff]
    %v161 = vld [vmem:[%s6 + $0x2a8] sm:$0xff]
    %v162 = vld [vmem:[%s6 + $0x2b0] sm:$0xff]
    %v163 = vld [vmem:[%s6 + $0x2b8] sm:$0xff]
    %v164 = vld [vmem:[%s6 + $0x2c0] sm:$0xff]
    %v165 = vld [vmem:[%s6 + $0x2c8] sm:$0xff]
    %v166 = vld [vmem:[%s6 + $0x2d0] sm:$0xff]
    %v167 = vld [vmem:[%s6 + $0x2d8] sm:$0xff]
    %v168 = vld [vmem:[%s6 + $0x2e0] sm:$0xff]
    %v169 = vld [vmem:[%s6 + $0x2e8] sm:$0xff]
    %v170 = vld [vmem:[%s6 + $0x2f0] sm:$0xff]
    %v171 = vld [vmem:[%s6 + $0x2f8] sm:$0xff]
    %v172 = vld [vmem:[%s6 + $0x300] sm:$0xff]
    %v173 = vld [vmem:[%s6 + $0x308] sm:$0xff]
    %v174 = vld [vmem:[%s6 + $0x310] sm:$0xff]
    %v175 = vld [vmem:[%s6 + $0x318] sm:$0xff]
    %v176 = vld [vmem:[%s6 + $0x320] sm:$0xff]
    %v177 = vld [vmem:[%s6 + $0x328] sm:$0xff]
    %v178 = vld [vmem:[%s6 + $0x330] sm:$0xff]
    %v179 = vld [vmem:[%s6 + $0x338] sm:$0xff]
    %v180 = vld [vmem:[%s6 + $0x340] sm:$0xff]
    %v181 = vld [vmem:[%s6 + $0x348] sm:$0xff]
    %v182 = vld [vmem:[%s6 + $0x350] sm:$0xff]
    %v183 = vld [vmem:[%s6 + $0x358] sm:$0xff]
    %v184 = vld [vmem:[%s6 + $0x360] sm:$0xff]
    %v185 = vld [vmem:[%s6 + $0x368] sm:$0xff]
    %v186 = vld [vmem:[%s6 + $0x370] sm:$0xff]
    %v187 = vld [vmem:[%s6 + $0x378] sm:$0xff]
    %v188 = vld [vmem:[%s6 + $0x380] sm:$0xff]
    %v189 = vld [vmem:[%s6 + $0x388] sm:$0xff]
    %v190 = vld [vmem:[%s6 + $0x390] sm:$0xff]
    %v191 = vld [vmem:[%s6 + $0x398] sm:$0xff]
    %v192 = vld [vmem:[%s6 + $0x3a0] sm:$0xff]
    %v193 = vld [vmem:[%s6 + $0x3a8] sm:$0xff]
    %v194 = vld [vmem:[%s6 + $0x3b0] sm:$0xff]
    %v195 = vld [vmem:[%s6 + $0x3b8] sm:$0xff]
    %v196 = vld [vmem:[%s6 + $0x3c0] sm:$0xff]
    %v197 = vld [vmem:[%s6 + $0x3c8] sm:$0xff]
    %v198 = vld [vmem:[%s6 + $0x3d0] sm:$0xff]
    %v199 = vld [vmem:[%s6 + $0x3d8] sm:$0xff]
    %v200 = vld [vmem:[%s6 + $0x3e0] sm:$0xff]
    %v201 = vld [vmem:[%s6 + $0x3e8] sm:$0xff]
    %v202 = vld [vmem:[%s6 + $0x3f0] sm:$0xff]
    %v203 = vld [vmem:[%s6 + $0x3f8] sm:$0xff]
    %v204 = vld [vmem:[%s2] sm:$0xff]
    %v205 = vld [vmem:[%s2 + $0x8] sm:$0xff]
    %v206 = vld [vmem:[%s2 + $0x10] sm:$0xff]
    %v207 = vld [vmem:[%s2 + $0x18] sm:$0xff]
    %208 = vmatprep.subr.mxu0 %v77
    %209 = vmatpush1.msra.mxu0 %v76
    %210 = vmatprep.subr.mxu0 %v81
    %211 = vmatpush1.msra.mxu0 %v80
    %212 = vmatprep.subr.mxu0 %v85
    %213 = vmatpush1.msra.mxu0 %v84
    %214 = vmatprep.subr.mxu0 %v89
    %215 = vmatpush1.msra.mxu0 %v88
    %216 = vmatprep.subr.mxu0 %v93
    %217 = vmatpush1.msra.mxu0 %v92
    %218 = vmatprep.subr.mxu0 %v97
    %219 = vmatpush1.msra.mxu0 %v96
    %220 = vmatprep.subr.mxu0 %v101
    %221 = vmatpush1.msra.mxu0 %v100
    %222 = vmatprep.subr.mxu0 %v105
    %223 = vmatpush1.msra.mxu0 %v104
    %224 = vmatprep.subr.mxu0 %v109
    %225 = vmatpush1.msra.mxu0 %v108
    %226 = vmatprep.subr.mxu0 %v113
    %227 = vmatpush1.msra.mxu0 %v112
    %228 = vmatprep.subr.mxu0 %v117
    %229 = vmatpush1.msra.mxu0 %v116
    %230 = vmatprep.subr.mxu0 %v121
    %231 = vmatpush1.msra.mxu0 %v120
    %232 = vmatprep.subr.mxu0 %v125
    %233 = vmatpush1.msra.mxu0 %v124
    %234 = vmatprep.subr.mxu0 %v129
    %235 = vmatpush1.msra.mxu0 %v128
    %236 = vmatprep.subr.mxu0 %v133
    %237 = vmatpush1.msra.mxu0 %v132
    %238 = vmatprep.subr.mxu0 %v137
    %239 = vmatpush1.msra.mxu0 %v136
    %240 = vmatprep.subr.mxu0 %v141
    %241 = vmatpush1.msra.mxu0 %v140
    %242 = vmatprep.subr.mxu0 %v145
    %243 = vmatpush1.msra.mxu0 %v144
    %244 = vmatprep.subr.mxu0 %v149
    %245 = vmatpush1.msra.mxu0 %v148
    %246 = vmatprep.subr.mxu0 %v153
    %247 = vmatpush1.msra.mxu0 %v152
    %248 = vmatprep.subr.mxu0 %v157
    %249 = vmatpush1.msra.mxu0 %v156
    %250 = vmatprep.subr.mxu0 %v161
    %251 = vmatpush1.msra.mxu0 %v160
    %252 = vmatprep.subr.mxu0 %v165
    %253 = vmatpush1.msra.mxu0 %v164
    %254 = vmatprep.subr.mxu0 %v169
    %255 = vmatpush1.msra.mxu0 %v168
    %256 = vmatprep.subr.mxu0 %v173
    %257 = vmatpush1.msra.mxu0 %v172
    %258 = vmatprep.subr.mxu0 %v177
    %259 = vmatpush1.msra.mxu0 %v176
    %260 = vmatprep.subr.mxu0 %v181
    %261 = vmatpush1.msra.mxu0 %v180
    %262 = vmatprep.subr.mxu0 %v185
    %263 = vmatpush1.msra.mxu0 %v184
    %264 = vmatprep.subr.mxu0 %v189
    %265 = vmatpush1.msra.mxu0 %v188
    %266 = vmatprep.subr.mxu0 %v193
    %267 = vmatpush1.msra.mxu0 %v192
    %268 = vmatprep.subr.mxu0 %v197
    %269 = vmatpush1.msra.mxu0 %v196
    %270 = vmatprep.subr.mxu0 %v201
    %271 = vmatpush1.msra.mxu0 %v200
    %272 = vmatprep.mubr.f32.mxu0 %v72
    %273 = vmatmul.mubr.f32.gmra.mrb[0].mxu0 %v74
    %v274 = vpop.f32.mrb[0].mxu0
    %v275 = vadd.f32 %v204, %v274
    %v276 = vpop.f32.mrb[0].mxu0
    %v277 = vadd.f32 %v205, %v276
    %278 = vdwg.mxu0
    %279 = vmatprep.subr.mxu0 %v79
    %280 = vmatpush1.msra.mxu0 %v78
    %281 = vmatprep.subr.mxu0 %v83
    %282 = vmatpush1.msra.mxu0 %v82
    %283 = vmatprep.subr.mxu0 %v87
    %284 = vmatpush1.msra.mxu0 %v86
    %285 = vmatprep.subr.mxu0 %v91
    %286 = vmatpush1.msra.mxu0 %v90
    %287 = vmatprep.subr.mxu0 %v95
    %288 = vmatpush1.msra.mxu0 %v94
    %289 = vmatprep.subr.mxu0 %v99
    %290 = vmatpush1.msra.mxu0 %v98
    %291 = vmatprep.subr.mxu0 %v103
    %292 = vmatpush1.msra.mxu0 %v102
    %293 = vmatprep.subr.mxu0 %v107
    %294 = vmatpush1.msra.mxu0 %v106
    %295 = vmatprep.subr.mxu0 %v111
    %296 = vmatpush1.msra.mxu0 %v110
    %297 = vmatprep.subr.mxu0 %v115
    %298 = vmatpush1.msra.mxu0 %v114
    %299 = vmatprep.subr.mxu0 %v119
    %300 = vmatpush1.msra.mxu0 %v118
    %301 = vmatprep.subr.mxu0 %v123
    %302 = vmatpush1.msra.mxu0 %v122
    %303 = vmatprep.subr.mxu0 %v127
    %304 = vmatpush1.msra.mxu0 %v126
    %305 = vmatprep.subr.mxu0 %v131
    %306 = vmatpush1.msra.mxu0 %v130
    %307 = vmatprep.subr.mxu0 %v135
    %308 = vmatpush1.msra.mxu0 %v134
    %309 = vmatprep.subr.mxu0 %v139
    %310 = vmatpush1.msra.mxu0 %v138
    %311 = vmatprep.subr.mxu0 %v143
    %312 = vmatpush1.msra.mxu0 %v142
    %313 = vmatprep.subr.mxu0 %v147
    %314 = vmatpush1.msra.mxu0 %v146
    %315 = vmatprep.subr.mxu0 %v151
    %316 = vmatpush1.msra.mxu0 %v150
    %317 = vmatprep.subr.mxu0 %v155
    %318 = vmatpush1.msra.mxu0 %v154
    %319 = vmatprep.subr.mxu0 %v159
    %320 = vmatpush1.msra.mxu0 %v158
    %321 = vmatprep.subr.mxu0 %v163
    %322 = vmatpush1.msra.mxu0 %v162
    %323 = vmatprep.subr.mxu0 %v167
    %324 = vmatpush1.msra.mxu0 %v166
    %325 = vmatprep.subr.mxu0 %v171
    %326 = vmatpush1.msra.mxu0 %v170
    %327 = vmatprep.subr.mxu0 %v175
    %328 = vmatpush1.msra.mxu0 %v174
    %329 = vmatprep.subr.mxu0 %v179
    %330 = vmatpush1.msra.mxu0 %v178
    %331 = vmatprep.subr.mxu0 %v183
    %332 = vmatpush1.msra.mxu0 %v182
    %333 = vmatprep.subr.mxu0 %v187
    %334 = vmatpush1.msra.mxu0 %v186
    %335 = vmatprep.subr.mxu0 %v191
    %336 = vmatpush1.msra.mxu0 %v190
    %337 = vmatprep.subr.mxu0 %v195
    %338 = vmatpush1.msra.mxu0 %v194
    %339 = vmatprep.subr.mxu0 %v199
    %340 = vmatpush1.msra.mxu0 %v198
    %341 = vmatprep.subr.mxu0 %v203
    %342 = vmatpush1.msra.mxu0 %v202
    %343 = vmatprep.mubr.f32.mxu0 %v72
    %344 = vmatmul.mubr.f32.gmra.mrb[0].mxu0 %v74
    %v345 = vpop.f32.mrb[0].mxu0
    %v346 = vadd.f32 %v206, %v345
    %v347 = vpop.f32.mrb[0].mxu0
    %v348 = vadd.f32 %v207, %v347
    %349 = vdwg.mxu0
    %s350 = smul.u32 %s67, 4
    %s351 = smul.addr %s350, 8
    %s352 = scalar_lea.vmem %s1, %s351
    %v353 = vld [vmem:[%s352] sm:$0xff]
    %v354 = vld [vmem:[%s352 + $0x8] sm:$0xff]
    %v355 = vld [vmem:[%s352 + $0x10] sm:$0xff]
    %v356 = vld [vmem:[%s352 + $0x18] sm:$0xff]
    %v357 = vadd.f32 %v275, %v353
    %v358 = vadd.f32 %v277, %v354
    %v359 = vadd.f32 %v346, %v355
    %v360 = vadd.f32 %v348, %v356
    %v361 = vxor.u32 %v357, 2147483648
    %v362 = vmul.f32 %v361, 1.442695
    %v363 = vpow.pop %v362
    %v364 = vadd.f32 %v363, 1.0
    %v365 = vrcp.pop %v364
    %v366 = vmul.f32 1.0, %v365
    %v367 = vxor.u32 %v358, 2147483648
    %v368 = vmul.f32 %v367, 1.442695
    %v369 = vpow.pop %v368
    %v370 = vadd.f32 %v369, 1.0
    %v371 = vrcp.pop %v370
    %v372 = vmul.f32 1.0, %v371
    %v373 = vtanh.pop %v359
    %v374 = vxor.u32 %v360, 2147483648
    %v375 = vmul.f32 %v374, 1.442695
    %v376 = vpow.pop %v375
    %v377 = vadd.f32 %v376, 1.0
    %v378 = vrcp.pop %v377
    %v379 = vmul.f32 1.0, %v378
    %v380 = vmul.f32 %v372, %v73
    %v381 = vmul.f32 %v366, %v373
    %v382 = vadd.f32 %v380, %v381
    %v383 = vtanh.pop %v382
    %v384 = vmul.f32 %v379, %v383
    %v385 = vld [vmem:[%s9] sm:$0xff]
    %v386 = vld [vmem:[%s9 + $0x8] sm:$0xff]
    %v387 = vld [vmem:[%s9 + $0x10] sm:$0xff]
    %v388 = vld [vmem:[%s9 + $0x18] sm:$0xff]
    %v389 = vld [vmem:[%s9 + $0x20] sm:$0xff]
    %v390 = vld [vmem:[%s9 + $0x28] sm:$0xff]
    %v391 = vld [vmem:[%s9 + $0x30] sm:$0xff]
    %v392 = vld [vmem:[%s9 + $0x38] sm:$0xff]
    %v393 = vld [vmem:[%s9 + $0x40] sm:$0xff]
    %v394 = vld [vmem:[%s9 + $0x48] sm:$0xff]
    %v395 = vld [vmem:[%s9 + $0x50] sm:$0xff]
    %v396 = vld [vmem:[%s9 + $0x58] sm:$0xff]
    %v397 = vld [vmem:[%s9 + $0x60] sm:$0xff]
    %v398 = vld [vmem:[%s9 + $0x68] sm:$0xff]
    %v399 = vld [vmem:[%s9 + $0x70] sm:$0xff]
    %v400 = vld [vmem:[%s9 + $0x78] sm:$0xff]
    %v401 = vld [vmem:[%s10] sm:$0x1]
    %v403 = vlaneseq
    %v404 = vshrl.u32 %v403, 7
    %v405 = vsub.s32 0, %v404
    %v406 = vrot.slane %v401, %v405
    %408 = vmatprep.subr.mxu0 0.0
    %409 = vmatpush1.msra.mxu0 %v385
    %410 = vmatprep.subr.mxu0 0.0
    %411 = vmatpush1.msra.mxu0 %v386
    %412 = vmatprep.subr.mxu0 0.0
    %413 = vmatpush1.msra.mxu0 %v387
    %414 = vmatprep.subr.mxu0 0.0
    %415 = vmatpush1.msra.mxu0 %v388
    %416 = vmatprep.subr.mxu0 0.0
    %417 = vmatpush1.msra.mxu0 %v389
    %418 = vmatprep.subr.mxu0 0.0
    %419 = vmatpush1.msra.mxu0 %v390
    %420 = vmatprep.subr.mxu0 0.0
    %421 = vmatpush1.msra.mxu0 %v391
    %422 = vmatprep.subr.mxu0 0.0
    %423 = vmatpush1.msra.mxu0 %v392
    %424 = vmatprep.subr.mxu0 0.0
    %425 = vmatpush1.msra.mxu0 %v393
    %426 = vmatprep.subr.mxu0 0.0
    %427 = vmatpush1.msra.mxu0 %v394
    %428 = vmatprep.subr.mxu0 0.0
    %429 = vmatpush1.msra.mxu0 %v395
    %430 = vmatprep.subr.mxu0 0.0
    %431 = vmatpush1.msra.mxu0 %v396
    %432 = vmatprep.subr.mxu0 0.0
    %433 = vmatpush1.msra.mxu0 %v397
    %434 = vmatprep.subr.mxu0 0.0
    %435 = vmatpush1.msra.mxu0 %v398
    %436 = vmatprep.subr.mxu0 0.0
    %437 = vmatpush1.msra.mxu0 %v399
    %438 = vmatprep.subr.mxu0 0.0
    %439 = vmatpush1.msra.mxu0 %v400
    %440 = vmatprep.subr.mxu0 0.0
    %441 = vmatpush1.msra.mxu0 0.0
    %442 = vmatprep.subr.mxu0 0.0
    %443 = vmatpush1.msra.mxu0 0.0
    %444 = vmatprep.subr.mxu0 0.0
    %445 = vmatpush1.msra.mxu0 0.0
    %446 = vmatprep.subr.mxu0 0.0
    %447 = vmatpush1.msra.mxu0 0.0
    %448 = vmatprep.subr.mxu0 0.0
    %449 = vmatpush1.msra.mxu0 0.0
    %450 = vmatprep.subr.mxu0 0.0
    %451 = vmatpush1.msra.mxu0 0.0
    %452 = vmatprep.subr.mxu0 0.0
    %453 = vmatpush1.msra.mxu0 0.0
    %454 = vmatprep.subr.mxu0 0.0
    %455 = vmatpush1.msra.mxu0 0.0
    %456 = vmatprep.subr.mxu0 0.0
    %457 = vmatpush1.msra.mxu0 0.0
    %458 = vmatprep.subr.mxu0 0.0
    %459 = vmatpush1.msra.mxu0 0.0
    %460 = vmatprep.subr.mxu0 0.0
    %461 = vmatpush1.msra.mxu0 0.0
    %462 = vmatprep.subr.mxu0 0.0
    %463 = vmatpush1.msra.mxu0 0.0
    %464 = vmatprep.subr.mxu0 0.0
    %465 = vmatpush1.msra.mxu0 0.0
    %466 = vmatprep.subr.mxu0 0.0
    %467 = vmatpush1.msra.mxu0 0.0
    %468 = vmatprep.subr.mxu0 0.0
    %469 = vmatpush1.msra.mxu0 0.0
    %470 = vmatprep.subr.mxu0 0.0
    %471 = vmatpush1.msra.mxu0 0.0
    %472 = vmatprep.mubr.f32.mxu0 0.0
    %473 = vmatmul.mubr.f32.gmra.mrb[0].mxu0 %v384
    %v474 = vpop.f32.mrb[0].mxu0
    %v475 = vadd.f32 %v406, %v474
    %v476 = vpop.f32.mrb[0].mxu0
    %477 = vdwg.mxu0
    %v478 = vld [vmem:[%s4] sm:$0xff]
    %v479 = vld [vmem:[%s4 + $0x8] sm:$0xff]
    %v480 = vld [vmem:[%s4 + $0x10] sm:$0xff]
    %v481 = vld [vmem:[%s4 + $0x18] sm:$0xff]
    %v482 = vld [vmem:[%s4 + $0x20] sm:$0xff]
    %v483 = vld [vmem:[%s4 + $0x28] sm:$0xff]
    %v484 = vld [vmem:[%s4 + $0x30] sm:$0xff]
    %v485 = vld [vmem:[%s4 + $0x38] sm:$0xff]
    %v487 = vcombine.high %v475, %v475
    %v489 = vunpack.c.l.s4 1966171168
    %v490 = vunpack.c.0.s8 %v489
    %v491 = vlaneseq
    %v492 = vshrl.u32 %v491, 7
    %v493 = vsub.s32 %v490, %v492
    %v494 = vrot.slane %v475, %v493
    %v496 = vunpack.c.l.s4 1966171168
    %v497 = vunpack.c.0.s8 %v496
    %v498 = vlaneseq
    %v499 = vshrl.u32 %v498, 7
    %v500 = vsub.s32 %v497, %v499
    %v501 = vrot.slane %v487, %v500
    %v502 = vcombine.high %v494, %v494
    %v503 = vcombine.high %v501, %v501
    %v505 = vunpack.c.l.s4 1966171168
    %v506 = vunpack.c.0.s8 %v505
    %v507 = vlaneseq
    %v508 = vshrl.u32 %v507, 7
    %v509 = vsub.s32 %v506, %v508
    %v510 = vrot.slane %v494, %v509
    %v512 = vunpack.c.l.s4 1966171168
    %v513 = vunpack.c.0.s8 %v512
    %v514 = vlaneseq
    %v515 = vshrl.u32 %v514, 7
    %v516 = vsub.s32 %v513, %v515
    %v517 = vrot.slane %v501, %v516
    %v519 = vunpack.c.l.s4 1966171168
    %v520 = vunpack.c.0.s8 %v519
    %v521 = vlaneseq
    %v522 = vshrl.u32 %v521, 7
    %v523 = vsub.s32 %v520, %v522
    %v524 = vrot.slane %v502, %v523
    %v526 = vunpack.c.l.s4 1966171168
    %v527 = vunpack.c.0.s8 %v526
    %v528 = vlaneseq
    %v529 = vshrl.u32 %v528, 7
    %v530 = vsub.s32 %v527, %v529
    %v531 = vrot.slane %v503, %v530
    %v532 = vcombine.high %v510, %v510
    %v533 = vcombine.high %v517, %v517
    %v534 = vcombine.high %v524, %v524
    %v535 = vcombine.high %v531, %v531
    %v536 = vlaneseq
    %v537 = vshrl.u32 %v536, 7
    %v538 = vsub.s32 0, %v537
    %v539 = vrot.slane %v510, %v538
    %v540 = vlaneseq
    %v541 = vshrl.u32 %v540, 7
    %v542 = vsub.s32 0, %v541
    %v543 = vrot.slane %v524, %v542
    %v544 = vlaneseq
    %v545 = vshrl.u32 %v544, 7
    %v546 = vsub.s32 0, %v545
    %v547 = vrot.slane %v532, %v546
    %v548 = vlaneseq
    %v549 = vshrl.u32 %v548, 7
    %v550 = vsub.s32 0, %v549
    %v551 = vrot.slane %v534, %v550
    %v552 = vlaneseq
    %v553 = vshrl.u32 %v552, 7
    %v554 = vsub.s32 0, %v553
    %v555 = vrot.slane %v517, %v554
    %v556 = vlaneseq
    %v557 = vshrl.u32 %v556, 7
    %v558 = vsub.s32 0, %v557
    %v559 = vrot.slane %v531, %v558
    %v560 = vlaneseq
    %v561 = vshrl.u32 %v560, 7
    %v562 = vsub.s32 0, %v561
    %v563 = vrot.slane %v533, %v562
    %v564 = vlaneseq
    %v565 = vshrl.u32 %v564, 7
    %v566 = vsub.s32 0, %v565
    %v567 = vrot.slane %v535, %v566
    %v576 = vadd.f32 %v478, %v539
    %v577 = vadd.f32 %v479, %v543
    %v578 = vadd.f32 %v480, %v547
    %v579 = vadd.f32 %v481, %v551
    %v580 = vadd.f32 %v482, %v555
    %v581 = vadd.f32 %v483, %v559
    %v582 = vadd.f32 %v484, %v563
    %v583 = vadd.f32 %v485, %v567
    %v584 = vtanh.pop %v576
    %v585 = vtanh.pop %v577
    %v586 = vtanh.pop %v578
    %v587 = vtanh.pop %v579
    %v588 = vtanh.pop %v580
    %v589 = vtanh.pop %v581
    %v590 = vtanh.pop %v582
    %v591 = vtanh.pop %v583
    %v592 = vld [vmem:[%s11] sm:$0x1]
    %v594 = vlaneseq
    %v595 = vshrl.u32 %v594, 7
    %v596 = vsub.s32 0, %v595
    %v597 = vrot.slane %v592, %v596
    %v599 = vmul.f32 %v584, %v597
    %v600 = vmul.f32 %v585, %v597
    %v601 = vmul.f32 %v586, %v597
    %v602 = vmul.f32 %v587, %v597
    %v603 = vmul.f32 %v588, %v597
    %v604 = vmul.f32 %v589, %v597
    %v605 = vmul.f32 %v590, %v597
    %v606 = vmul.f32 %v591, %v597
    %607 = vadd.xlane.f32.xlu0 %v599
    %v608 = vpop.xlane.xlu0 %607
    %609 = vadd.xlane.f32.xlu0 %v600
    %v610 = vpop.xlane.xlu0 %609
    %611 = vadd.xlane.f32.xlu0 %v601
    %v612 = vpop.xlane.xlu0 %611
    %613 = vadd.xlane.f32.xlu0 %v602
    %v614 = vpop.xlane.xlu0 %613
    %615 = vadd.xlane.f32.xlu0 %v603
    %v616 = vpop.xlane.xlu0 %615
    %617 = vadd.xlane.f32.xlu0 %v604
    %v618 = vpop.xlane.xlu0 %617
    %619 = vadd.xlane.f32.xlu0 %v605
    %v620 = vpop.xlane.xlu0 %619
    %621 = vadd.xlane.f32.xlu0 %v606
    %v622 = vpop.xlane.xlu0 %621
    %v623 = vld [vmem:[#allocation7] sm:$0x1]
    %v625 = vlaneseq
    %v626 = vshrl.u32 %v625, 7
    %v627 = vsub.s32 0, %v626
    %v628 = vrot.slane %v623, %v627
    %629 = vset.pattern.permute.xlu0 0
    %630 = vperm.xlu0 %629, %v628
    %v631 = vpop.permute.xlu0 %630
    %v633 = vadd.f32 %v608, %v631
    %v634 = vadd.f32 %v610, %v631
    %v635 = vadd.f32 %v612, %v631
    %v636 = vadd.f32 %v614, %v631
    %v637 = vadd.f32 %v616, %v631
    %v638 = vadd.f32 %v618, %v631
    %v639 = vadd.f32 %v620, %v631
    %v640 = vadd.f32 %v622, %v631
    %v649 = vlaneseq
    %v650 = vand.u32 %v649, 127
    %v651 = vlaneseq
    %v652 = vshrl.u32 %v651, 7
    %v653 = vsub.s32 %v650, %v652
    %v654 = vrot.slane %v633, %v653
    %v655 = vlaneseq
    %v656 = vshrl.u32 %v655, 7
    %v657 = vsub.s32 %v650, %v656
    %v658 = vrot.slane %v634, %v657
    %v659 = vlaneseq
    %v660 = vshrl.u32 %v659, 7
    %v661 = vsub.s32 %v650, %v660
    %v662 = vrot.slane %v635, %v661
    %v663 = vlaneseq
    %v664 = vshrl.u32 %v663, 7
    %v665 = vsub.s32 %v650, %v664
    %v666 = vrot.slane %v636, %v665
    %v667 = vlaneseq
    %v668 = vshrl.u32 %v667, 7
    %v669 = vsub.s32 %v650, %v668
    %v670 = vrot.slane %v637, %v669
    %v671 = vlaneseq
    %v672 = vshrl.u32 %v671, 7
    %v673 = vsub.s32 %v650, %v672
    %v674 = vrot.slane %v638, %v673
    %v675 = vlaneseq
    %v676 = vshrl.u32 %v675, 7
    %v677 = vsub.s32 %v650, %v676
    %v678 = vrot.slane %v639, %v677
    %v679 = vlaneseq
    %v680 = vshrl.u32 %v679, 7
    %v681 = vsub.s32 %v650, %v680
    %v682 = vrot.slane %v640, %v681
    %vm683 = vcmask 1041409
    %v684 = vsel %vm683, %v658, %v654
    %vm685 = vcmask 1042434
    %v686 = vsel %vm685, %v662, %v684
    %vm687 = vcmask 1043459
    %v688 = vsel %vm687, %v666, %v686
    %vm689 = vcmask 1044484
    %v690 = vsel %vm689, %v670, %v688
    %vm691 = vcmask 1045509
    %v692 = vsel %vm691, %v674, %v690
    %vm693 = vcmask 1046534
    %v694 = vsel %vm693, %v678, %v692
    %vm695 = vcmask 1047559
    %v696 = vsel %vm695, %v682, %v694
    %vm698 = vcmask 64512
    %v699 = vsel %vm698, %v696, -inf
    %700 = vmax.xlane.f32.xlu0 %v699
    %v701 = vpop.xlane.xlu0 %700
    %v703 = vlaneseq
    %v704 = vshrl.u32 %v703, 7
    %v705 = vsub.s32 0, %v704
    %v706 = vrot.slane %v701, %v705
    %v707 = vlaneseq
    %v708 = vshrl.u32 %v707, 7
    %v709 = vsub.s32 1, %v708
    %v710 = vrot.slane %v701, %v709
    %v711 = vlaneseq
    %v712 = vshrl.u32 %v711, 7
    %v713 = vsub.s32 2, %v712
    %v714 = vrot.slane %v701, %v713
    %v715 = vlaneseq
    %v716 = vshrl.u32 %v715, 7
    %v717 = vsub.s32 3, %v716
    %v718 = vrot.slane %v701, %v717
    %v719 = vlaneseq
    %v720 = vshrl.u32 %v719, 7
    %v721 = vsub.s32 4, %v720
    %v722 = vrot.slane %v701, %v721
    %v723 = vlaneseq
    %v724 = vshrl.u32 %v723, 7
    %v725 = vsub.s32 5, %v724
    %v726 = vrot.slane %v701, %v725
    %v727 = vlaneseq
    %v728 = vshrl.u32 %v727, 7
    %v729 = vsub.s32 6, %v728
    %v730 = vrot.slane %v701, %v729
    %v731 = vlaneseq
    %v732 = vshrl.u32 %v731, 7
    %v733 = vsub.s32 7, %v732
    %v734 = vrot.slane %v701, %v733
    %v743 = vsub.f32 %v633, %v706
    %v744 = vsub.f32 %v634, %v710
    %v745 = vsub.f32 %v635, %v714
    %v746 = vsub.f32 %v636, %v718
    %v747 = vsub.f32 %v637, %v722
    %v748 = vsub.f32 %v638, %v726
    %v749 = vsub.f32 %v639, %v730
    %v750 = vsub.f32 %v640, %v734
    %v751 = vmul.f32 %v743, 1.442695
    %v752 = vpow.pop %v751
    %v753 = vmul.f32 %v744, 1.442695
    %v754 = vpow.pop %v753
    %v755 = vmul.f32 %v745, 1.442695
    %v756 = vpow.pop %v755
    %v757 = vmul.f32 %v746, 1.442695
    %v758 = vpow.pop %v757
    %v759 = vmul.f32 %v747, 1.442695
    %v760 = vpow.pop %v759
    %v761 = vmul.f32 %v748, 1.442695
    %v762 = vpow.pop %v761
    %v763 = vmul.f32 %v749, 1.442695
    %v764 = vpow.pop %v763
    %v765 = vmul.f32 %v750, 1.442695
    %v766 = vpow.pop %v765
    %775 = vset.pattern.permute.xlu0 0
    %776 = vperm.xlu0 %775, %v752
    %v777 = vpop.permute.xlu0 %776
    %778 = vset.pattern.permute.xlu0 0
    %779 = vperm.xlu0 %778, %v754
    %v780 = vpop.permute.xlu0 %779
    %781 = vset.pattern.permute.xlu0 0
    %782 = vperm.xlu0 %781, %v756
    %v783 = vpop.permute.xlu0 %782
    %784 = vset.pattern.permute.xlu0 0
    %785 = vperm.xlu0 %784, %v758
    %v786 = vpop.permute.xlu0 %785
    %787 = vset.pattern.permute.xlu0 0
    %788 = vperm.xlu0 %787, %v760
    %v789 = vpop.permute.xlu0 %788
    %790 = vset.pattern.permute.xlu0 0
    %791 = vperm.xlu0 %790, %v762
    %v792 = vpop.permute.xlu0 %791
    %793 = vset.pattern.permute.xlu0 0
    %794 = vperm.xlu0 %793, %v764
    %v795 = vpop.permute.xlu0 %794
    %796 = vset.pattern.permute.xlu0 0
    %797 = vperm.xlu0 %796, %v766
    %v798 = vpop.permute.xlu0 %797
    %v799 = vlaneseq
    %v800 = vshrl.u32 %v799, 7
    %v801 = vsub.s32 %v650, %v800
    %v802 = vrot.slane %v777, %v801
    %v803 = vlaneseq
    %v804 = vshrl.u32 %v803, 7
    %v805 = vsub.s32 %v650, %v804
    %v806 = vrot.slane %v780, %v805
    %v807 = vlaneseq
    %v808 = vshrl.u32 %v807, 7
    %v809 = vsub.s32 %v650, %v808
    %v810 = vrot.slane %v783, %v809
    %v811 = vlaneseq
    %v812 = vshrl.u32 %v811, 7
    %v813 = vsub.s32 %v650, %v812
    %v814 = vrot.slane %v786, %v813
    %v815 = vlaneseq
    %v816 = vshrl.u32 %v815, 7
    %v817 = vsub.s32 %v650, %v816
    %v818 = vrot.slane %v789, %v817
    %v819 = vlaneseq
    %v820 = vshrl.u32 %v819, 7
    %v821 = vsub.s32 %v650, %v820
    %v822 = vrot.slane %v792, %v821
    %v823 = vlaneseq
    %v824 = vshrl.u32 %v823, 7
    %v825 = vsub.s32 %v650, %v824
    %v826 = vrot.slane %v795, %v825
    %v827 = vlaneseq
    %v828 = vshrl.u32 %v827, 7
    %v829 = vsub.s32 %v650, %v828
    %v830 = vrot.slane %v798, %v829
    %v831 = vsel %vm683, %v806, %v802
    %v832 = vsel %vm685, %v810, %v831
    %v833 = vsel %vm687, %v814, %v832
    %v834 = vsel %vm689, %v818, %v833
    %v835 = vsel %vm691, %v822, %v834
    %v836 = vsel %vm693, %v826, %v835
    %v837 = vsel %vm695, %v830, %v836
    %v839 = vsel %vm698, %v837, 0.0
    %840 = vadd.xlane.f32.xlu0 %v839
    %v841 = vpop.xlane.xlu0 %840
    %v843 = vlaneseq
    %v844 = vshrl.u32 %v843, 7
    %v845 = vsub.s32 0, %v844
    %v846 = vrot.slane %v841, %v845
    %v847 = vlaneseq
    %v848 = vshrl.u32 %v847, 7
    %v849 = vsub.s32 1, %v848
    %v850 = vrot.slane %v841, %v849
    %v851 = vlaneseq
    %v852 = vshrl.u32 %v851, 7
    %v853 = vsub.s32 2, %v852
    %v854 = vrot.slane %v841, %v853
    %v855 = vlaneseq
    %v856 = vshrl.u32 %v855, 7
    %v857 = vsub.s32 3, %v856
    %v858 = vrot.slane %v841, %v857
    %v859 = vlaneseq
    %v860 = vshrl.u32 %v859, 7
    %v861 = vsub.s32 4, %v860
    %v862 = vrot.slane %v841, %v861
    %v863 = vlaneseq
    %v864 = vshrl.u32 %v863, 7
    %v865 = vsub.s32 5, %v864
    %v866 = vrot.slane %v841, %v865
    %v867 = vlaneseq
    %v868 = vshrl.u32 %v867, 7
    %v869 = vsub.s32 6, %v868
    %v870 = vrot.slane %v841, %v869
    %v871 = vlaneseq
    %v872 = vshrl.u32 %v871, 7
    %v873 = vsub.s32 7, %v872
    %v874 = vrot.slane %v841, %v873
    %v883 = vrcp.pop %v846
    %v884 = vmul.f32 %v752, %v883
    %v885 = vrcp.pop %v850
    %v886 = vmul.f32 %v754, %v885
    %v887 = vrcp.pop %v854
    %v888 = vmul.f32 %v756, %v887
    %v889 = vrcp.pop %v858
    %v890 = vmul.f32 %v758, %v889
    %v891 = vrcp.pop %v862
    %v892 = vmul.f32 %v760, %v891
    %v893 = vrcp.pop %v866
    %v894 = vmul.f32 %v762, %v893
    %v895 = vrcp.pop %v870
    %v896 = vmul.f32 %v764, %v895
    %v897 = vrcp.pop %v874
    %v898 = vmul.f32 %v766, %v897
    %v899 = vld [vmem:[%s5] sm:$0xff]
    %v901 = vlaneseq
    %v902 = vshrl.u32 %v901, 7
    %v903 = vsub.s32 0, %v902
    %v904 = vrot.slane %v899, %v903
    %906 = vbcast.lane.b32.xlu0 %v904, 256
    %v907 = vpop.permute.xlu0 %906
    %v908 = vlaneseq
    %v909 = vshrl.u32 %v908, 7
    %v910 = vsub.s32 1, %v909
    %v911 = vrot.slane %v899, %v910
    %913 = vbcast.lane.b32.xlu0 %v911, 256
    %v914 = vpop.permute.xlu0 %913
    %v915 = vlaneseq
    %v916 = vshrl.u32 %v915, 7
    %v917 = vsub.s32 2, %v916
    %v918 = vrot.slane %v899, %v917
    %920 = vbcast.lane.b32.xlu0 %v918, 256
    %v921 = vpop.permute.xlu0 %920
    %v922 = vlaneseq
    %v923 = vshrl.u32 %v922, 7
    %v924 = vsub.s32 3, %v923
    %v925 = vrot.slane %v899, %v924
    %927 = vbcast.lane.b32.xlu0 %v925, 256
    %v928 = vpop.permute.xlu0 %927
    %v929 = vlaneseq
    %v930 = vshrl.u32 %v929, 7
    %v931 = vsub.s32 4, %v930
    %v932 = vrot.slane %v899, %v931
    %934 = vbcast.lane.b32.xlu0 %v932, 256
    %v935 = vpop.permute.xlu0 %934
    %v936 = vlaneseq
    %v937 = vshrl.u32 %v936, 7
    %v938 = vsub.s32 5, %v937
    %v939 = vrot.slane %v899, %v938
    %941 = vbcast.lane.b32.xlu0 %v939, 256
    %v942 = vpop.permute.xlu0 %941
    %v943 = vlaneseq
    %v944 = vshrl.u32 %v943, 7
    %v945 = vsub.s32 6, %v944
    %v946 = vrot.slane %v899, %v945
    %948 = vbcast.lane.b32.xlu0 %v946, 256
    %v949 = vpop.permute.xlu0 %948
    %v950 = vlaneseq
    %v951 = vshrl.u32 %v950, 7
    %v952 = vsub.s32 7, %v951
    %v953 = vrot.slane %v899, %v952
    %955 = vbcast.lane.b32.xlu0 %v953, 256
    %v956 = vpop.permute.xlu0 %955
    %v965 = vmul.f32 %v884, %v907
    %v966 = vmul.f32 %v886, %v914
    %v967 = vmul.f32 %v888, %v921
    %v968 = vmul.f32 %v890, %v928
    %v969 = vmul.f32 %v892, %v935
    %v970 = vmul.f32 %v894, %v942
    %v971 = vmul.f32 %v896, %v949
    %v972 = vmul.f32 %v898, %v956
    %981 = vset.pattern.permute.xlu0 0
    %982 = vperm.xlu0 %981, %v965
    %v983 = vpop.permute.xlu0 %982
    %984 = vset.pattern.permute.xlu0 0
    %985 = vperm.xlu0 %984, %v966
    %v986 = vpop.permute.xlu0 %985
    %987 = vset.pattern.permute.xlu0 0
    %988 = vperm.xlu0 %987, %v967
    %v989 = vpop.permute.xlu0 %988
    %990 = vset.pattern.permute.xlu0 0
    %991 = vperm.xlu0 %990, %v968
    %v992 = vpop.permute.xlu0 %991
    %993 = vset.pattern.permute.xlu0 0
    %994 = vperm.xlu0 %993, %v969
    %v995 = vpop.permute.xlu0 %994
    %996 = vset.pattern.permute.xlu0 0
    %997 = vperm.xlu0 %996, %v970
    %v998 = vpop.permute.xlu0 %997
    %999 = vset.pattern.permute.xlu0 0
    %1000 = vperm.xlu0 %999, %v971
    %v1001 = vpop.permute.xlu0 %1000
    %1002 = vset.pattern.permute.xlu0 0
    %1003 = vperm.xlu0 %1002, %v972
    %v1004 = vpop.permute.xlu0 %1003
    %v1005 = vlaneseq
    %v1006 = vshrl.u32 %v1005, 7
    %v1007 = vsub.s32 %v650, %v1006
    %v1008 = vrot.slane %v983, %v1007
    %v1009 = vlaneseq
    %v1010 = vshrl.u32 %v1009, 7
    %v1011 = vsub.s32 %v650, %v1010
    %v1012 = vrot.slane %v986, %v1011
    %v1013 = vlaneseq
    %v1014 = vshrl.u32 %v1013, 7
    %v1015 = vsub.s32 %v650, %v1014
    %v1016 = vrot.slane %v989, %v1015
    %v1017 = vlaneseq
    %v1018 = vshrl.u32 %v1017, 7
    %v1019 = vsub.s32 %v650, %v1018
    %v1020 = vrot.slane %v992, %v1019
    %v1021 = vlaneseq
    %v1022 = vshrl.u32 %v1021, 7
    %v1023 = vsub.s32 %v650, %v1022
    %v1024 = vrot.slane %v995, %v1023
    %v1025 = vlaneseq
    %v1026 = vshrl.u32 %v1025, 7
    %v1027 = vsub.s32 %v650, %v1026
    %v1028 = vrot.slane %v998, %v1027
    %v1029 = vlaneseq
    %v1030 = vshrl.u32 %v1029, 7
    %v1031 = vsub.s32 %v650, %v1030
    %v1032 = vrot.slane %v1001, %v1031
    %v1033 = vlaneseq
    %v1034 = vshrl.u32 %v1033, 7
    %v1035 = vsub.s32 %v650, %v1034
    %v1036 = vrot.slane %v1004, %v1035
    %v1037 = vsel %vm683, %v1012, %v1008
    %v1038 = vsel %vm685, %v1016, %v1037
    %v1039 = vsel %vm687, %v1020, %v1038
    %v1040 = vsel %vm689, %v1024, %v1039
    %v1041 = vsel %vm691, %v1028, %v1040
    %v1042 = vsel %vm693, %v1032, %v1041
    %v1043 = vsel %vm695, %v1036, %v1042
    %v1045 = vsel %vm698, %v1043, 0.0
    %1046 = vadd.xlane.f32.xlu0 %v1045
    %v1047 = vpop.xlane.xlu0 %1046
    %v1049 = vlaneseq
    %v1050 = vshrl.u32 %v1049, 7
    %v1051 = vsub.s32 0, %v1050
    %v1052 = vrot.slane %v1047, %v1051
    %v1053 = vlaneseq
    %v1054 = vshrl.u32 %v1053, 7
    %v1055 = vsub.s32 1, %v1054
    %v1056 = vrot.slane %v1047, %v1055
    %v1057 = vlaneseq
    %v1058 = vshrl.u32 %v1057, 7
    %v1059 = vsub.s32 2, %v1058
    %v1060 = vrot.slane %v1047, %v1059
    %v1061 = vlaneseq
    %v1062 = vshrl.u32 %v1061, 7
    %v1063 = vsub.s32 3, %v1062
    %v1064 = vrot.slane %v1047, %v1063
    %v1065 = vlaneseq
    %v1066 = vshrl.u32 %v1065, 7
    %v1067 = vsub.s32 4, %v1066
    %v1068 = vrot.slane %v1047, %v1067
    %v1069 = vlaneseq
    %v1070 = vshrl.u32 %v1069, 7
    %v1071 = vsub.s32 5, %v1070
    %v1072 = vrot.slane %v1047, %v1071
    %v1073 = vlaneseq
    %v1074 = vshrl.u32 %v1073, 7
    %v1075 = vsub.s32 6, %v1074
    %v1076 = vrot.slane %v1047, %v1075
    %v1077 = vlaneseq
    %v1078 = vshrl.u32 %v1077, 7
    %v1079 = vsub.s32 7, %v1078
    %v1080 = vrot.slane %v1047, %v1079
    %v1089 = vrcp.pop %v1052
    %v1090 = vmul.f32 %v965, %v1089
    %v1091 = vrcp.pop %v1056
    %v1092 = vmul.f32 %v966, %v1091
    %v1093 = vrcp.pop %v1060
    %v1094 = vmul.f32 %v967, %v1093
    %v1095 = vrcp.pop %v1064
    %v1096 = vmul.f32 %v968, %v1095
    %v1097 = vrcp.pop %v1068
    %v1098 = vmul.f32 %v969, %v1097
    %v1099 = vrcp.pop %v1072
    %v1100 = vmul.f32 %v970, %v1099
    %v1101 = vrcp.pop %v1076
    %v1102 = vmul.f32 %v971, %v1101
    %v1103 = vrcp.pop %v1080
    %v1104 = vmul.f32 %v972, %v1103
    %v1105 = vld [vmem:[%s3] sm:$0xff]
    %v1106 = vld [vmem:[%s3 + $0x8] sm:$0xff]
    %v1107 = vld [vmem:[%s3 + $0x10] sm:$0xff]
    %v1108 = vld [vmem:[%s3 + $0x18] sm:$0xff]
    %v1109 = vld [vmem:[%s3 + $0x20] sm:$0xff]
    %v1110 = vld [vmem:[%s3 + $0x28] sm:$0xff]
    %v1111 = vld [vmem:[%s3 + $0x30] sm:$0xff]
    %v1112 = vld [vmem:[%s3 + $0x38] sm:$0xff]
    %1114 = vset.pattern.permute.xlu0 0
    %1115 = vperm.xlu0 %1114, %v1090
    %v1116 = vpop.permute.xlu0 %1115
    %1119 = vset.pattern.permute.xlu0 0
    %1120 = vperm.xlu0 %1119, %v1092
    %v1121 = vpop.permute.xlu0 %1120
    %1124 = vset.pattern.permute.xlu0 0
    %1125 = vperm.xlu0 %1124, %v1094
    %v1126 = vpop.permute.xlu0 %1125
    %1129 = vset.pattern.permute.xlu0 0
    %1130 = vperm.xlu0 %1129, %v1096
    %v1131 = vpop.permute.xlu0 %1130
    %1134 = vset.pattern.permute.xlu0 0
    %1135 = vperm.xlu0 %1134, %v1098
    %v1136 = vpop.permute.xlu0 %1135
    %1139 = vset.pattern.permute.xlu0 0
    %1140 = vperm.xlu0 %1139, %v1100
    %v1141 = vpop.permute.xlu0 %1140
    %1144 = vset.pattern.permute.xlu0 0
    %1145 = vperm.xlu0 %1144, %v1102
    %v1146 = vpop.permute.xlu0 %1145
    %1149 = vset.pattern.permute.xlu0 0
    %1150 = vperm.xlu0 %1149, %v1104
    %v1151 = vpop.permute.xlu0 %1150
    %v1153 = vmul.f32 %v1116, %v1105
    %v1154 = vmul.f32 %v1121, %v1106
    %v1155 = vmul.f32 %v1126, %v1107
    %v1156 = vmul.f32 %v1131, %v1108
    %v1157 = vmul.f32 %v1136, %v1109
    %v1158 = vmul.f32 %v1141, %v1110
    %v1159 = vmul.f32 %v1146, %v1111
    %v1160 = vmul.f32 %v1151, %v1112
    %v1161 = vrot.slane %v1153, 4
    %v1162 = vadd.f32 %v1153, %v1161
    %v1163 = vrot.slane %v1162, 2
    %v1164 = vadd.f32 %v1162, %v1163
    %v1165 = vrot.slane %v1164, 1
    %v1166 = vadd.f32 %v1164, %v1165
    %v1167 = vrot.slane %v1154, 4
    %v1168 = vadd.f32 %v1154, %v1167
    %v1169 = vrot.slane %v1168, 2
    %v1170 = vadd.f32 %v1168, %v1169
    %v1171 = vrot.slane %v1170, 1
    %v1172 = vadd.f32 %v1170, %v1171
    %v1173 = vrot.slane %v1155, 4
    %v1174 = vadd.f32 %v1155, %v1173
    %v1175 = vrot.slane %v1174, 2
    %v1176 = vadd.f32 %v1174, %v1175
    %v1177 = vrot.slane %v1176, 1
    %v1178 = vadd.f32 %v1176, %v1177
    %v1179 = vrot.slane %v1156, 4
    %v1180 = vadd.f32 %v1156, %v1179
    %v1181 = vrot.slane %v1180, 2
    %v1182 = vadd.f32 %v1180, %v1181
    %v1183 = vrot.slane %v1182, 1
    %v1184 = vadd.f32 %v1182, %v1183
    %v1185 = vrot.slane %v1157, 4
    %v1186 = vadd.f32 %v1157, %v1185
    %v1187 = vrot.slane %v1186, 2
    %v1188 = vadd.f32 %v1186, %v1187
    %v1189 = vrot.slane %v1188, 1
    %v1190 = vadd.f32 %v1188, %v1189
    %v1191 = vrot.slane %v1158, 4
    %v1192 = vadd.f32 %v1158, %v1191
    %v1193 = vrot.slane %v1192, 2
    %v1194 = vadd.f32 %v1192, %v1193
    %v1195 = vrot.slane %v1194, 1
    %v1196 = vadd.f32 %v1194, %v1195
    %v1197 = vrot.slane %v1159, 4
    %v1198 = vadd.f32 %v1159, %v1197
    %v1199 = vrot.slane %v1198, 2
    %v1200 = vadd.f32 %v1198, %v1199
    %v1201 = vrot.slane %v1200, 1
    %v1202 = vadd.f32 %v1200, %v1201
    %v1203 = vrot.slane %v1160, 4
    %v1204 = vadd.f32 %v1160, %v1203
    %v1205 = vrot.slane %v1204, 2
    %v1206 = vadd.f32 %v1204, %v1205
    %v1207 = vrot.slane %v1206, 1
    %v1208 = vadd.f32 %v1206, %v1207
    %v1217 = vsel %vm683, %v1172, %v1166
    %v1218 = vsel %vm685, %v1178, %v1217
    %v1219 = vsel %vm687, %v1184, %v1218
    %v1220 = vsel %vm689, %v1190, %v1219
    %v1221 = vsel %vm691, %v1196, %v1220
    %v1222 = vsel %vm693, %v1202, %v1221
    %v1223 = vsel %vm695, %v1208, %v1222
    %v1225 = vld [vmem:[%s7] sm:$0xff]
    %v1226 = vld [vmem:[%s7 + $0x8] sm:$0xff]
    %v1227 = vld [vmem:[%s7 + $0x10] sm:$0xff]
    %v1228 = vld [vmem:[%s7 + $0x18] sm:$0xff]
    %v1229 = vld [vmem:[%s7 + $0x20] sm:$0xff]
    %v1230 = vld [vmem:[%s7 + $0x28] sm:$0xff]
    %v1231 = vld [vmem:[%s7 + $0x30] sm:$0xff]
    %v1232 = vld [vmem:[%s7 + $0x38] sm:$0xff]
    %v1233 = vld [vmem:[%s7 + $0x40] sm:$0xff]
    %v1234 = vld [vmem:[%s7 + $0x48] sm:$0xff]
    %v1235 = vld [vmem:[%s7 + $0x50] sm:$0xff]
    %v1236 = vld [vmem:[%s7 + $0x58] sm:$0xff]
    %v1237 = vld [vmem:[%s7 + $0x60] sm:$0xff]
    %v1238 = vld [vmem:[%s7 + $0x68] sm:$0xff]
    %v1239 = vld [vmem:[%s7 + $0x70] sm:$0xff]
    %v1240 = vld [vmem:[%s7 + $0x78] sm:$0xff]
    %v1241 = vld [vmem:[%s7 + $0x80] sm:$0xff]
    %v1242 = vld [vmem:[%s7 + $0x88] sm:$0xff]
    %v1243 = vld [vmem:[%s7 + $0x90] sm:$0xff]
    %v1244 = vld [vmem:[%s7 + $0x98] sm:$0xff]
    %v1245 = vld [vmem:[%s7 + $0xa0] sm:$0xff]
    %v1246 = vld [vmem:[%s7 + $0xa8] sm:$0xff]
    %v1247 = vld [vmem:[%s7 + $0xb0] sm:$0xff]
    %v1248 = vld [vmem:[%s7 + $0xb8] sm:$0xff]
    %v1249 = vld [vmem:[%s7 + $0xc0] sm:$0xff]
    %v1250 = vld [vmem:[%s7 + $0xc8] sm:$0xff]
    %v1251 = vld [vmem:[%s7 + $0xd0] sm:$0xff]
    %v1252 = vld [vmem:[%s7 + $0xd8] sm:$0xff]
    %v1253 = vld [vmem:[%s7 + $0xe0] sm:$0xff]
    %v1254 = vld [vmem:[%s7 + $0xe8] sm:$0xff]
    %v1255 = vld [vmem:[%s7 + $0xf0] sm:$0xff]
    %v1256 = vld [vmem:[%s7 + $0xf8] sm:$0xff]
    %v1257 = vld [vmem:[%s7 + $0x100] sm:$0xff]
    %v1258 = vld [vmem:[%s7 + $0x108] sm:$0xff]
    %v1259 = vld [vmem:[%s7 + $0x110] sm:$0xff]
    %v1260 = vld [vmem:[%s7 + $0x118] sm:$0xff]
    %v1261 = vld [vmem:[%s7 + $0x120] sm:$0xff]
    %v1262 = vld [vmem:[%s7 + $0x128] sm:$0xff]
    %v1263 = vld [vmem:[%s7 + $0x130] sm:$0xff]
    %v1264 = vld [vmem:[%s7 + $0x138] sm:$0xff]
    %v1265 = vld [vmem:[%s7 + $0x140] sm:$0xff]
    %v1266 = vld [vmem:[%s7 + $0x148] sm:$0xff]
    %v1267 = vld [vmem:[%s7 + $0x150] sm:$0xff]
    %v1268 = vld [vmem:[%s7 + $0x158] sm:$0xff]
    %v1269 = vld [vmem:[%s7 + $0x160] sm:$0xff]
    %v1270 = vld [vmem:[%s7 + $0x168] sm:$0xff]
    %v1271 = vld [vmem:[%s7 + $0x170] sm:$0xff]
    %v1272 = vld [vmem:[%s7 + $0x178] sm:$0xff]
    %v1273 = vld [vmem:[%s7 + $0x180] sm:$0xff]
    %v1274 = vld [vmem:[%s7 + $0x188] sm:$0xff]
    %v1275 = vld [vmem:[%s7 + $0x190] sm:$0xff]
    %v1276 = vld [vmem:[%s7 + $0x198] sm:$0xff]
    %v1277 = vld [vmem:[%s7 + $0x1a0] sm:$0xff]
    %v1278 = vld [vmem:[%s7 + $0x1a8] sm:$0xff]
    %v1279 = vld [vmem:[%s7 + $0x1b0] sm:$0xff]
    %v1280 = vld [vmem:[%s7 + $0x1b8] sm:$0xff]
    %v1281 = vld [vmem:[%s7 + $0x1c0] sm:$0xff]
    %v1282 = vld [vmem:[%s7 + $0x1c8] sm:$0xff]
    %v1283 = vld [vmem:[%s7 + $0x1d0] sm:$0xff]
    %v1284 = vld [vmem:[%s7 + $0x1d8] sm:$0xff]
    %v1285 = vld [vmem:[%s7 + $0x1e0] sm:$0xff]
    %v1286 = vld [vmem:[%s7 + $0x1e8] sm:$0xff]
    %v1287 = vld [vmem:[%s7 + $0x1f0] sm:$0xff]
    %v1288 = vld [vmem:[%s7 + $0x1f8] sm:$0xff]
    %v1289 = vld [vmem:[%s7 + $0x200] sm:$0xff]
    %v1290 = vld [vmem:[%s7 + $0x208] sm:$0xff]
    %v1291 = vld [vmem:[%s7 + $0x210] sm:$0xff]
    %v1292 = vld [vmem:[%s7 + $0x218] sm:$0xff]
    %v1293 = vld [vmem:[%s7 + $0x220] sm:$0xff]
    %v1294 = vld [vmem:[%s7 + $0x228] sm:$0xff]
    %v1295 = vld [vmem:[%s7 + $0x230] sm:$0xff]
    %v1296 = vld [vmem:[%s7 + $0x238] sm:$0xff]
    %v1297 = vld [vmem:[%s7 + $0x240] sm:$0xff]
    %v1298 = vld [vmem:[%s7 + $0x248] sm:$0xff]
    %v1299 = vld [vmem:[%s7 + $0x250] sm:$0xff]
    %v1300 = vld [vmem:[%s7 + $0x258] sm:$0xff]
    %v1301 = vld [vmem:[%s7 + $0x260] sm:$0xff]
    %v1302 = vld [vmem:[%s7 + $0x268] sm:$0xff]
    %v1303 = vld [vmem:[%s7 + $0x270] sm:$0xff]
    %v1304 = vld [vmem:[%s7 + $0x278] sm:$0xff]
    %v1305 = vld [vmem:[%s7 + $0x280] sm:$0xff]
    %v1306 = vld [vmem:[%s7 + $0x288] sm:$0xff]
    %v1307 = vld [vmem:[%s7 + $0x290] sm:$0xff]
    %v1308 = vld [vmem:[%s7 + $0x298] sm:$0xff]
    %v1309 = vld [vmem:[%s7 + $0x2a0] sm:$0xff]
    %v1310 = vld [vmem:[%s7 + $0x2a8] sm:$0xff]
    %v1311 = vld [vmem:[%s7 + $0x2b0] sm:$0xff]
    %v1312 = vld [vmem:[%s7 + $0x2b8] sm:$0xff]
    %v1313 = vld [vmem:[%s7 + $0x2c0] sm:$0xff]
    %v1314 = vld [vmem:[%s7 + $0x2c8] sm:$0xff]
    %v1315 = vld [vmem:[%s7 + $0x2d0] sm:$0xff]
    %v1316 = vld [vmem:[%s7 + $0x2d8] sm:$0xff]
    %v1317 = vld [vmem:[%s7 + $0x2e0] sm:$0xff]
    %v1318 = vld [vmem:[%s7 + $0x2e8] sm:$0xff]
    %v1319 = vld [vmem:[%s7 + $0x2f0] sm:$0xff]
    %v1320 = vld [vmem:[%s7 + $0x2f8] sm:$0xff]
    %v1321 = vld [vmem:[%s7 + $0x300] sm:$0xff]
    %v1322 = vld [vmem:[%s7 + $0x308] sm:$0xff]
    %v1323 = vld [vmem:[%s7 + $0x310] sm:$0xff]
    %v1324 = vld [vmem:[%s7 + $0x318] sm:$0xff]
    %v1325 = vld [vmem:[%s7 + $0x320] sm:$0xff]
    %v1326 = vld [vmem:[%s7 + $0x328] sm:$0xff]
    %v1327 = vld [vmem:[%s7 + $0x330] sm:$0xff]
    %v1328 = vld [vmem:[%s7 + $0x338] sm:$0xff]
    %v1329 = vld [vmem:[%s7 + $0x340] sm:$0xff]
    %v1330 = vld [vmem:[%s7 + $0x348] sm:$0xff]
    %v1331 = vld [vmem:[%s7 + $0x350] sm:$0xff]
    %v1332 = vld [vmem:[%s7 + $0x358] sm:$0xff]
    %v1333 = vld [vmem:[%s7 + $0x360] sm:$0xff]
    %v1334 = vld [vmem:[%s7 + $0x368] sm:$0xff]
    %v1335 = vld [vmem:[%s7 + $0x370] sm:$0xff]
    %v1336 = vld [vmem:[%s7 + $0x378] sm:$0xff]
    %v1337 = vld [vmem:[%s7 + $0x380] sm:$0xff]
    %v1338 = vld [vmem:[%s7 + $0x388] sm:$0xff]
    %v1339 = vld [vmem:[%s7 + $0x390] sm:$0xff]
    %v1340 = vld [vmem:[%s7 + $0x398] sm:$0xff]
    %v1341 = vld [vmem:[%s7 + $0x3a0] sm:$0xff]
    %v1342 = vld [vmem:[%s7 + $0x3a8] sm:$0xff]
    %v1343 = vld [vmem:[%s7 + $0x3b0] sm:$0xff]
    %v1344 = vld [vmem:[%s7 + $0x3b8] sm:$0xff]
    %v1345 = vld [vmem:[%s7 + $0x3c0] sm:$0xff]
    %v1346 = vld [vmem:[%s7 + $0x3c8] sm:$0xff]
    %v1347 = vld [vmem:[%s7 + $0x3d0] sm:$0xff]
    %v1348 = vld [vmem:[%s7 + $0x3d8] sm:$0xff]
    %v1349 = vld [vmem:[%s7 + $0x3e0] sm:$0xff]
    %v1350 = vld [vmem:[%s7 + $0x3e8] sm:$0xff]
    %v1351 = vld [vmem:[%s7 + $0x3f0] sm:$0xff]
    %v1352 = vld [vmem:[%s7 + $0x3f8] sm:$0xff]
    %v1353 = vld [vmem:[%s7 + $0x400] sm:$0xff]
    %v1354 = vld [vmem:[%s7 + $0x408] sm:$0xff]
    %v1355 = vld [vmem:[%s7 + $0x410] sm:$0xff]
    %v1356 = vld [vmem:[%s7 + $0x418] sm:$0xff]
    %v1357 = vld [vmem:[%s7 + $0x420] sm:$0xff]
    %v1358 = vld [vmem:[%s7 + $0x428] sm:$0xff]
    %v1359 = vld [vmem:[%s7 + $0x430] sm:$0xff]
    %v1360 = vld [vmem:[%s7 + $0x438] sm:$0xff]
    %v1361 = vld [vmem:[%s7 + $0x440] sm:$0xff]
    %v1362 = vld [vmem:[%s7 + $0x448] sm:$0xff]
    %v1363 = vld [vmem:[%s7 + $0x450] sm:$0xff]
    %v1364 = vld [vmem:[%s7 + $0x458] sm:$0xff]
    %v1365 = vld [vmem:[%s7 + $0x460] sm:$0xff]
    %v1366 = vld [vmem:[%s7 + $0x468] sm:$0xff]
    %v1367 = vld [vmem:[%s7 + $0x470] sm:$0xff]
    %v1368 = vld [vmem:[%s7 + $0x478] sm:$0xff]
    %v1369 = vld [vmem:[%s7 + $0x480] sm:$0xff]
    %v1370 = vld [vmem:[%s7 + $0x488] sm:$0xff]
    %v1371 = vld [vmem:[%s7 + $0x490] sm:$0xff]
    %v1372 = vld [vmem:[%s7 + $0x498] sm:$0xff]
    %v1373 = vld [vmem:[%s7 + $0x4a0] sm:$0xff]
    %v1374 = vld [vmem:[%s7 + $0x4a8] sm:$0xff]
    %v1375 = vld [vmem:[%s7 + $0x4b0] sm:$0xff]
    %v1376 = vld [vmem:[%s7 + $0x4b8] sm:$0xff]
    %v1377 = vld [vmem:[%s7 + $0x4c0] sm:$0xff]
    %v1378 = vld [vmem:[%s7 + $0x4c8] sm:$0xff]
    %v1379 = vld [vmem:[%s7 + $0x4d0] sm:$0xff]
    %v1380 = vld [vmem:[%s7 + $0x4d8] sm:$0xff]
    %v1381 = vld [vmem:[%s7 + $0x4e0] sm:$0xff]
    %v1382 = vld [vmem:[%s7 + $0x4e8] sm:$0xff]
    %v1383 = vld [vmem:[%s7 + $0x4f0] sm:$0xff]
    %v1384 = vld [vmem:[%s7 + $0x4f8] sm:$0xff]
    %v1385 = vld [vmem:[%s7 + $0x500] sm:$0xff]
    %v1386 = vld [vmem:[%s7 + $0x508] sm:$0xff]
    %v1387 = vld [vmem:[%s7 + $0x510] sm:$0xff]
    %v1388 = vld [vmem:[%s7 + $0x518] sm:$0xff]
    %v1389 = vld [vmem:[%s7 + $0x520] sm:$0xff]
    %v1390 = vld [vmem:[%s7 + $0x528] sm:$0xff]
    %v1391 = vld [vmem:[%s7 + $0x530] sm:$0xff]
    %v1392 = vld [vmem:[%s7 + $0x538] sm:$0xff]
    %v1393 = vld [vmem:[%s7 + $0x540] sm:$0xff]
    %v1394 = vld [vmem:[%s7 + $0x548] sm:$0xff]
    %v1395 = vld [vmem:[%s7 + $0x550] sm:$0xff]
    %v1396 = vld [vmem:[%s7 + $0x558] sm:$0xff]
    %v1397 = vld [vmem:[%s7 + $0x560] sm:$0xff]
    %v1398 = vld [vmem:[%s7 + $0x568] sm:$0xff]
    %v1399 = vld [vmem:[%s7 + $0x570] sm:$0xff]
    %v1400 = vld [vmem:[%s7 + $0x578] sm:$0xff]
    %v1401 = vld [vmem:[%s7 + $0x580] sm:$0xff]
    %v1402 = vld [vmem:[%s7 + $0x588] sm:$0xff]
    %v1403 = vld [vmem:[%s7 + $0x590] sm:$0xff]
    %v1404 = vld [vmem:[%s7 + $0x598] sm:$0xff]
    %v1405 = vld [vmem:[%s7 + $0x5a0] sm:$0xff]
    %v1406 = vld [vmem:[%s7 + $0x5a8] sm:$0xff]
    %v1407 = vld [vmem:[%s7 + $0x5b0] sm:$0xff]
    %v1408 = vld [vmem:[%s7 + $0x5b8] sm:$0xff]
    %v1409 = vld [vmem:[%s7 + $0x5c0] sm:$0xff]
    %v1410 = vld [vmem:[%s7 + $0x5c8] sm:$0xff]
    %v1411 = vld [vmem:[%s7 + $0x5d0] sm:$0xff]
    %v1412 = vld [vmem:[%s7 + $0x5d8] sm:$0xff]
    %v1413 = vld [vmem:[%s7 + $0x5e0] sm:$0xff]
    %v1414 = vld [vmem:[%s7 + $0x5e8] sm:$0xff]
    %v1415 = vld [vmem:[%s7 + $0x5f0] sm:$0xff]
    %v1416 = vld [vmem:[%s7 + $0x5f8] sm:$0xff]
    %v1417 = vld [vmem:[%s8] sm:$0xf]
    %v1419 = vlaneseq
    %v1420 = vshrl.u32 %v1419, 7
    %v1421 = vsub.s32 0, %v1420
    %v1422 = vrot.slane %v1417, %v1421
    %v1423 = vlaneseq
    %v1424 = vshrl.u32 %v1423, 7
    %v1425 = vsub.s32 1, %v1424
    %v1426 = vrot.slane %v1417, %v1425
    %v1427 = vlaneseq
    %v1428 = vshrl.u32 %v1427, 7
    %v1429 = vsub.s32 2, %v1428
    %v1430 = vrot.slane %v1417, %v1429
    %v1431 = vlaneseq
    %v1432 = vshrl.u32 %v1431, 7
    %v1433 = vsub.s32 3, %v1432
    %v1434 = vrot.slane %v1417, %v1433
    %1439 = vmatprep.subr.mxu0 %v1226
    %1440 = vmatpush1.msra.mxu0 %v1225
    %1441 = vmatprep.subr.mxu0 %v1230
    %1442 = vmatpush1.msra.mxu0 %v1229
    %1443 = vmatprep.subr.mxu0 %v1234
    %1444 = vmatpush1.msra.mxu0 %v1233
    %1445 = vmatprep.subr.mxu0 %v1238
    %1446 = vmatpush1.msra.mxu0 %v1237
    %1447 = vmatprep.subr.mxu0 %v1242
    %1448 = vmatpush1.msra.mxu0 %v1241
    %1449 = vmatprep.subr.mxu0 %v1246
    %1450 = vmatpush1.msra.mxu0 %v1245
    %1451 = vmatprep.subr.mxu0 %v1250
    %1452 = vmatpush1.msra.mxu0 %v1249
    %1453 = vmatprep.subr.mxu0 %v1254
    %1454 = vmatpush1.msra.mxu0 %v1253
    %1455 = vmatprep.subr.mxu0 %v1258
    %1456 = vmatpush1.msra.mxu0 %v1257
    %1457 = vmatprep.subr.mxu0 %v1262
    %1458 = vmatpush1.msra.mxu0 %v1261
    %1459 = vmatprep.subr.mxu0 %v1266
    %1460 = vmatpush1.msra.mxu0 %v1265
    %1461 = vmatprep.subr.mxu0 %v1270
    %1462 = vmatpush1.msra.mxu0 %v1269
    %1463 = vmatprep.subr.mxu0 %v1274
    %1464 = vmatpush1.msra.mxu0 %v1273
    %1465 = vmatprep.subr.mxu0 %v1278
    %1466 = vmatpush1.msra.mxu0 %v1277
    %1467 = vmatprep.subr.mxu0 %v1282
    %1468 = vmatpush1.msra.mxu0 %v1281
    %1469 = vmatprep.subr.mxu0 %v1286
    %1470 = vmatpush1.msra.mxu0 %v1285
    %1471 = vmatprep.subr.mxu0 %v1290
    %1472 = vmatpush1.msra.mxu0 %v1289
    %1473 = vmatprep.subr.mxu0 %v1294
    %1474 = vmatpush1.msra.mxu0 %v1293
    %1475 = vmatprep.subr.mxu0 %v1298
    %1476 = vmatpush1.msra.mxu0 %v1297
    %1477 = vmatprep.subr.mxu0 %v1302
    %1478 = vmatpush1.msra.mxu0 %v1301
    %1479 = vmatprep.subr.mxu0 %v1306
    %1480 = vmatpush1.msra.mxu0 %v1305
    %1481 = vmatprep.subr.mxu0 %v1310
    %1482 = vmatpush1.msra.mxu0 %v1309
    %1483 = vmatprep.subr.mxu0 %v1314
    %1484 = vmatpush1.msra.mxu0 %v1313
    %1485 = vmatprep.subr.mxu0 %v1318
    %1486 = vmatpush1.msra.mxu0 %v1317
    %1487 = vmatprep.subr.mxu0 %v1322
    %1488 = vmatpush1.msra.mxu0 %v1321
    %1489 = vmatprep.subr.mxu0 %v1326
    %1490 = vmatpush1.msra.mxu0 %v1325
    %1491 = vmatprep.subr.mxu0 %v1330
    %1492 = vmatpush1.msra.mxu0 %v1329
    %1493 = vmatprep.subr.mxu0 %v1334
    %1494 = vmatpush1.msra.mxu0 %v1333
    %1495 = vmatprep.subr.mxu0 %v1338
    %1496 = vmatpush1.msra.mxu0 %v1337
    %1497 = vmatprep.subr.mxu0 %v1342
    %1498 = vmatpush1.msra.mxu0 %v1341
    %1499 = vmatprep.subr.mxu0 %v1346
    %1500 = vmatpush1.msra.mxu0 %v1345
    %1501 = vmatprep.subr.mxu0 %v1350
    %1502 = vmatpush1.msra.mxu0 %v1349
    %1503 = vmatprep.mubr.f32.mxu0 %v384
    %1504 = vmatmul.mubr.f32.gmra.mrb[0].mxu0 %v1223
    %v1505 = vpop.f32.mrb[0].mxu0
    %v1506 = vadd.f32 %v1422, %v1505
    %v1507 = vpop.f32.mrb[0].mxu0
    %v1508 = vadd.f32 %v1426, %v1507
    %1509 = vdwg.mxu0
    %1510 = vmatprep.subr.mxu0 %v1354
    %1511 = vmatpush1.msra.mxu0 %v1353
    %1512 = vmatprep.subr.mxu0 %v1358
    %1513 = vmatpush1.msra.mxu0 %v1357
    %1514 = vmatprep.subr.mxu0 %v1362
    %1515 = vmatpush1.msra.mxu0 %v1361
    %1516 = vmatprep.subr.mxu0 %v1366
    %1517 = vmatpush1.msra.mxu0 %v1365
    %1518 = vmatprep.subr.mxu0 %v1370
    %1519 = vmatpush1.msra.mxu0 %v1369
    %1520 = vmatprep.subr.mxu0 %v1374
    %1521 = vmatpush1.msra.mxu0 %v1373
    %1522 = vmatprep.subr.mxu0 %v1378
    %1523 = vmatpush1.msra.mxu0 %v1377
    %1524 = vmatprep.subr.mxu0 %v1382
    %1525 = vmatpush1.msra.mxu0 %v1381
    %1526 = vmatprep.subr.mxu0 %v1386
    %1527 = vmatpush1.msra.mxu0 %v1385
    %1528 = vmatprep.subr.mxu0 %v1390
    %1529 = vmatpush1.msra.mxu0 %v1389
    %1530 = vmatprep.subr.mxu0 %v1394
    %1531 = vmatpush1.msra.mxu0 %v1393
    %1532 = vmatprep.subr.mxu0 %v1398
    %1533 = vmatpush1.msra.mxu0 %v1397
    %1534 = vmatprep.subr.mxu0 %v1402
    %1535 = vmatpush1.msra.mxu0 %v1401
    %1536 = vmatprep.subr.mxu0 %v1406
    %1537 = vmatpush1.msra.mxu0 %v1405
    %1538 = vmatprep.subr.mxu0 %v1410
    %1539 = vmatpush1.msra.mxu0 %v1409
    %1540 = vmatprep.subr.mxu0 %v1414
    %1541 = vmatpush1.msra.mxu0 %v1413
    %1542 = vmatprep.subr.mxu0 0.0
    %1543 = vmatpush1.msra.mxu0 0.0
    %1544 = vmatprep.subr.mxu0 0.0
    %1545 = vmatpush1.msra.mxu0 0.0
    %1546 = vmatprep.subr.mxu0 0.0
    %1547 = vmatpush1.msra.mxu0 0.0
    %1548 = vmatprep.subr.mxu0 0.0
    %1549 = vmatpush1.msra.mxu0 0.0
    %1550 = vmatprep.subr.mxu0 0.0
    %1551 = vmatpush1.msra.mxu0 0.0
    %1552 = vmatprep.subr.mxu0 0.0
    %1553 = vmatpush1.msra.mxu0 0.0
    %1554 = vmatprep.subr.mxu0 0.0
    %1555 = vmatpush1.msra.mxu0 0.0
    %1556 = vmatprep.subr.mxu0 0.0
    %1557 = vmatpush1.msra.mxu0 0.0
    %1558 = vmatprep.subr.mxu0 0.0
    %1559 = vmatpush1.msra.mxu0 0.0
    %1560 = vmatprep.subr.mxu0 0.0
    %1561 = vmatpush1.msra.mxu0 0.0
    %1562 = vmatprep.subr.mxu0 0.0
    %1563 = vmatpush1.msra.mxu0 0.0
    %1564 = vmatprep.subr.mxu0 0.0
    %1565 = vmatpush1.msra.mxu0 0.0
    %1566 = vmatprep.subr.mxu0 0.0
    %1567 = vmatpush1.msra.mxu0 0.0
    %1568 = vmatprep.subr.mxu0 0.0
    %1569 = vmatpush1.msra.mxu0 0.0
    %1570 = vmatprep.subr.mxu0 0.0
    %1571 = vmatpush1.msra.mxu0 0.0
    %1572 = vmatprep.subr.mxu0 0.0
    %1573 = vmatpush1.msra.mxu0 0.0
    %1574 = vmatprep.mubr.f32.mxu0 0.0
    %1575 = vmatmul.mubr.f32.gmra.mrb[0].mxu0 %v74
    %v1576 = vpop.f32.mrb[0].mxu0
    %v1577 = vadd.f32 %v1506, %v1576
    %v1578 = vpop.f32.mrb[0].mxu0
    %v1579 = vadd.f32 %v1508, %v1578
    %1580 = vdwg.mxu0
    %1581 = vmatprep.subr.mxu0 %v1228
    %1582 = vmatpush1.msra.mxu0 %v1227
    %1583 = vmatprep.subr.mxu0 %v1232
    %1584 = vmatpush1.msra.mxu0 %v1231
    %1585 = vmatprep.subr.mxu0 %v1236
    %1586 = vmatpush1.msra.mxu0 %v1235
    %1587 = vmatprep.subr.mxu0 %v1240
    %1588 = vmatpush1.msra.mxu0 %v1239
    %1589 = vmatprep.subr.mxu0 %v1244
    %1590 = vmatpush1.msra.mxu0 %v1243
    %1591 = vmatprep.subr.mxu0 %v1248
    %1592 = vmatpush1.msra.mxu0 %v1247
    %1593 = vmatprep.subr.mxu0 %v1252
    %1594 = vmatpush1.msra.mxu0 %v1251
    %1595 = vmatprep.subr.mxu0 %v1256
    %1596 = vmatpush1.msra.mxu0 %v1255
    %1597 = vmatprep.subr.mxu0 %v1260
    %1598 = vmatpush1.msra.mxu0 %v1259
    %1599 = vmatprep.subr.mxu0 %v1264
    %1600 = vmatpush1.msra.mxu0 %v1263
    %1601 = vmatprep.subr.mxu0 %v1268
    %1602 = vmatpush1.msra.mxu0 %v1267
    %1603 = vmatprep.subr.mxu0 %v1272
    %1604 = vmatpush1.msra.mxu0 %v1271
    %1605 = vmatprep.subr.mxu0 %v1276
    %1606 = vmatpush1.msra.mxu0 %v1275
    %1607 = vmatprep.subr.mxu0 %v1280
    %1608 = vmatpush1.msra.mxu0 %v1279
    %1609 = vmatprep.subr.mxu0 %v1284
    %1610 = vmatpush1.msra.mxu0 %v1283
    %1611 = vmatprep.subr.mxu0 %v1288
    %1612 = vmatpush1.msra.mxu0 %v1287
    %1613 = vmatprep.subr.mxu0 %v1292
    %1614 = vmatpush1.msra.mxu0 %v1291
    %1615 = vmatprep.subr.mxu0 %v1296
    %1616 = vmatpush1.msra.mxu0 %v1295
    %1617 = vmatprep.subr.mxu0 %v1300
    %1618 = vmatpush1.msra.mxu0 %v1299
    %1619 = vmatprep.subr.mxu0 %v1304
    %1620 = vmatpush1.msra.mxu0 %v1303
    %1621 = vmatprep.subr.mxu0 %v1308
    %1622 = vmatpush1.msra.mxu0 %v1307
    %1623 = vmatprep.subr.mxu0 %v1312
    %1624 = vmatpush1.msra.mxu0 %v1311
    %1625 = vmatprep.subr.mxu0 %v1316
    %1626 = vmatpush1.msra.mxu0 %v1315
    %1627 = vmatprep.subr.mxu0 %v1320
    %1628 = vmatpush1.msra.mxu0 %v1319
    %1629 = vmatprep.subr.mxu0 %v1324
    %1630 = vmatpush1.msra.mxu0 %v1323
    %1631 = vmatprep.subr.mxu0 %v1328
    %1632 = vmatpush1.msra.mxu0 %v1327
    %1633 = vmatprep.subr.mxu0 %v1332
    %1634 = vmatpush1.msra.mxu0 %v1331
    %1635 = vmatprep.subr.mxu0 %v1336
    %1636 = vmatpush1.msra.mxu0 %v1335
    %1637 = vmatprep.subr.mxu0 %v1340
    %1638 = vmatpush1.msra.mxu0 %v1339
    %1639 = vmatprep.subr.mxu0 %v1344
    %1640 = vmatpush1.msra.mxu0 %v1343
    %1641 = vmatprep.subr.mxu0 %v1348
    %1642 = vmatpush1.msra.mxu0 %v1347
    %1643 = vmatprep.subr.mxu0 %v1352
    %1644 = vmatpush1.msra.mxu0 %v1351
    %1645 = vmatprep.mubr.f32.mxu0 %v384
    %1646 = vmatmul.mubr.f32.gmra.mrb[0].mxu0 %v1223
    %v1647 = vpop.f32.mrb[0].mxu0
    %v1648 = vadd.f32 %v1430, %v1647
    %v1649 = vpop.f32.mrb[0].mxu0
    %v1650 = vadd.f32 %v1434, %v1649
    %1651 = vdwg.mxu0
    %1652 = vmatprep.subr.mxu0 %v1356
    %1653 = vmatpush1.msra.mxu0 %v1355
    %1654 = vmatprep.subr.mxu0 %v1360
    %1655 = vmatpush1.msra.mxu0 %v1359
    %1656 = vmatprep.subr.mxu0 %v1364
    %1657 = vmatpush1.msra.mxu0 %v1363
    %1658 = vmatprep.subr.mxu0 %v1368
    %1659 = vmatpush1.msra.mxu0 %v1367
    %1660 = vmatprep.subr.mxu0 %v1372
    %1661 = vmatpush1.msra.mxu0 %v1371
    %1662 = vmatprep.subr.mxu0 %v1376
    %1663 = vmatpush1.msra.mxu0 %v1375
    %1664 = vmatprep.subr.mxu0 %v1380
    %1665 = vmatpush1.msra.mxu0 %v1379
    %1666 = vmatprep.subr.mxu0 %v1384
    %1667 = vmatpush1.msra.mxu0 %v1383
    %1668 = vmatprep.subr.mxu0 %v1388
    %1669 = vmatpush1.msra.mxu0 %v1387
    %1670 = vmatprep.subr.mxu0 %v1392
    %1671 = vmatpush1.msra.mxu0 %v1391
    %1672 = vmatprep.subr.mxu0 %v1396
    %1673 = vmatpush1.msra.mxu0 %v1395
    %1674 = vmatprep.subr.mxu0 %v1400
    %1675 = vmatpush1.msra.mxu0 %v1399
    %1676 = vmatprep.subr.mxu0 %v1404
    %1677 = vmatpush1.msra.mxu0 %v1403
    %1678 = vmatprep.subr.mxu0 %v1408
    %1679 = vmatpush1.msra.mxu0 %v1407
    %1680 = vmatprep.subr.mxu0 %v1412
    %1681 = vmatpush1.msra.mxu0 %v1411
    %1682 = vmatprep.subr.mxu0 %v1416
    %1683 = vmatpush1.msra.mxu0 %v1415
    %1684 = vmatprep.subr.mxu0 0.0
    %1685 = vmatpush1.msra.mxu0 0.0
    %1686 = vmatprep.subr.mxu0 0.0
    %1687 = vmatpush1.msra.mxu0 0.0
    %1688 = vmatprep.subr.mxu0 0.0
    %1689 = vmatpush1.msra.mxu0 0.0
    %1690 = vmatprep.subr.mxu0 0.0
    %1691 = vmatpush1.msra.mxu0 0.0
    %1692 = vmatprep.subr.mxu0 0.0
    %1693 = vmatpush1.msra.mxu0 0.0
    %1694 = vmatprep.subr.mxu0 0.0
    %1695 = vmatpush1.msra.mxu0 0.0
    %1696 = vmatprep.subr.mxu0 0.0
    %1697 = vmatpush1.msra.mxu0 0.0
    %1698 = vmatprep.subr.mxu0 0.0
    %1699 = vmatpush1.msra.mxu0 0.0
    %1700 = vmatprep.subr.mxu0 0.0
    %1701 = vmatpush1.msra.mxu0 0.0
    %1702 = vmatprep.subr.mxu0 0.0
    %1703 = vmatpush1.msra.mxu0 0.0
    %1704 = vmatprep.subr.mxu0 0.0
    %1705 = vmatpush1.msra.mxu0 0.0
    %1706 = vmatprep.subr.mxu0 0.0
    %1707 = vmatpush1.msra.mxu0 0.0
    %1708 = vmatprep.subr.mxu0 0.0
    %1709 = vmatpush1.msra.mxu0 0.0
    %1710 = vmatprep.subr.mxu0 0.0
    %1711 = vmatpush1.msra.mxu0 0.0
    %1712 = vmatprep.subr.mxu0 0.0
    %1713 = vmatpush1.msra.mxu0 0.0
    %1714 = vmatprep.subr.mxu0 0.0
    %1715 = vmatpush1.msra.mxu0 0.0
    %1716 = vmatprep.mubr.f32.mxu0 0.0
    %1717 = vmatmul.mubr.f32.gmra.mrb[0].mxu0 %v74
    %v1718 = vpop.f32.mrb[0].mxu0
    %v1719 = vadd.f32 %v1648, %v1718
    %v1720 = vpop.f32.mrb[0].mxu0
    %v1721 = vadd.f32 %v1650, %v1720
    %1722 = vdwg.mxu0
    %v1723 = vxor.u32 %v1577, 2147483648
    %v1724 = vmul.f32 %v1723, 1.442695
    %v1725 = vpow.pop %v1724
    %v1726 = vadd.f32 %v1725, 1.0
    %v1727 = vrcp.pop %v1726
    %v1728 = vmul.f32 1.0, %v1727
    %v1729 = vxor.u32 %v1579, 2147483648
    %v1730 = vmul.f32 %v1729, 1.442695
    %v1731 = vpow.pop %v1730
    %v1732 = vadd.f32 %v1731, 1.0
    %v1733 = vrcp.pop %v1732
    %v1734 = vmul.f32 1.0, %v1733
    %v1735 = vtanh.pop %v1719
    %v1736 = vxor.u32 %v1721, 2147483648
    %v1737 = vmul.f32 %v1736, 1.442695
    %v1738 = vpow.pop %v1737
    %v1739 = vadd.f32 %v1738, 1.0
    %v1740 = vrcp.pop %v1739
    %v1741 = vmul.f32 1.0, %v1740
    %v1742 = vmul.f32 %v1734, %v75
    %v1743 = vmul.f32 %v1728, %v1735
    %v1744 = vadd.f32 %v1742, %v1743
    %v1745 = vtanh.pop %v1744
    %v1746 = vmul.f32 %v1741, %v1745
    %v1747 = vld [vmem:[%s13] sm:$0xff]
    %v1748 = vld [vmem:[%s13 + $0x8] sm:$0xff]
    %v1749 = vld [vmem:[%s13 + $0x10] sm:$0xff]
    %v1750 = vld [vmem:[%s13 + $0x18] sm:$0xff]
    %v1751 = vld [vmem:[%s13 + $0x20] sm:$0xff]
    %v1752 = vld [vmem:[%s13 + $0x28] sm:$0xff]
    %v1753 = vld [vmem:[%s13 + $0x30] sm:$0xff]
    %v1754 = vld [vmem:[%s13 + $0x38] sm:$0xff]
    %v1755 = vld [vmem:[%s13 + $0x40] sm:$0xff]
    %v1756 = vld [vmem:[%s13 + $0x48] sm:$0xff]
    %v1757 = vld [vmem:[%s13 + $0x50] sm:$0xff]
    %v1758 = vld [vmem:[%s13 + $0x58] sm:$0xff]
    %v1759 = vld [vmem:[%s13 + $0x60] sm:$0xff]
    %v1760 = vld [vmem:[%s13 + $0x68] sm:$0xff]
    %v1761 = vld [vmem:[%s13 + $0x70] sm:$0xff]
    %v1762 = vld [vmem:[%s13 + $0x78] sm:$0xff]
    %v1763 = vld [vmem:[%s14] sm:$0x1]
    %v1765 = vlaneseq
    %v1766 = vshrl.u32 %v1765, 7
    %v1767 = vsub.s32 0, %v1766
    %v1768 = vrot.slane %v1763, %v1767
    %1770 = vmatprep.subr.mxu0 0.0
    %1771 = vmatpush1.msra.mxu0 %v1747
    %1772 = vmatprep.subr.mxu0 0.0
    %1773 = vmatpush1.msra.mxu0 %v1748
    %1774 = vmatprep.subr.mxu0 0.0
    %1775 = vmatpush1.msra.mxu0 %v1749
    %1776 = vmatprep.subr.mxu0 0.0
    %1777 = vmatpush1.msra.mxu0 %v1750
    %1778 = vmatprep.subr.mxu0 0.0
    %1779 = vmatpush1.msra.mxu0 %v1751
    %1780 = vmatprep.subr.mxu0 0.0
    %1781 = vmatpush1.msra.mxu0 %v1752
    %1782 = vmatprep.subr.mxu0 0.0
    %1783 = vmatpush1.msra.mxu0 %v1753
    %1784 = vmatprep.subr.mxu0 0.0
    %1785 = vmatpush1.msra.mxu0 %v1754
    %1786 = vmatprep.subr.mxu0 0.0
    %1787 = vmatpush1.msra.mxu0 %v1755
    %1788 = vmatprep.subr.mxu0 0.0
    %1789 = vmatpush1.msra.mxu0 %v1756
    %1790 = vmatprep.subr.mxu0 0.0
    %1791 = vmatpush1.msra.mxu0 %v1757
    %1792 = vmatprep.subr.mxu0 0.0
    %1793 = vmatpush1.msra.mxu0 %v1758
    %1794 = vmatprep.subr.mxu0 0.0
    %1795 = vmatpush1.msra.mxu0 %v1759
    %1796 = vmatprep.subr.mxu0 0.0
    %1797 = vmatpush1.msra.mxu0 %v1760
    %1798 = vmatprep.subr.mxu0 0.0
    %1799 = vmatpush1.msra.mxu0 %v1761
    %1800 = vmatprep.subr.mxu0 0.0
    %1801 = vmatpush1.msra.mxu0 %v1762
    %1802 = vmatprep.subr.mxu0 0.0
    %1803 = vmatpush1.msra.mxu0 0.0
    %1804 = vmatprep.subr.mxu0 0.0
    %1805 = vmatpush1.msra.mxu0 0.0
    %1806 = vmatprep.subr.mxu0 0.0
    %1807 = vmatpush1.msra.mxu0 0.0
    %1808 = vmatprep.subr.mxu0 0.0
    %1809 = vmatpush1.msra.mxu0 0.0
    %1810 = vmatprep.subr.mxu0 0.0
    %1811 = vmatpush1.msra.mxu0 0.0
    %1812 = vmatprep.subr.mxu0 0.0
    %1813 = vmatpush1.msra.mxu0 0.0
    %1814 = vmatprep.subr.mxu0 0.0
    %1815 = vmatpush1.msra.mxu0 0.0
    %1816 = vmatprep.subr.mxu0 0.0
    %1817 = vmatpush1.msra.mxu0 0.0
    %1818 = vmatprep.subr.mxu0 0.0
    %1819 = vmatpush1.msra.mxu0 0.0
    %1820 = vmatprep.subr.mxu0 0.0
    %1821 = vmatpush1.msra.mxu0 0.0
    %1822 = vmatprep.subr.mxu0 0.0
    %1823 = vmatpush1.msra.mxu0 0.0
    %1824 = vmatprep.subr.mxu0 0.0
    %1825 = vmatpush1.msra.mxu0 0.0
    %1826 = vmatprep.subr.mxu0 0.0
    %1827 = vmatpush1.msra.mxu0 0.0
    %1828 = vmatprep.subr.mxu0 0.0
    %1829 = vmatpush1.msra.mxu0 0.0
    %1830 = vmatprep.subr.mxu0 0.0
    %1831 = vmatpush1.msra.mxu0 0.0
    %1832 = vmatprep.subr.mxu0 0.0
    %1833 = vmatpush1.msra.mxu0 0.0
    %1834 = vmatprep.mubr.f32.mxu0 0.0
    %1835 = vmatmul.mubr.f32.gmra.mrb[0].mxu0 %v1746
    %v1836 = vpop.f32.mrb[0].mxu0
    %v1837 = vadd.f32 %v1768, %v1836
    %v1838 = vpop.f32.mrb[0].mxu0
    %1839 = vdwg.mxu0
    %1840 = vmax.xlane.f32.xlu0 %v1837
    %v1841 = vpop.xlane.xlu0 %1840
    %v1842 = vsub.f32 %v1837, %v1841
    %v1843 = vmul.f32 %v1842, 1.442695
    %v1844 = vpow.pop %v1843
    %1845 = vadd.xlane.f32.xlu0 %v1844
    %v1846 = vpop.xlane.xlu0 %1845
    %v1847 = vrcp.pop %v1846
    %v1848 = vmul.f32 %v1844, %v1847
    %s1849 = smul.u32 %s67, 8
    %s1850 = scalar_lea.vmem %s15, %s1849
    %1851 = vst [vmem:[%s1850] sm:$0xff] %v1848
    %1852 = vst [vmem:[#allocation2] sm:$0xff] %v384
    %1853 = vst [vmem:[#allocation3] sm:$0xff] %v382
    %1854 = vst [vmem:[#allocation4] sm:$0xff] %v1746
    %1855 = vst [vmem:[#allocation5] sm:$0xff] %v1744
  $region66: #{generator_forward.9} parent=0 // loop_footer
    %s69 = sadd.s32 %s67, 1
  $region67: #{generator_forward.9} parent=0 // loop_footer_branch
    %66 = sbr.rel target = $region63
  $region68: #{generator_forward.9} parent=0 // loop_exit
    _
  // Predicated region
  $region69: #{generator_forward.9} parent=0 // pred_check
    _
  $region70: #{generator_forward.9} parent=0 // pred_check_branch
    %1857 = sbr.rel (0) target = $region72
  $region71: #{generator_forward.9} parent=0 // pred_region
    _
  $region72: #{generator_forward.9} parent=0 // pred_fallthru
    _
  // Predicated region
  $region73: #{generator_forward.9} parent=0 // pred_check
    _
  $region74: #{generator_forward.9} parent=0 // pred_check_branch
    %1859 = sbr.rel (0) target = $region76
  $region75: #{generator_forward.9} parent=0 // pred_region
    _
  $region76: #{generator_forward.9} parent=0 // pred_fallthru
    _

</llo_original>
